<compile_context>
chip_gen: v5e
topology: v5e:2x2
jax: 0.10.0
libtpu: 0.0.40
codegen_flags: <defaults>
</compile_context>

<pallas_src>
import jax
import jax.numpy as jnp
from jax.experimental import pallas as pl
from jax.experimental.pallas import tpu as pltpu

PADW = 8  # sublane-aligned column offset for the zero-padded conv2 input


def _bottleneck_kernel(x_ref, w1_ref, b1_ref, w2_ref, b2_ref, w3_ref, b3_ref,
                       o_ref, pad_ref):
    # x_ref : (1, H, W, Cin)          one image, channels-last
    # w1_ref: (Cin, P)    b1_ref: (1, P)
    # w2_ref: (3, 3, P, P) (ky, kx, Cin, Cout)   b2_ref: (1, P)
    # w3_ref: (P, Cout)   b3_ref: (1, Cout)
    # o_ref : (1, H, W, Cout)
    # pad_ref: VMEM scratch (H+2, W+2*PADW, P) zero-padded conv2 activation
    _, H, W, C_in = x_ref.shape
    P = w1_ref.shape[1]
    C_out = w3_ref.shape[1]

    x = x_ref[0].reshape(H * W, C_in)                        # [HW, Cin] (layout-free)

    # ---- conv1 (1x1) + folded BN + ReLU --------------------------------
    t1 = jnp.dot(x, w1_ref[...], preferred_element_type=jnp.float32)
    t1 = jnp.maximum(t1 + b1_ref[...], 0.0)                  # [HW, P]

    # ---- conv2 (3x3, stride 1, pad 1) + folded BN + ReLU ---------------
    # Write the activation into a zero-padded scratch (sublane-aligned store
    # at column PADW), then accumulate 9 shifted matmuls.  Re-zero every step
    # so the halo is valid regardless of which core runs which grid index.
    pad_ref[...] = jnp.zeros(pad_ref.shape, pad_ref.dtype)
    pad_ref[1:H + 1, PADW:PADW + W, :] = t1.reshape(H, W, P)

    acc = jnp.zeros((H * W, P), dtype=jnp.float32)
    for dy in range(3):
        for dx in range(3):
            col = PADW - 1 + dx
            # static-slice ref read of one shifted window: [H, W, P]
            win = pad_ref[dy:dy + H, col:col + W, :]
            acc = acc + jnp.dot(win.reshape(H * W, P), w2_ref[dy, dx],
                                preferred_element_type=jnp.float32)
    t2 = jnp.maximum(acc + b2_ref[...], 0.0)                 # [HW, P]

    # ---- conv3 (1x1) + folded BN, residual add, ReLU -------------------
    t3 = jnp.dot(t2, w3_ref[...], preferred_element_type=jnp.float32)
    t3 = t3 + b3_ref[...]                                    # [HW, Cout]
    out = jnp.maximum(t3 + x, 0.0)                           # identity residual
    o_ref[0] = out.reshape(H, W, C_out).astype(o_ref.dtype)  # lane-dense store


def bottleneck_forward(x_nchw, p, *, eps=1e-5):
    """Fused Bottleneck forward (inference-mode BN), stride=1, downsample=None.

    x_nchw: [N, Cin, H, W] (PyTorch layout); conv weights in OIHW.
    Returns [N, Cout, H, W] with Cout = planes * expansion (== Cin here).
    """
    N, C_in, H, W = x_nchw.shape
    planes = p["w1"].shape[0]
    C_out = p["w3"].shape[0]
    assert C_in == C_out, "identity residual requires inplanes == planes*expansion"
    # TODO(synk): stride>1 and the optional downsample (1x1 conv + BN) branch of
    # Bottleneck.forward are not implemented in the fused kernel; this covers
    # the default (stride=1, downsample=None) case exercised below.

    def fold(w_oihw, g, b, m, v):
        s = g / jnp.sqrt(v + eps)
        return w_oihw * s[:, None, None, None], (b - m * s)

    w1f, b1 = fold(p["w1"], p["g1"], p["b1"], p["m1"], p["v1"])
    w2f, b2 = fold(p["w2"], p["g2"], p["b2"], p["m2"], p["v2"])
    w3f, b3 = fold(p["w3"], p["g3"], p["b3"], p["m3"], p["v3"])

    # matmul-friendly channels-last layouts
    w1_mat = jnp.transpose(w1f[:, :, 0, 0], (1, 0))          # [Cin, P]
    w2_mat = jnp.transpose(w2f, (2, 3, 1, 0))                # [3, 3, Pin, Pout]
    w3_mat = jnp.transpose(w3f[:, :, 0, 0], (1, 0))          # [P, Cout]
    b1 = b1.reshape(1, planes).astype(jnp.float32)
    b2 = b2.reshape(1, planes).astype(jnp.float32)
    b3 = b3.reshape(1, C_out).astype(jnp.float32)

    x_nhwc = jnp.transpose(x_nchw, (0, 2, 3, 1))             # [N, H, W, Cin]
    W_pad = W + 2 * PADW

    out_nhwc = pl.pallas_call(
        _bottleneck_kernel,
        out_shape=jax.ShapeDtypeStruct((N, H, W, C_out), x_nchw.dtype),
        grid_spec=pltpu.PrefetchScalarGridSpec(
            num_scalar_prefetch=0,
            grid=(N,),
            in_specs=[
                pl.BlockSpec((1, H, W, C_in), lambda n: (n, 0, 0, 0)),
                pl.BlockSpec((C_in, planes), lambda n: (0, 0)),
                pl.BlockSpec((1, planes), lambda n: (0, 0)),
                pl.BlockSpec((3, 3, planes, planes), lambda n: (0, 0, 0, 0)),
                pl.BlockSpec((1, planes), lambda n: (0, 0)),
                pl.BlockSpec((planes, C_out), lambda n: (0, 0)),
                pl.BlockSpec((1, C_out), lambda n: (0, 0)),
            ],
            out_specs=pl.BlockSpec((1, H, W, C_out), lambda n: (n, 0, 0, 0)),
            scratch_shapes=[pltpu.VMEM((H + 2, W_pad, planes), jnp.float32)],
        ),
        compiler_params=pltpu.CompilerParams(
            dimension_semantics=("parallel",)),
    )(x_nhwc, w1_mat, b1, w2_mat, b2, w3_mat, b3)

    return jnp.transpose(out_nhwc, (0, 3, 1, 2))             # back to NCHW


def _reference(x, p, eps=1e-5):
    """Pure-JAX NCHW reference (inference-mode BN), matching the PyTorch module."""
    def conv(x, w, stride, pad):
        return jax.lax.conv_general_dilated(
            x, w, (stride, stride), ((pad, pad), (pad, pad)),
            dimension_numbers=("NCHW", "OIHW", "NCHW"),
            precision=jax.lax.Precision.HIGHEST)

    def bn(y, g, b, m, v):
        s = g / jnp.sqrt(v + eps)
        return y * s[None, :, None, None] + (b - m * s)[None, :, None, None]

    out = jax.nn.relu(bn(conv(x, p["w1"], 1, 0), p["g1"], p["b1"], p["m1"], p["v1"]))
    out = jax.nn.relu(bn(conv(out, p["w2"], 1, 1), p["g2"], p["b2"], p["m2"], p["v2"]))
    out = bn(conv(out, p["w3"], 1, 0), p["g3"], p["b3"], p["m3"], p["v3"])
    return jax.nn.relu(out + x)


if __name__ == "__main__":
    # Small, module-consistent shapes: inplanes = planes * expansion so the
    # identity-residual (downsample=None, stride=1) branch applies.
    N, H, W = 2, 16, 16
    planes, expansion = 32, 4
    inplanes = planes * expansion        # 128
    outplanes = planes * expansion       # 128

    key = jax.random.PRNGKey(0)
    ks = jax.random.split(key, 16)

    x = jax.random.normal(ks[0], (N, inplanes, H, W), dtype=jnp.float32)

    params = {
        # conv weights in PyTorch OIHW layout, bias=False
        "w1": jax.random.normal(ks[1], (planes, inplanes, 1, 1), jnp.float32) * 0.05,
        "w2": jax.random.normal(ks[2], (planes, planes, 3, 3), jnp.float32) * 0.05,
        "w3": jax.random.normal(ks[3], (outplanes, planes, 1, 1), jnp.float32) * 0.05,
        # BatchNorm (gamma, beta, running_mean, running_var)
        "g1": jax.random.uniform(ks[4], (planes,), jnp.float32, 0.5, 1.5),
        "b1": jax.random.normal(ks[5], (planes,), jnp.float32) * 0.1,
        "m1": jax.random.normal(ks[6], (planes,), jnp.float32) * 0.1,
        "v1": jax.random.uniform(ks[7], (planes,), jnp.float32, 0.5, 1.5),
        "g2": jax.random.uniform(ks[8], (planes,), jnp.float32, 0.5, 1.5),
        "b2": jax.random.normal(ks[9], (planes,), jnp.float32) * 0.1,
        "m2": jax.random.normal(ks[10], (planes,), jnp.float32) * 0.1,
        "v2": jax.random.uniform(ks[11], (planes,), jnp.float32, 0.5, 1.5),
        "g3": jax.random.uniform(ks[12], (outplanes,), jnp.float32, 0.5, 1.5),
        "b3": jax.random.normal(ks[13], (outplanes,), jnp.float32) * 0.1,
        "m3": jax.random.normal(ks[14], (outplanes,), jnp.float32) * 0.1,
        "v3": jax.random.uniform(ks[15], (outplanes,), jnp.float32, 0.5, 1.5),
    }

    out = bottleneck_forward(x, params)
    out = jax.block_until_ready(out)

    ref = _reference(x, params)
    assert out.shape == (N, outplanes, H, W)
    max_err = float(jnp.max(jnp.abs(out - ref)))
    assert jnp.allclose(out, ref, atol=1e-4, rtol=1e-4), f"max_err={max_err}"

    print("KERNEL_OK")
</pallas_src>

<mosaic_0001>
module attributes {stable_mosaic.version = 11 : i64} {
  func.func @_bottleneck_kernel(%arg0: i32, %arg1: memref<1x16x16x128xf32, #tpu.memory_space<vmem>>, %arg2: memref<128x32xf32, #tpu.memory_space<vmem>>, %arg3: memref<1x32xf32, #tpu.memory_space<vmem>>, %arg4: memref<3x3x32x32xf32, #tpu.memory_space<vmem>>, %arg5: memref<1x32xf32, #tpu.memory_space<vmem>>, %arg6: memref<32x128xf32, #tpu.memory_space<vmem>>, %arg7: memref<1x128xf32, #tpu.memory_space<vmem>>, %arg8: memref<1x16x16x128xf32, #tpu.memory_space<vmem>>, %arg9: memref<18x32x32xf32, #tpu.memory_space<vmem>>) attributes {dimension_semantics = [#tpu.dimension_semantics<parallel>], iteration_bounds = array<i64: 2>, scalar_prefetch = 0 : i64, scratch_operands = 1 : i64, tpu.core_type = #tpu.core_type<tc>, window_params = [{transform_indices = @transform_0, window_bounds = array<i64: 1, 16, 16, 128>}, {pipeline_mode = #tpu.pipeline_mode<synchronous>, transform_indices = @transform_1, window_bounds = array<i64: 128, 32>}, {pipeline_mode = #tpu.pipeline_mode<synchronous>, transform_indices = @transform_2, window_bounds = array<i64: 1, 32>}, {pipeline_mode = #tpu.pipeline_mode<synchronous>, transform_indices = @transform_3, window_bounds = array<i64: 3, 3, 32, 32>}, {pipeline_mode = #tpu.pipeline_mode<synchronous>, transform_indices = @transform_4, window_bounds = array<i64: 1, 32>}, {pipeline_mode = #tpu.pipeline_mode<synchronous>, transform_indices = @transform_5, window_bounds = array<i64: 32, 128>}, {pipeline_mode = #tpu.pipeline_mode<synchronous>, transform_indices = @transform_6, window_bounds = array<i64: 1, 128>}, {transform_indices = @transform_7, window_bounds = array<i64: 1, 16, 16, 128>}]} {
    %c0 = arith.constant 0 : index
    %c0_0 = arith.constant 0 : index
    %c0_1 = arith.constant 0 : index
    %c0_2 = arith.constant 0 : index
    %0 = vector.load %arg1[%c0, %c0_0, %c0_1, %c0_2] : memref<1x16x16x128xf32, #tpu.memory_space<vmem>>, vector<1x16x16x128xf32>
    %1 = vector.shape_cast %0 : vector<1x16x16x128xf32> to vector<16x16x128xf32>
    %2 = vector.shape_cast %1 : vector<16x16x128xf32> to vector<256x128xf32>
    %c0_3 = arith.constant 0 : index
    %c0_4 = arith.constant 0 : index
    %3 = vector.load %arg2[%c0_3, %c0_4] : memref<128x32xf32, #tpu.memory_space<vmem>>, vector<128x32xf32>
    %cst = arith.constant dense<0.000000e+00> : vector<256x32xf32>
    %4 = tpu.matmul %2, %3, %cst {dimension_numbers = #tpu.dot_dimension_numbers<[1], [0], [0], [1], [0, 0, 1, 1], [], []>} : vector<256x128xf32>, vector<128x32xf32>, vector<256x32xf32> -> vector<256x32xf32>
    %c0_5 = arith.constant 0 : index
    %c0_6 = arith.constant 0 : index
    %5 = vector.load %arg3[%c0_5, %c0_6] : memref<1x32xf32, #tpu.memory_space<vmem>>, vector<1x32xf32>
    %6 = vector.broadcast %5 : vector<1x32xf32> to vector<256x32xf32>
    %7 = arith.addf %4, %6 : vector<256x32xf32>
    %cst_7 = arith.constant 0.000000e+00 : f32
    %8 = vector.broadcast %cst_7 : f32 to vector<256x32xf32>
    %9 = arith.maximumf %7, %8 : vector<256x32xf32>
    %cst_8 = arith.constant 0.000000e+00 : f32
    %10 = vector.broadcast %cst_8 : f32 to vector<18x32x32xf32>
    %c0_9 = arith.constant 0 : index
    %c0_10 = arith.constant 0 : index
    %c0_11 = arith.constant 0 : index
    %11 = vector.load %arg9[%c0_9, %c0_10, %c0_11] : memref<18x32x32xf32, #tpu.memory_space<vmem>>, vector<18x32x32xf32>
    tpu.vector_store %arg9[%c0_9, %c0_10, %c0_11], %10 {strides = array<i32>} : memref<18x32x32xf32, #tpu.memory_space<vmem>>, vector<18x32x32xf32>,
    %12 = vector.shape_cast %9 : vector<256x32xf32> to vector<16x16x32xf32>
    %c1 = arith.constant 1 : index
    %c8 = arith.constant 8 : index
    %c0_12 = arith.constant 0 : index
    %13 = vector.load %arg9[%c1, %c8, %c0_12] : memref<18x32x32xf32, #tpu.memory_space<vmem>>, vector<16x16x32xf32>
    tpu.vector_store %arg9[%c1, %c8, %c0_12], %12 {strides = array<i32>} : memref<18x32x32xf32, #tpu.memory_space<vmem>>, vector<16x16x32xf32>,
    %cst_13 = arith.constant 0.000000e+00 : f32
    %14 = vector.broadcast %cst_13 : f32 to vector<256x32xf32>
    %c0_14 = arith.constant 0 : index
    %c7 = arith.constant 7 : index
    %c0_15 = arith.constant 0 : index
    %15 = vector.load %arg9[%c0_14, %c7, %c0_15] : memref<18x32x32xf32, #tpu.memory_space<vmem>>, vector<16x16x32xf32>
    %16 = vector.shape_cast %15 : vector<16x16x32xf32> to vector<256x32xf32>
    %c0_16 = arith.constant 0 : index
    %c0_17 = arith.constant 0 : index
    %c0_18 = arith.constant 0 : index
    %c0_19 = arith.constant 0 : index
    %17 = vector.load %arg4[%c0_16, %c0_17, %c0_18, %c0_19] : memref<3x3x32x32xf32, #tpu.memory_space<vmem>>, vector<1x1x32x32xf32>
    %18 = vector.shape_cast %17 : vector<1x1x32x32xf32> to vector<32x32xf32>
    %cst_20 = arith.constant dense<0.000000e+00> : vector<256x32xf32>
    %19 = tpu.matmul %16, %18, %cst_20 {dimension_numbers = #tpu.dot_dimension_numbers<[1], [0], [0], [1], [0, 0, 1, 1], [], []>} : vector<256x32xf32>, vector<32x32xf32>, vector<256x32xf32> -> vector<256x32xf32>
    %20 = arith.addf %14, %19 : vector<256x32xf32>
    %c0_21 = arith.constant 0 : index
    %c8_22 = arith.constant 8 : index
    %c0_23 = arith.constant 0 : index
    %21 = vector.load %arg9[%c0_21, %c8_22, %c0_23] : memref<18x32x32xf32, #tpu.memory_space<vmem>>, vector<16x16x32xf32>
    %22 = vector.shape_cast %21 : vector<16x16x32xf32> to vector<256x32xf32>
    %c0_24 = arith.constant 0 : index
    %c1_25 = arith.constant 1 : index
    %c0_26 = arith.constant 0 : index
    %c0_27 = arith.constant 0 : index
    %23 = vector.load %arg4[%c0_24, %c1_25, %c0_26, %c0_27] : memref<3x3x32x32xf32, #tpu.memory_space<vmem>>, vector<1x1x32x32xf32>
    %24 = vector.shape_cast %23 : vector<1x1x32x32xf32> to vector<32x32xf32>
    %cst_28 = arith.constant dense<0.000000e+00> : vector<256x32xf32>
    %25 = tpu.matmul %22, %24, %cst_28 {dimension_numbers = #tpu.dot_dimension_numbers<[1], [0], [0], [1], [0, 0, 1, 1], [], []>} : vector<256x32xf32>, vector<32x32xf32>, vector<256x32xf32> -> vector<256x32xf32>
    %26 = arith.addf %20, %25 : vector<256x32xf32>
    %c0_29 = arith.constant 0 : index
    %c9 = arith.constant 9 : index
    %c0_30 = arith.constant 0 : index
    %27 = vector.load %arg9[%c0_29, %c9, %c0_30] : memref<18x32x32xf32, #tpu.memory_space<vmem>>, vector<16x16x32xf32>
    %28 = vector.shape_cast %27 : vector<16x16x32xf32> to vector<256x32xf32>
    %c0_31 = arith.constant 0 : index
    %c2 = arith.constant 2 : index
    %c0_32 = arith.constant 0 : index
    %c0_33 = arith.constant 0 : index
    %29 = vector.load %arg4[%c0_31, %c2, %c0_32, %c0_33] : memref<3x3x32x32xf32, #tpu.memory_space<vmem>>, vector<1x1x32x32xf32>
    %30 = vector.shape_cast %29 : vector<1x1x32x32xf32> to vector<32x32xf32>
    %cst_34 = arith.constant dense<0.000000e+00> : vector<256x32xf32>
    %31 = tpu.matmul %28, %30, %cst_34 {dimension_numbers = #tpu.dot_dimension_numbers<[1], [0], [0], [1], [0, 0, 1, 1], [], []>} : vector<256x32xf32>, vector<32x32xf32>, vector<256x32xf32> -> vector<256x32xf32>
    %32 = arith.addf %26, %31 : vector<256x32xf32>
    %c1_35 = arith.constant 1 : index
    %c7_36 = arith.constant 7 : index
    %c0_37 = arith.constant 0 : index
    %33 = vector.load %arg9[%c1_35, %c7_36, %c0_37] : memref<18x32x32xf32, #tpu.memory_space<vmem>>, vector<16x16x32xf32>
    %34 = vector.shape_cast %33 : vector<16x16x32xf32> to vector<256x32xf32>
    %c1_38 = arith.constant 1 : index
    %c0_39 = arith.constant 0 : index
    %c0_40 = arith.constant 0 : index
    %c0_41 = arith.constant 0 : index
    %35 = vector.load %arg4[%c1_38, %c0_39, %c0_40, %c0_41] : memref<3x3x32x32xf32, #tpu.memory_space<vmem>>, vector<1x1x32x32xf32>
    %36 = vector.shape_cast %35 : vector<1x1x32x32xf32> to vector<32x32xf32>
    %cst_42 = arith.constant dense<0.000000e+00> : vector<256x32xf32>
    %37 = tpu.matmul %34, %36, %cst_42 {dimension_numbers = #tpu.dot_dimension_numbers<[1], [0], [0], [1], [0, 0, 1, 1], [], []>} : vector<256x32xf32>, vector<32x32xf32>, vector<256x32xf32> -> vector<256x32xf32>
    %38 = arith.addf %32, %37 : vector<256x32xf32>
    %c1_43 = arith.constant 1 : index
    %c8_44 = arith.constant 8 : index
    %c0_45 = arith.constant 0 : index
    %39 = vector.load %arg9[%c1_43, %c8_44, %c0_45] : memref<18x32x32xf32, #tpu.memory_space<vmem>>, vector<16x16x32xf32>
    %40 = vector.shape_cast %39 : vector<16x16x32xf32> to vector<256x32xf32>
    %c1_46 = arith.constant 1 : index
    %c1_47 = arith.constant 1 : index
    %c0_48 = arith.constant 0 : index
    %c0_49 = arith.constant 0 : index
    %41 = vector.load %arg4[%c1_46, %c1_47, %c0_48, %c0_49] : memref<3x3x32x32xf32, #tpu.memory_space<vmem>>, vector<1x1x32x32xf32>
    %42 = vector.shape_cast %41 : vector<1x1x32x32xf32> to vector<32x32xf32>
    %cst_50 = arith.constant dense<0.000000e+00> : vector<256x32xf32>
    %43 = tpu.matmul %40, %42, %cst_50 {dimension_numbers = #tpu.dot_dimension_numbers<[1], [0], [0], [1], [0, 0, 1, 1], [], []>} : vector<256x32xf32>, vector<32x32xf32>, vector<256x32xf32> -> vector<256x32xf32>
    %44 = arith.addf %38, %43 : vector<256x32xf32>
    %c1_51 = arith.constant 1 : index
    %c9_52 = arith.constant 9 : index
    %c0_53 = arith.constant 0 : index
    %45 = vector.load %arg9[%c1_51, %c9_52, %c0_53] : memref<18x32x32xf32, #tpu.memory_space<vmem>>, vector<16x16x32xf32>
    %46 = vector.shape_cast %45 : vector<16x16x32xf32> to vector<256x32xf32>
    %c1_54 = arith.constant 1 : index
    %c2_55 = arith.constant 2 : index
    %c0_56 = arith.constant 0 : index
    %c0_57 = arith.constant 0 : index
    %47 = vector.load %arg4[%c1_54, %c2_55, %c0_56, %c0_57] : memref<3x3x32x32xf32, #tpu.memory_space<vmem>>, vector<1x1x32x32xf32>
    %48 = vector.shape_cast %47 : vector<1x1x32x32xf32> to vector<32x32xf32>
    %cst_58 = arith.constant dense<0.000000e+00> : vector<256x32xf32>
    %49 = tpu.matmul %46, %48, %cst_58 {dimension_numbers = #tpu.dot_dimension_numbers<[1], [0], [0], [1], [0, 0, 1, 1], [], []>} : vector<256x32xf32>, vector<32x32xf32>, vector<256x32xf32> -> vector<256x32xf32>
    %50 = arith.addf %44, %49 : vector<256x32xf32>
    %c2_59 = arith.constant 2 : index
    %c7_60 = arith.constant 7 : index
    %c0_61 = arith.constant 0 : index
    %51 = vector.load %arg9[%c2_59, %c7_60, %c0_61] : memref<18x32x32xf32, #tpu.memory_space<vmem>>, vector<16x16x32xf32>
    %52 = vector.shape_cast %51 : vector<16x16x32xf32> to vector<256x32xf32>
    %c2_62 = arith.constant 2 : index
    %c0_63 = arith.constant 0 : index
    %c0_64 = arith.constant 0 : index
    %c0_65 = arith.constant 0 : index
    %53 = vector.load %arg4[%c2_62, %c0_63, %c0_64, %c0_65] : memref<3x3x32x32xf32, #tpu.memory_space<vmem>>, vector<1x1x32x32xf32>
    %54 = vector.shape_cast %53 : vector<1x1x32x32xf32> to vector<32x32xf32>
    %cst_66 = arith.constant dense<0.000000e+00> : vector<256x32xf32>
    %55 = tpu.matmul %52, %54, %cst_66 {dimension_numbers = #tpu.dot_dimension_numbers<[1], [0], [0], [1], [0, 0, 1, 1], [], []>} : vector<256x32xf32>, vector<32x32xf32>, vector<256x32xf32> -> vector<256x32xf32>
    %56 = arith.addf %50, %55 : vector<256x32xf32>
    %c2_67 = arith.constant 2 : index
    %c8_68 = arith.constant 8 : index
    %c0_69 = arith.constant 0 : index
    %57 = vector.load %arg9[%c2_67, %c8_68, %c0_69] : memref<18x32x32xf32, #tpu.memory_space<vmem>>, vector<16x16x32xf32>
    %58 = vector.shape_cast %57 : vector<16x16x32xf32> to vector<256x32xf32>
    %c2_70 = arith.constant 2 : index
    %c1_71 = arith.constant 1 : index
    %c0_72 = arith.constant 0 : index
    %c0_73 = arith.constant 0 : index
    %59 = vector.load %arg4[%c2_70, %c1_71, %c0_72, %c0_73] : memref<3x3x32x32xf32, #tpu.memory_space<vmem>>, vector<1x1x32x32xf32>
    %60 = vector.shape_cast %59 : vector<1x1x32x32xf32> to vector<32x32xf32>
    %cst_74 = arith.constant dense<0.000000e+00> : vector<256x32xf32>
    %61 = tpu.matmul %58, %60, %cst_74 {dimension_numbers = #tpu.dot_dimension_numbers<[1], [0], [0], [1], [0, 0, 1, 1], [], []>} : vector<256x32xf32>, vector<32x32xf32>, vector<256x32xf32> -> vector<256x32xf32>
    %62 = arith.addf %56, %61 : vector<256x32xf32>
    %c2_75 = arith.constant 2 : index
    %c9_76 = arith.constant 9 : index
    %c0_77 = arith.constant 0 : index
    %63 = vector.load %arg9[%c2_75, %c9_76, %c0_77] : memref<18x32x32xf32, #tpu.memory_space<vmem>>, vector<16x16x32xf32>
    %64 = vector.shape_cast %63 : vector<16x16x32xf32> to vector<256x32xf32>
    %c2_78 = arith.constant 2 : index
    %c2_79 = arith.constant 2 : index
    %c0_80 = arith.constant 0 : index
    %c0_81 = arith.constant 0 : index
    %65 = vector.load %arg4[%c2_78, %c2_79, %c0_80, %c0_81] : memref<3x3x32x32xf32, #tpu.memory_space<vmem>>, vector<1x1x32x32xf32>
    %66 = vector.shape_cast %65 : vector<1x1x32x32xf32> to vector<32x32xf32>
    %cst_82 = arith.constant dense<0.000000e+00> : vector<256x32xf32>
    %67 = tpu.matmul %64, %66, %cst_82 {dimension_numbers = #tpu.dot_dimension_numbers<[1], [0], [0], [1], [0, 0, 1, 1], [], []>} : vector<256x32xf32>, vector<32x32xf32>, vector<256x32xf32> -> vector<256x32xf32>
    %68 = arith.addf %62, %67 : vector<256x32xf32>
    %c0_83 = arith.constant 0 : index
    %c0_84 = arith.constant 0 : index
    %69 = vector.load %arg5[%c0_83, %c0_84] : memref<1x32xf32, #tpu.memory_space<vmem>>, vector<1x32xf32>
    %70 = vector.broadcast %69 : vector<1x32xf32> to vector<256x32xf32>
    %71 = arith.addf %68, %70 : vector<256x32xf32>
    %cst_85 = arith.constant 0.000000e+00 : f32
    %72 = vector.broadcast %cst_85 : f32 to vector<256x32xf32>
    %73 = arith.maximumf %71, %72 : vector<256x32xf32>
    %c0_86 = arith.constant 0 : index
    %c0_87 = arith.constant 0 : index
    %74 = vector.load %arg6[%c0_86, %c0_87] : memref<32x128xf32, #tpu.memory_space<vmem>>, vector<32x128xf32>
    %cst_88 = arith.constant dense<0.000000e+00> : vector<256x128xf32>
    %75 = tpu.matmul %73, %74, %cst_88 {dimension_numbers = #tpu.dot_dimension_numbers<[1], [0], [0], [1], [0, 0, 1, 1], [], []>} : vector<256x32xf32>, vector<32x128xf32>, vector<256x128xf32> -> vector<256x128xf32>
    %c0_89 = arith.constant 0 : index
    %c0_90 = arith.constant 0 : index
    %76 = vector.load %arg7[%c0_89, %c0_90] : memref<1x128xf32, #tpu.memory_space<vmem>>, vector<1x128xf32>
    %77 = vector.broadcast %76 : vector<1x128xf32> to vector<256x128xf32>
    %78 = arith.addf %75, %77 : vector<256x128xf32>
    %79 = arith.addf %78, %2 : vector<256x128xf32>
    %cst_91 = arith.constant 0.000000e+00 : f32
    %80 = vector.broadcast %cst_91 : f32 to vector<256x128xf32>
    %81 = arith.maximumf %79, %80 : vector<256x128xf32>
    %82 = vector.shape_cast %81 : vector<256x128xf32> to vector<16x16x128xf32>
    %c0_92 = arith.constant 0 : index
    %c0_93 = arith.constant 0 : index
    %c0_94 = arith.constant 0 : index
    %c0_95 = arith.constant 0 : index
    %83 = vector.load %arg8[%c0_92, %c0_93, %c0_94, %c0_95] : memref<1x16x16x128xf32, #tpu.memory_space<vmem>>, vector<1x16x16x128xf32>
    %84 = vector.shape_cast %83 : vector<1x16x16x128xf32> to vector<16x16x128xf32>
    %85 = vector.shape_cast %82 : vector<16x16x128xf32> to vector<1x16x16x128xf32>
    tpu.vector_store %arg8[%c0_92, %c0_93, %c0_94, %c0_95], %85 {strides = array<i32>} : memref<1x16x16x128xf32, #tpu.memory_space<vmem>>, vector<1x16x16x128xf32>,
    return
  }
  func.func @transform_0(%arg0: i32) -> (i32, i32, i32, i32) {
    %c0_i32 = arith.constant 0 : i32
    %c0_i32_0 = arith.constant 0 : i32
    %c0_i32_1 = arith.constant 0 : i32
    %c0_i32_2 = arith.constant 0 : i32
    return %arg0, %c0_i32, %c0_i32_0, %c0_i32_1 : i32, i32, i32, i32
  }
  func.func @transform_1(%arg0: i32) -> (i32, i32) {
    %c0_i32 = arith.constant 0 : i32
    %c0_i32_0 = arith.constant 0 : i32
    %c0_i32_1 = arith.constant 0 : i32
    return %c0_i32, %c0_i32_0 : i32, i32
  }
  func.func @transform_2(%arg0: i32) -> (i32, i32) {
    %c0_i32 = arith.constant 0 : i32
    %c0_i32_0 = arith.constant 0 : i32
    %c0_i32_1 = arith.constant 0 : i32
    return %c0_i32, %c0_i32_0 : i32, i32
  }
  func.func @transform_3(%arg0: i32) -> (i32, i32, i32, i32) {
    %c0_i32 = arith.constant 0 : i32
    %c0_i32_0 = arith.constant 0 : i32
    %c0_i32_1 = arith.constant 0 : i32
    %c0_i32_2 = arith.constant 0 : i32
    %c0_i32_3 = arith.constant 0 : i32
    return %c0_i32, %c0_i32_0, %c0_i32_1, %c0_i32_2 : i32, i32, i32, i32
  }
  func.func @transform_4(%arg0: i32) -> (i32, i32) {
    %c0_i32 = arith.constant 0 : i32
    %c0_i32_0 = arith.constant 0 : i32
    %c0_i32_1 = arith.constant 0 : i32
    return %c0_i32, %c0_i32_0 : i32, i32
  }
  func.func @transform_5(%arg0: i32) -> (i32, i32) {
    %c0_i32 = arith.constant 0 : i32
    %c0_i32_0 = arith.constant 0 : i32
    %c0_i32_1 = arith.constant 0 : i32
    return %c0_i32, %c0_i32_0 : i32, i32
  }
  func.func @transform_6(%arg0: i32) -> (i32, i32) {
    %c0_i32 = arith.constant 0 : i32
    %c0_i32_0 = arith.constant 0 : i32
    %c0_i32_1 = arith.constant 0 : i32
    return %c0_i32, %c0_i32_0 : i32, i32
  }
  func.func @transform_7(%arg0: i32) -> (i32, i32, i32, i32) {
    %c0_i32 = arith.constant 0 : i32
    %c0_i32_0 = arith.constant 0 : i32
    %c0_i32_1 = arith.constant 0 : i32
    %c0_i32_2 = arith.constant 0 : i32
    return %arg0, %c0_i32, %c0_i32_0, %c0_i32_1 : i32, i32, i32, i32
  }
}

</mosaic_0001>

<llo_original>
// kernel: tpu_custom_call.1
$region0: #{tpu_custom_call.1}
  #allocation0 [shape = 'u32[]', space=smem, size = 0x4, offset = 0x4, fixed_abs, tag = 'smem constant byte address 0x4 - core index']
  #allocation1 [shape = 'u32[72,128]{1,0:T(1,128)}', space=vmem, size = 0x9000, scoped, tag = 'internal scratch']
  #allocation2 [shape = 'f32[18,32,32]{2,1,0:T(8,128)}', space=vmem, size = 0x48000, scoped, tag = 'scratch operand']
  %s0 = inlined_call_operand.hbm [shape: f32[2,16,16,128], index: 0, kind: input, shape index: {}]
  %s1 = inlined_call_operand.vmem [shape: f32[128,32], index: 1, kind: input, shape index: {}]
  %s2 = inlined_call_operand.vmem [shape: f32[1,32], index: 2, kind: input, shape index: {}]
  %s3 = inlined_call_operand.hbm [shape: f32[3,3,32,32], index: 3, kind: input, shape index: {}]
  %s4 = inlined_call_operand.vmem [shape: f32[1,32], index: 4, kind: input, shape index: {}]
  %s5 = inlined_call_operand.vmem [shape: f32[32,128], index: 5, kind: input, shape index: {}]
  %s6 = inlined_call_operand.vmem [shape: f32[1,128], index: 6, kind: input, shape index: {}]
  %s7 = inlined_call_operand.hbm [shape: f32[2,16,16,128], index: 7, kind: output, shape index: {}]
  %s8 = sld [smem:[#allocation0]]
  $region69: #{tpu_custom_call.1} parent=0
    _
  %s10 = ssub.s32 1, %s8
  %s11 = scalar_select 0, %s10, %s8
  $region1: #{tpu_custom_call.1} parent=0
    #allocation3 [shape = 'u8[262144]{0}', space=vmem, size = 0x40000, scoped, tag = 'input window, operand 0']
    #allocation4 [shape = 's32[2]{0}', space=sflag, size = 0x8, scoped, tag = 'scoped memory for tpu_custom_call.1']
    #allocation5 [shape = 's32[2]{0}', space=sflag, size = 0x8, scoped, tag = 'scoped memory for tpu_custom_call.1']
    #allocation6 [shape = 'u8[147456]{0}', space=vmem, size = 0x24000, scoped, tag = 'input window, operand 3, single buffered']
    #allocation7 [shape = 's32[1]{0}', space=sflag, size = 0x4, scoped, tag = 'scoped memory for tpu_custom_call.1']
    #allocation8 [shape = 'u8[262144]{0}', space=vmem, size = 0x40000, scoped, tag = 'output window, operand 0']
    %12 = vsyncpa [#allocation4], 0
    %s13 = scalar_lea.sflag [#allocation4], 1
    %14 = vsyncpa %s13, 0
    %15 = vsyncpa [#allocation7], 0
    %16 = vsyncpa [#allocation5], 0
    %s17 = scalar_lea.sflag [#allocation5], 1
    %18 = vsyncpa %s17, 0
    loop: start=0, step=1, limit=4
    $region2: #{tpu_custom_call.1} parent=1 // loop_pre_header
      _
    $region3: #{tpu_custom_call.1} parent=1 // loop_header
      %s20 = sphi 0, %s24
      %p21 = scmp.ge.s32.totalorder %s20, 4
      %s30 = sphi 0, %s32
      %s33 = sphi 0, %s30
      %s34 = sphi 0, %s33
      %s50 = sphi 0, %s34
      %s54 = sphi 0, %s54
      %s56 = sphi 0, %s54
      %s57 = sphi 0, %s56
      %s71 = sphi 0, %s57
      %s75 = sphi 0, %s75
      %s77 = sphi 0, %s75
      %s78 = sphi 0, %s77
      %s92 = sphi 0, %s78
      %s96 = sphi 0, %s96
      %s98 = sphi 0, %s96
      %s99 = sphi 0, %s98
      %s113 = sphi 0, %s99
      %s117 = sphi 0, %s117
      %s119 = sphi 0, %s117
      %s120 = sphi 0, %s119
      %s134 = sphi 0, %s120
      %s138 = sphi 0, %s138
      %s140 = sphi 0, %s138
      %s141 = sphi 0, %s140
      %s155 = sphi 0, %s141
      %s159 = sphi 0, %s159
      %s161 = sphi 0, %s159
      %s162 = sphi 0, %s161
      %s176 = sphi 0, %s162
      %s182 = sphi 0, %s184
      %s185 = sphi 0, %s182
      %s186 = sphi 0, %s185
      %s202 = sphi 0, %s186
    $region4: #{tpu_custom_call.1} parent=1 // loop_header_branch
      %23 = sbr.rel (%p21) target = $region8
    $region5: #{tpu_custom_call.1} parent=1 // loop_body
      %s25 = ssub.s32 %s20, 1
      %s26 = ssub.s32 %s20, 2
      %s27 = sadd.s32 %s20, 1
      %s28 = ssub.s32 %s20, %s27
      %p29 = scmp.eq.s32.totalorder %s28, 0
      %s31 = sadd.s32 %s30, 1
      %s32 = scalar_select %p29, %s30, %s31
      %p35 = pneg %p29
      %p36 = scmp.eq.s32.totalorder %s20, 1
      %p37 = por %p35, %p36
      %p38 = scmp.ne.s32.totalorder %s30, %s33
      %p39 = scmp.eq.s32.totalorder %s20, 0
      %p40 = por %p38, %p39
      %p41 = scmp.ne.s32.totalorder %s30, %s33
      %p42 = scmp.eq.s32.totalorder %s25, 1
      %p43 = por %p41, %p42
      %p44 = scmp.ne.s32.totalorder %s33, %s34
      %p45 = scmp.eq.s32.totalorder %s25, 0
      %p46 = por %p44, %p45
      %p47 = scmp.ne.s32.totalorder %s33, %s34
      %p48 = scmp.eq.s32.totalorder %s26, 1
      %p49 = por %p47, %p48
      %p51 = scmp.ne.s32.totalorder %s34, %s50
      %p52 = scmp.eq.s32.totalorder %s26, 0
      %p53 = por %p51, %p52
      %s55 = sadd.s32 %s54, 1
      %p58 = scmp.eq.s32.totalorder %s20, 1
      %p59 = scmp.ne.s32.totalorder %s54, %s56
      %p60 = scmp.eq.s32.totalorder %s20, 0
      %p61 = por %p59, %p60
      %p62 = scmp.ne.s32.totalorder %s54, %s56
      %p63 = scmp.eq.s32.totalorder %s25, 1
      %p64 = por %p62, %p63
      %p65 = scmp.ne.s32.totalorder %s56, %s57
      %p66 = scmp.eq.s32.totalorder %s25, 0
      %p67 = por %p65, %p66
      %p68 = scmp.ne.s32.totalorder %s56, %s57
      %p69 = scmp.eq.s32.totalorder %s26, 1
      %p70 = por %p68, %p69
      %p72 = scmp.ne.s32.totalorder %s57, %s71
      %p73 = scmp.eq.s32.totalorder %s26, 0
      %p74 = por %p72, %p73
      %s76 = sadd.s32 %s75, 1
      %p79 = scmp.eq.s32.totalorder %s20, 1
      %p80 = scmp.ne.s32.totalorder %s75, %s77
      %p81 = scmp.eq.s32.totalorder %s20, 0
      %p82 = por %p80, %p81
      %p83 = scmp.ne.s32.totalorder %s75, %s77
      %p84 = scmp.eq.s32.totalorder %s25, 1
      %p85 = por %p83, %p84
      %p86 = scmp.ne.s32.totalorder %s77, %s78
      %p87 = scmp.eq.s32.totalorder %s25, 0
      %p88 = por %p86, %p87
      %p89 = scmp.ne.s32.totalorder %s77, %s78
      %p90 = scmp.eq.s32.totalorder %s26, 1
      %p91 = por %p89, %p90
      %p93 = scmp.ne.s32.totalorder %s78, %s92
      %p94 = scmp.eq.s32.totalorder %s26, 0
      %p95 = por %p93, %p94
      %s97 = sadd.s32 %s96, 1
      %p100 = scmp.eq.s32.totalorder %s20, 1
      %p101 = scmp.ne.s32.totalorder %s96, %s98
      %p102 = scmp.eq.s32.totalorder %s20, 0
      %p103 = por %p101, %p102
      %p104 = scmp.ne.s32.totalorder %s96, %s98
      %p105 = scmp.eq.s32.totalorder %s25, 1
      %p106 = por %p104, %p105
      %p107 = scmp.ne.s32.totalorder %s98, %s99
      %p108 = scmp.eq.s32.totalorder %s25, 0
      %p109 = por %p107, %p108
      %p110 = scmp.ne.s32.totalorder %s98, %s99
      %p111 = scmp.eq.s32.totalorder %s26, 1
      %p112 = por %p110, %p111
      %p114 = scmp.ne.s32.totalorder %s99, %s113
      %p115 = scmp.eq.s32.totalorder %s26, 0
      %p116 = por %p114, %p115
      %s118 = sadd.s32 %s117, 1
      %p121 = scmp.eq.s32.totalorder %s20, 1
      %p122 = scmp.ne.s32.totalorder %s117, %s119
      %p123 = scmp.eq.s32.totalorder %s20, 0
      %p124 = por %p122, %p123
      %p125 = scmp.ne.s32.totalorder %s117, %s119
      %p126 = scmp.eq.s32.totalorder %s25, 1
      %p127 = por %p125, %p126
      %p128 = scmp.ne.s32.totalorder %s119, %s120
      %p129 = scmp.eq.s32.totalorder %s25, 0
      %p130 = por %p128, %p129
      %p131 = scmp.ne.s32.totalorder %s119, %s120
      %p132 = scmp.eq.s32.totalorder %s26, 1
      %p133 = por %p131, %p132
      %p135 = scmp.ne.s32.totalorder %s120, %s134
      %p136 = scmp.eq.s32.totalorder %s26, 0
      %p137 = por %p135, %p136
      %s139 = sadd.s32 %s138, 1
      %p142 = scmp.eq.s32.totalorder %s20, 1
      %p143 = scmp.ne.s32.totalorder %s138, %s140
      %p144 = scmp.eq.s32.totalorder %s20, 0
      %p145 = por %p143, %p144
      %p146 = scmp.ne.s32.totalorder %s138, %s140
      %p147 = scmp.eq.s32.totalorder %s25, 1
      %p148 = por %p146, %p147
      %p149 = scmp.ne.s32.totalorder %s140, %s141
      %p150 = scmp.eq.s32.totalorder %s25, 0
      %p151 = por %p149, %p150
      %p152 = scmp.ne.s32.totalorder %s140, %s141
      %p153 = scmp.eq.s32.totalorder %s26, 1
      %p154 = por %p152, %p153
      %p156 = scmp.ne.s32.totalorder %s141, %s155
      %p157 = scmp.eq.s32.totalorder %s26, 0
      %p158 = por %p156, %p157
      %s160 = sadd.s32 %s159, 1
      %p163 = scmp.eq.s32.totalorder %s20, 1
      %p164 = scmp.ne.s32.totalorder %s159, %s161
      %p165 = scmp.eq.s32.totalorder %s20, 0
      %p166 = por %p164, %p165
      %p167 = scmp.ne.s32.totalorder %s159, %s161
      %p168 = scmp.eq.s32.totalorder %s25, 1
      %p169 = por %p167, %p168
      %p170 = scmp.ne.s32.totalorder %s161, %s162
      %p171 = scmp.eq.s32.totalorder %s25, 0
      %p172 = por %p170, %p171
      %p173 = scmp.ne.s32.totalorder %s161, %s162
      %p174 = scmp.eq.s32.totalorder %s26, 1
      %p175 = por %p173, %p174
      %p177 = scmp.ne.s32.totalorder %s162, %s176
      %p178 = scmp.eq.s32.totalorder %s26, 0
      %p179 = por %p177, %p178
      %s180 = ssub.s32 %s20, %s27
      %p181 = scmp.eq.s32.totalorder %s180, 0
      %s183 = sadd.s32 %s182, 1
      %s184 = scalar_select %p181, %s182, %s183
      %p187 = pneg %p181
      %p188 = scmp.eq.s32.totalorder %s20, 1
      %p189 = por %p187, %p188
      %p190 = scmp.ne.s32.totalorder %s182, %s185
      %p191 = scmp.eq.s32.totalorder %s20, 0
      %p192 = por %p190, %p191
      %p193 = scmp.ne.s32.totalorder %s182, %s185
      %p194 = scmp.eq.s32.totalorder %s25, 1
      %p195 = por %p193, %p194
      %p196 = scmp.ne.s32.totalorder %s185, %s186
      %p197 = scmp.eq.s32.totalorder %s25, 0
      %p198 = por %p196, %p197
      %p199 = scmp.ne.s32.totalorder %s185, %s186
      %p200 = scmp.eq.s32.totalorder %s26, 1
      %p201 = por %p199, %p200
      %p203 = scmp.ne.s32.totalorder %s186, %s202
      %p204 = scmp.eq.s32.totalorder %s26, 0
      %p205 = por %p203, %p204
      %p206 = scmp.le.s32.totalorder 1, %s20
      %p207 = scmp.lt.s32.totalorder %s20, 3
      %p208 = pnand %p206, %p207
      %p209 = pneg %p208
      // Predicated region
      $region9: #{tpu_custom_call.1} parent=5 // pred_check
        _
      $region10: #{tpu_custom_call.1} parent=5 // pred_check_branch
        %211 = sbr.rel (%p208) target = $region12
      $region11: #{tpu_custom_call.1} parent=5 // pred_region
        %s212 = ssub.s32 %s20, 1
        // Predicated region
        $region13: #{tpu_custom_call.1} parent=11 // pred_check
          %p213 = pneg %p67
        $region14: #{tpu_custom_call.1} parent=11 // pred_check_branch
          %215 = sbr.rel (%p213) target = $region16
        $region15: #{tpu_custom_call.1} parent=11 // pred_region
          _
        $region16: #{tpu_custom_call.1} parent=11 // pred_fallthru
          _
        // Predicated region
        $region17: #{tpu_custom_call.1} parent=11 // pred_check
          %p216 = pneg %p88
        $region18: #{tpu_custom_call.1} parent=11 // pred_check_branch
          %218 = sbr.rel (%p216) target = $region20
        $region19: #{tpu_custom_call.1} parent=11 // pred_region
          _
        $region20: #{tpu_custom_call.1} parent=11 // pred_fallthru
          _
        // Predicated region
        $region21: #{tpu_custom_call.1} parent=11 // pred_check
          %p219 = pneg %p109
        $region22: #{tpu_custom_call.1} parent=11 // pred_check_branch
          %221 = sbr.rel (%p219) target = $region24
        $region23: #{tpu_custom_call.1} parent=11 // pred_region
          %223 = vsyncadd [#allocation7], 0
          %s224 = sshll.u32 %s3, 4
          %s225 = int_to_ptr.hbm [resolvable:$true] %s224
          %s226 = sshll.u32 [#allocation6], 4
          %s227 = int_to_ptr.vmem [resolvable:$true] %s226
          %232 = dma.hbm_to_vmem [thread:$0]  %s225, 4608, %s227, [#allocation7], 128, 128, 8
        $region24: #{tpu_custom_call.1} parent=11 // pred_fallthru
          _
        // Predicated region
        $region25: #{tpu_custom_call.1} parent=11 // pred_check
          %p233 = pneg %p130
        $region26: #{tpu_custom_call.1} parent=11 // pred_check_branch
          %235 = sbr.rel (%p233) target = $region28
        $region27: #{tpu_custom_call.1} parent=11 // pred_region
          _
        $region28: #{tpu_custom_call.1} parent=11 // pred_fallthru
          _
        // Predicated region
        $region29: #{tpu_custom_call.1} parent=11 // pred_check
          %p236 = pneg %p151
        $region30: #{tpu_custom_call.1} parent=11 // pred_check_branch
          %238 = sbr.rel (%p236) target = $region32
        $region31: #{tpu_custom_call.1} parent=11 // pred_region
          _
        $region32: #{tpu_custom_call.1} parent=11 // pred_fallthru
          _
        // Predicated region
        $region33: #{tpu_custom_call.1} parent=11 // pred_check
          %p239 = pneg %p172
        $region34: #{tpu_custom_call.1} parent=11 // pred_check_branch
          %241 = sbr.rel (%p239) target = $region36
        $region35: #{tpu_custom_call.1} parent=11 // pred_region
          _
        $region36: #{tpu_custom_call.1} parent=11 // pred_fallthru
          _
      $region12: #{tpu_custom_call.1} parent=5 // pred_fallthru
        _
      %p242 = scmp.lt.s32.totalorder %s20, 2
      // Predicated region
      $region37: #{tpu_custom_call.1} parent=5 // pred_check
        %p243 = pneg %p242
      $region38: #{tpu_custom_call.1} parent=5 // pred_check_branch
        %245 = sbr.rel (%p243) target = $region40
      $region39: #{tpu_custom_call.1} parent=5 // pred_region
        // Predicated region
        $region41: #{tpu_custom_call.1} parent=39 // pred_check
          %p246 = pneg %p40
        $region42: #{tpu_custom_call.1} parent=39 // pred_check_branch
          %248 = sbr.rel (%p246) target = $region44
        $region43: #{tpu_custom_call.1} parent=39 // pred_region
          %s249 = sand.u32 %s30, 1
          %s250 = scalar_lea.sflag [#allocation4], %s249
          %s251 = sand.u32 %s30, 1
          %s252 = smul.addr %s251, 256
          %s253 = scalar_lea.vmem [#allocation3], %s252
          %255 = vsyncadd %s250, 0
          %s256 = smul.addr %s20, 32
          %s257 = smul.addr %s256, 8
          %s258 = scalar_lea.hbm %s0, %s257
          %s259 = sshll.u32 %s258, 4
          %s260 = int_to_ptr.hbm [resolvable:$true] %s259
          %s261 = sshll.u32 %s253, 4
          %s262 = int_to_ptr.vmem [resolvable:$true] %s261
          %267 = dma.hbm_to_vmem [thread:$0]  %s260, 4096, %s262, %s250, 128, 128, 8
        $region44: #{tpu_custom_call.1} parent=39 // pred_fallthru
          _
      $region40: #{tpu_custom_call.1} parent=5 // pred_fallthru
        _
      %p268 = scmp.le.s32.totalorder 1, %s20
      %p269 = scmp.lt.s32.totalorder %s20, 3
      %p270 = pnand %p268, %p269
      %p271 = pneg %p270
      // Predicated region
      $region45: #{tpu_custom_call.1} parent=5 // pred_check
        _
      $region46: #{tpu_custom_call.1} parent=5 // pred_check_branch
        %273 = sbr.rel (%p270) target = $region48
      $region47: #{tpu_custom_call.1} parent=5 // pred_region
        %s274 = ssub.s32 %s20, 1
        %s275 = sand.u32 %s33, 1
        %s276 = scalar_lea.sflag [#allocation4], %s275
        %s277 = sand.u32 %s33, 1
        %s278 = smul.addr %s277, 256
        %s279 = scalar_lea.vmem [#allocation3], %s278
        // Predicated region
        $region49: #{tpu_custom_call.1} parent=47 // pred_check
          %p280 = pneg %p46
        $region50: #{tpu_custom_call.1} parent=47 // pred_check_branch
          %282 = sbr.rel (%p280) target = $region52
        $region51: #{tpu_custom_call.1} parent=47 // pred_region
          %284 = dma.done %s276, 4096
        $region52: #{tpu_custom_call.1} parent=47 // pred_fallthru
          _
        // Predicated region
        $region53: #{tpu_custom_call.1} parent=47 // pred_check
          %p285 = pneg %p109
        $region54: #{tpu_custom_call.1} parent=47 // pred_check_branch
          %287 = sbr.rel (%p285) target = $region56
        $region55: #{tpu_custom_call.1} parent=47 // pred_region
          %289 = dma.done [#allocation7], 4608
        $region56: #{tpu_custom_call.1} parent=47 // pred_fallthru
          _
        %s290 = sand.u32 %s33, 1
        %s291 = scalar_lea.sflag [#allocation4], %s290
        %s292 = sand.u32 %s33, 1
        %s293 = smul.addr %s292, 256
        %s294 = scalar_lea.vmem [#allocation3], %s293
        %p295 = pneg %p46
        %p296 = pneg %p43
        %p297 = pneg %p67
        %p298 = pneg %p64
        %p299 = pneg %p88
        %p300 = pneg %p85
        %p301 = pneg %p109
        %p302 = pneg %p106
        %p303 = pneg %p130
        %p304 = pneg %p127
        %p305 = pneg %p151
        %p306 = pneg %p148
        %p307 = pneg %p172
        %p308 = pneg %p169
        %p309 = pneg %p198
        %p310 = pneg %p195
        %s311 = sand.u32 %s185, 1
        %s312 = scalar_lea.sflag [#allocation5], %s311
        %s313 = sand.u32 %s185, 1
        %s314 = smul.addr %s313, 256
        %s315 = scalar_lea.vmem [#allocation8], %s314
        %v316 = vld [vmem:[%s279] sm:$0xff]
        %v317 = vld [vmem:[%s279 + $0x8] sm:$0xff]
        %v318 = vld [vmem:[%s279 + $0x10] sm:$0xff]
        %v319 = vld [vmem:[%s279 + $0x18] sm:$0xff]
        %v320 = vld [vmem:[%s279 + $0x20] sm:$0xff]
        %v321 = vld [vmem:[%s279 + $0x28] sm:$0xff]
        %v322 = vld [vmem:[%s279 + $0x30] sm:$0xff]
        %v323 = vld [vmem:[%s279 + $0x38] sm:$0xff]
        %v324 = vld [vmem:[%s279 + $0x40] sm:$0xff]
        %v325 = vld [vmem:[%s279 + $0x48] sm:$0xff]
        %v326 = vld [vmem:[%s279 + $0x50] sm:$0xff]
        %v327 = vld [vmem:[%s279 + $0x58] sm:$0xff]
        %v328 = vld [vmem:[%s279 + $0x60] sm:$0xff]
        %v329 = vld [vmem:[%s279 + $0x68] sm:$0xff]
        %v330 = vld [vmem:[%s279 + $0x70] sm:$0xff]
        %v331 = vld [vmem:[%s279 + $0x78] sm:$0xff]
        %v332 = vld [vmem:[%s279 + $0x80] sm:$0xff]
        %v333 = vld [vmem:[%s279 + $0x88] sm:$0xff]
        %v334 = vld [vmem:[%s279 + $0x90] sm:$0xff]
        %v335 = vld [vmem:[%s279 + $0x98] sm:$0xff]
        %v336 = vld [vmem:[%s279 + $0xa0] sm:$0xff]
        %v337 = vld [vmem:[%s279 + $0xa8] sm:$0xff]
        %v338 = vld [vmem:[%s279 + $0xb0] sm:$0xff]
        %v339 = vld [vmem:[%s279 + $0xb8] sm:$0xff]
        %v340 = vld [vmem:[%s279 + $0xc0] sm:$0xff]
        %v341 = vld [vmem:[%s279 + $0xc8] sm:$0xff]
        %v342 = vld [vmem:[%s279 + $0xd0] sm:$0xff]
        %v343 = vld [vmem:[%s279 + $0xd8] sm:$0xff]
        %v344 = vld [vmem:[%s279 + $0xe0] sm:$0xff]
        %v345 = vld [vmem:[%s279 + $0xe8] sm:$0xff]
        %v346 = vld [vmem:[%s279 + $0xf0] sm:$0xff]
        %v347 = vld [vmem:[%s279 + $0xf8] sm:$0xff]
        %v348 = vld [vmem:[%s1] sm:$0xff]
        %v349 = vld [vmem:[%s1 + $0x8] sm:$0xff]
        %v350 = vld [vmem:[%s1 + $0x10] sm:$0xff]
        %v351 = vld [vmem:[%s1 + $0x18] sm:$0xff]
        %v352 = vld [vmem:[%s1 + $0x20] sm:$0xff]
        %v353 = vld [vmem:[%s1 + $0x28] sm:$0xff]
        %v354 = vld [vmem:[%s1 + $0x30] sm:$0xff]
        %v355 = vld [vmem:[%s1 + $0x38] sm:$0xff]
        %v356 = vld [vmem:[%s1 + $0x40] sm:$0xff]
        %v357 = vld [vmem:[%s1 + $0x48] sm:$0xff]
        %v358 = vld [vmem:[%s1 + $0x50] sm:$0xff]
        %v359 = vld [vmem:[%s1 + $0x58] sm:$0xff]
        %v360 = vld [vmem:[%s1 + $0x60] sm:$0xff]
        %v361 = vld [vmem:[%s1 + $0x68] sm:$0xff]
        %v362 = vld [vmem:[%s1 + $0x70] sm:$0xff]
        %v363 = vld [vmem:[%s1 + $0x78] sm:$0xff]
        %v364 = vld [vmem:[%s2] sm:$0x1]
        %v366 = vperm.slane %v364, 0
        %368 = vmatpush.msra.mxu0 %v363
        %369 = vmatpush.msra.mxu0 %v362
        %370 = vmatpush.msra.mxu0 %v361
        %371 = vmatpush.msra.mxu0 %v360
        %372 = vmatpush.msra.mxu0 %v359
        %373 = vmatpush.msra.mxu0 %v358
        %374 = vmatpush.msra.mxu0 %v357
        %375 = vmatpush.msra.mxu0 %v356
        %376 = vmatpush.msra.mxu0 %v355
        %377 = vmatpush.msra.mxu0 %v354
        %378 = vmatpush.msra.mxu0 %v353
        %379 = vmatpush.msra.mxu0 %v352
        %380 = vmatpush.msra.mxu0 %v351
        %381 = vmatpush.msra.mxu0 %v350
        %382 = vmatpush.msra.mxu0 %v349
        %383 = vmatpush.msra.mxu0 %v348
        %384 = vmatmul.f32.gmra.mxu0 %v316
        %v385 = vpop.f32.mrf.mxu0
        %v386 = vadd.f32 %v366, %v385
        %387 = vmatmul.f32.gmra.mxu0 %v317
        %v388 = vpop.f32.mrf.mxu0
        %v389 = vadd.f32 %v366, %v388
        %390 = vmatmul.f32.gmra.mxu0 %v318
        %v391 = vpop.f32.mrf.mxu0
        %v392 = vadd.f32 %v366, %v391
        %393 = vmatmul.f32.gmra.mxu0 %v319
        %v394 = vpop.f32.mrf.mxu0
        %v395 = vadd.f32 %v366, %v394
        %396 = vmatmul.f32.gmra.mxu0 %v320
        %v397 = vpop.f32.mrf.mxu0
        %v398 = vadd.f32 %v366, %v397
        %399 = vmatmul.f32.gmra.mxu0 %v321
        %v400 = vpop.f32.mrf.mxu0
        %v401 = vadd.f32 %v366, %v400
        %402 = vmatmul.f32.gmra.mxu0 %v322
        %v403 = vpop.f32.mrf.mxu0
        %v404 = vadd.f32 %v366, %v403
        %405 = vmatmul.f32.gmra.mxu0 %v323
        %v406 = vpop.f32.mrf.mxu0
        %v407 = vadd.f32 %v366, %v406
        %408 = vmatmul.f32.gmra.mxu0 %v324
        %v409 = vpop.f32.mrf.mxu0
        %v410 = vadd.f32 %v366, %v409
        %411 = vmatmul.f32.gmra.mxu0 %v325
        %v412 = vpop.f32.mrf.mxu0
        %v413 = vadd.f32 %v366, %v412
        %414 = vmatmul.f32.gmra.mxu0 %v326
        %v415 = vpop.f32.mrf.mxu0
        %v416 = vadd.f32 %v366, %v415
        %417 = vmatmul.f32.gmra.mxu0 %v327
        %v418 = vpop.f32.mrf.mxu0
        %v419 = vadd.f32 %v366, %v418
        %420 = vmatmul.f32.gmra.mxu0 %v328
        %v421 = vpop.f32.mrf.mxu0
        %v422 = vadd.f32 %v366, %v421
        %423 = vmatmul.f32.gmra.mxu0 %v329
        %v424 = vpop.f32.mrf.mxu0
        %v425 = vadd.f32 %v366, %v424
        %426 = vmatmul.f32.gmra.mxu0 %v330
        %v427 = vpop.f32.mrf.mxu0
        %v428 = vadd.f32 %v366, %v427
        %429 = vmatmul.f32.gmra.mxu0 %v331
        %v430 = vpop.f32.mrf.mxu0
        %v431 = vadd.f32 %v366, %v430
        %432 = vmatmul.f32.gmra.mxu0 %v332
        %v433 = vpop.f32.mrf.mxu0
        %v434 = vadd.f32 %v366, %v433
        %435 = vmatmul.f32.gmra.mxu0 %v333
        %v436 = vpop.f32.mrf.mxu0
        %v437 = vadd.f32 %v366, %v436
        %438 = vmatmul.f32.gmra.mxu0 %v334
        %v439 = vpop.f32.mrf.mxu0
        %v440 = vadd.f32 %v366, %v439
        %441 = vmatmul.f32.gmra.mxu0 %v335
        %v442 = vpop.f32.mrf.mxu0
        %v443 = vadd.f32 %v366, %v442
        %444 = vmatmul.f32.gmra.mxu0 %v336
        %v445 = vpop.f32.mrf.mxu0
        %v446 = vadd.f32 %v366, %v445
        %447 = vmatmul.f32.gmra.mxu0 %v337
        %v448 = vpop.f32.mrf.mxu0
        %v449 = vadd.f32 %v366, %v448
        %450 = vmatmul.f32.gmra.mxu0 %v338
        %v451 = vpop.f32.mrf.mxu0
        %v452 = vadd.f32 %v366, %v451
        %453 = vmatmul.f32.gmra.mxu0 %v339
        %v454 = vpop.f32.mrf.mxu0
        %v455 = vadd.f32 %v366, %v454
        %456 = vmatmul.f32.gmra.mxu0 %v340
        %v457 = vpop.f32.mrf.mxu0
        %v458 = vadd.f32 %v366, %v457
        %459 = vmatmul.f32.gmra.mxu0 %v341
        %v460 = vpop.f32.mrf.mxu0
        %v461 = vadd.f32 %v366, %v460
        %462 = vmatmul.f32.gmra.mxu0 %v342
        %v463 = vpop.f32.mrf.mxu0
        %v464 = vadd.f32 %v366, %v463
        %465 = vmatmul.f32.gmra.mxu0 %v343
        %v466 = vpop.f32.mrf.mxu0
        %v467 = vadd.f32 %v366, %v466
        %468 = vmatmul.f32.gmra.mxu0 %v344
        %v469 = vpop.f32.mrf.mxu0
        %v470 = vadd.f32 %v366, %v469
        %471 = vmatmul.f32.gmra.mxu0 %v345
        %v472 = vpop.f32.mrf.mxu0
        %v473 = vadd.f32 %v366, %v472
        %474 = vmatmul.f32.gmra.mxu0 %v346
        %v475 = vpop.f32.mrf.mxu0
        %v476 = vadd.f32 %v366, %v475
        %477 = vmatmul.f32.gmra.mxu0 %v347
        %v478 = vpop.f32.mrf.mxu0
        %v479 = vadd.f32 %v366, %v478
        %480 = vdwg.mxu0
        %v481 = vmax.f32 %v386, 0.0
        %v482 = vmax.f32 %v389, 0.0
        %v483 = vmax.f32 %v392, 0.0
        %v484 = vmax.f32 %v395, 0.0
        %v485 = vmax.f32 %v398, 0.0
        %v486 = vmax.f32 %v401, 0.0
        %v487 = vmax.f32 %v404, 0.0
        %v488 = vmax.f32 %v407, 0.0
        %v489 = vmax.f32 %v410, 0.0
        %v490 = vmax.f32 %v413, 0.0
        %v491 = vmax.f32 %v416, 0.0
        %v492 = vmax.f32 %v419, 0.0
        %v493 = vmax.f32 %v422, 0.0
        %v494 = vmax.f32 %v425, 0.0
        %v495 = vmax.f32 %v428, 0.0
        %v496 = vmax.f32 %v431, 0.0
        %v497 = vmax.f32 %v434, 0.0
        %v498 = vmax.f32 %v437, 0.0
        %v499 = vmax.f32 %v440, 0.0
        %v500 = vmax.f32 %v443, 0.0
        %v501 = vmax.f32 %v446, 0.0
        %v502 = vmax.f32 %v449, 0.0
        %v503 = vmax.f32 %v452, 0.0
        %v504 = vmax.f32 %v455, 0.0
        %v505 = vmax.f32 %v458, 0.0
        %v506 = vmax.f32 %v461, 0.0
        %v507 = vmax.f32 %v464, 0.0
        %v508 = vmax.f32 %v467, 0.0
        %v509 = vmax.f32 %v470, 0.0
        %v510 = vmax.f32 %v473, 0.0
        %v511 = vmax.f32 %v476, 0.0
        %v512 = vmax.f32 %v479, 0.0
        %vm513 = vcmask 261120
        %514 = vst.msk [vmem:[#allocation2] sm:$0xff] %vm513, 0.0
        %515 = vst.msk [vmem:[#allocation2 + $0x8] sm:$0xff] %vm513, 0.0
        %516 = vst.msk [vmem:[#allocation2 + $0x10] sm:$0xff] %vm513, 0.0
        %517 = vst.msk [vmem:[#allocation2 + $0x18] sm:$0xff] %vm513, 0.0
        %518 = vst.msk [vmem:[#allocation2 + $0x20] sm:$0xff] %vm513, 0.0
        %519 = vst.msk [vmem:[#allocation2 + $0x28] sm:$0xff] %vm513, 0.0
        %520 = vst.msk [vmem:[#allocation2 + $0x30] sm:$0xff] %vm513, 0.0
        %521 = vst.msk [vmem:[#allocation2 + $0x38] sm:$0xff] %vm513, 0.0
        %522 = vst.msk [vmem:[#allocation2 + $0x40] sm:$0xff] %vm513, 0.0
        %523 = vst.msk [vmem:[#allocation2 + $0x48] sm:$0xff] %vm513, 0.0
        %524 = vst.msk [vmem:[#allocation2 + $0x50] sm:$0xff] %vm513, 0.0
        %525 = vst.msk [vmem:[#allocation2 + $0x58] sm:$0xff] %vm513, 0.0
        %526 = vst.msk [vmem:[#allocation2 + $0x60] sm:$0xff] %vm513, 0.0
        %527 = vst.msk [vmem:[#allocation2 + $0x68] sm:$0xff] %vm513, 0.0
        %528 = vst.msk [vmem:[#allocation2 + $0x70] sm:$0xff] %vm513, 0.0
        %529 = vst.msk [vmem:[#allocation2 + $0x78] sm:$0xff] %vm513, 0.0
        %530 = vst.msk [vmem:[#allocation2 + $0x80] sm:$0xff] %vm513, 0.0
        %531 = vst.msk [vmem:[#allocation2 + $0x88] sm:$0xff] %vm513, 0.0
        %532 = vst.msk [vmem:[#allocation2 + $0x90] sm:$0xff] %vm513, 0.0
        %533 = vst.msk [vmem:[#allocation2 + $0x98] sm:$0xff] %vm513, 0.0
        %534 = vst.msk [vmem:[#allocation2 + $0xa0] sm:$0xff] %vm513, 0.0
        %535 = vst.msk [vmem:[#allocation2 + $0xa8] sm:$0xff] %vm513, 0.0
        %536 = vst.msk [vmem:[#allocation2 + $0xb0] sm:$0xff] %vm513, 0.0
        %537 = vst.msk [vmem:[#allocation2 + $0xb8] sm:$0xff] %vm513, 0.0
        %538 = vst.msk [vmem:[#allocation2 + $0xc0] sm:$0xff] %vm513, 0.0
        %539 = vst.msk [vmem:[#allocation2 + $0xc8] sm:$0xff] %vm513, 0.0
        %540 = vst.msk [vmem:[#allocation2 + $0xd0] sm:$0xff] %vm513, 0.0
        %541 = vst.msk [vmem:[#allocation2 + $0xd8] sm:$0xff] %vm513, 0.0
        %542 = vst.msk [vmem:[#allocation2 + $0xe0] sm:$0xff] %vm513, 0.0
        %543 = vst.msk [vmem:[#allocation2 + $0xe8] sm:$0xff] %vm513, 0.0
        %544 = vst.msk [vmem:[#allocation2 + $0xf0] sm:$0xff] %vm513, 0.0
        %545 = vst.msk [vmem:[#allocation2 + $0xf8] sm:$0xff] %vm513, 0.0
        %546 = vst.msk [vmem:[#allocation2 + $0x100] sm:$0xff] %vm513, 0.0
        %547 = vst.msk [vmem:[#allocation2 + $0x108] sm:$0xff] %vm513, 0.0
        %548 = vst.msk [vmem:[#allocation2 + $0x110] sm:$0xff] %vm513, 0.0
        %549 = vst.msk [vmem:[#allocation2 + $0x118] sm:$0xff] %vm513, 0.0
        %550 = vst.msk [vmem:[#allocation2 + $0x120] sm:$0xff] %vm513, 0.0
        %551 = vst.msk [vmem:[#allocation2 + $0x128] sm:$0xff] %vm513, 0.0
        %552 = vst.msk [vmem:[#allocation2 + $0x130] sm:$0xff] %vm513, 0.0
        %553 = vst.msk [vmem:[#allocation2 + $0x138] sm:$0xff] %vm513, 0.0
        %554 = vst.msk [vmem:[#allocation2 + $0x140] sm:$0xff] %vm513, 0.0
        %555 = vst.msk [vmem:[#allocation2 + $0x148] sm:$0xff] %vm513, 0.0
        %556 = vst.msk [vmem:[#allocation2 + $0x150] sm:$0xff] %vm513, 0.0
        %557 = vst.msk [vmem:[#allocation2 + $0x158] sm:$0xff] %vm513, 0.0
        %558 = vst.msk [vmem:[#allocation2 + $0x160] sm:$0xff] %vm513, 0.0
        %559 = vst.msk [vmem:[#allocation2 + $0x168] sm:$0xff] %vm513, 0.0
        %560 = vst.msk [vmem:[#allocation2 + $0x170] sm:$0xff] %vm513, 0.0
        %561 = vst.msk [vmem:[#allocation2 + $0x178] sm:$0xff] %vm513, 0.0
        %562 = vst.msk [vmem:[#allocation2 + $0x180] sm:$0xff] %vm513, 0.0
        %563 = vst.msk [vmem:[#allocation2 + $0x188] sm:$0xff] %vm513, 0.0
        %564 = vst.msk [vmem:[#allocation2 + $0x190] sm:$0xff] %vm513, 0.0
        %565 = vst.msk [vmem:[#allocation2 + $0x198] sm:$0xff] %vm513, 0.0
        %566 = vst.msk [vmem:[#allocation2 + $0x1a0] sm:$0xff] %vm513, 0.0
        %567 = vst.msk [vmem:[#allocation2 + $0x1a8] sm:$0xff] %vm513, 0.0
        %568 = vst.msk [vmem:[#allocation2 + $0x1b0] sm:$0xff] %vm513, 0.0
        %569 = vst.msk [vmem:[#allocation2 + $0x1b8] sm:$0xff] %vm513, 0.0
        %570 = vst.msk [vmem:[#allocation2 + $0x1c0] sm:$0xff] %vm513, 0.0
        %571 = vst.msk [vmem:[#allocation2 + $0x1c8] sm:$0xff] %vm513, 0.0
        %572 = vst.msk [vmem:[#allocation2 + $0x1d0] sm:$0xff] %vm513, 0.0
        %573 = vst.msk [vmem:[#allocation2 + $0x1d8] sm:$0xff] %vm513, 0.0
        %574 = vst.msk [vmem:[#allocation2 + $0x1e0] sm:$0xff] %vm513, 0.0
        %575 = vst.msk [vmem:[#allocation2 + $0x1e8] sm:$0xff] %vm513, 0.0
        %576 = vst.msk [vmem:[#allocation2 + $0x1f0] sm:$0xff] %vm513, 0.0
        %577 = vst.msk [vmem:[#allocation2 + $0x1f8] sm:$0xff] %vm513, 0.0
        %578 = vst.msk [vmem:[#allocation2 + $0x200] sm:$0xff] %vm513, 0.0
        %579 = vst.msk [vmem:[#allocation2 + $0x208] sm:$0xff] %vm513, 0.0
        %580 = vst.msk [vmem:[#allocation2 + $0x210] sm:$0xff] %vm513, 0.0
        %581 = vst.msk [vmem:[#allocation2 + $0x218] sm:$0xff] %vm513, 0.0
        %582 = vst.msk [vmem:[#allocation2 + $0x220] sm:$0xff] %vm513, 0.0
        %583 = vst.msk [vmem:[#allocation2 + $0x228] sm:$0xff] %vm513, 0.0
        %584 = vst.msk [vmem:[#allocation2 + $0x230] sm:$0xff] %vm513, 0.0
        %585 = vst.msk [vmem:[#allocation2 + $0x238] sm:$0xff] %vm513, 0.0
        %s586 = scalar_lea.vmem [#allocation2], 32
        %587 = vst.msk [vmem:[%s586 + $0x8] sm:$0xff] %vm513, %v481
        %588 = vst.msk [vmem:[%s586 + $0x10] sm:$0xff] %vm513, %v482
        %589 = vst.msk [vmem:[%s586 + $0x28] sm:$0xff] %vm513, %v483
        %590 = vst.msk [vmem:[%s586 + $0x30] sm:$0xff] %vm513, %v484
        %591 = vst.msk [vmem:[%s586 + $0x48] sm:$0xff] %vm513, %v485
        %592 = vst.msk [vmem:[%s586 + $0x50] sm:$0xff] %vm513, %v486
        %593 = vst.msk [vmem:[%s586 + $0x68] sm:$0xff] %vm513, %v487
        %594 = vst.msk [vmem:[%s586 + $0x70] sm:$0xff] %vm513, %v488
        %595 = vst.msk [vmem:[%s586 + $0x88] sm:$0xff] %vm513, %v489
        %596 = vst.msk [vmem:[%s586 + $0x90] sm:$0xff] %vm513, %v490
        %597 = vst.msk [vmem:[%s586 + $0xa8] sm:$0xff] %vm513, %v491
        %598 = vst.msk [vmem:[%s586 + $0xb0] sm:$0xff] %vm513, %v492
        %599 = vst.msk [vmem:[%s586 + $0xc8] sm:$0xff] %vm513, %v493
        %600 = vst.msk [vmem:[%s586 + $0xd0] sm:$0xff] %vm513, %v494
        %601 = vst.msk [vmem:[%s586 + $0xe8] sm:$0xff] %vm513, %v495
        %602 = vst.msk [vmem:[%s586 + $0xf0] sm:$0xff] %vm513, %v496
        %603 = vst.msk [vmem:[%s586 + $0x108] sm:$0xff] %vm513, %v497
        %604 = vst.msk [vmem:[%s586 + $0x110] sm:$0xff] %vm513, %v498
        %605 = vst.msk [vmem:[%s586 + $0x128] sm:$0xff] %vm513, %v499
        %606 = vst.msk [vmem:[%s586 + $0x130] sm:$0xff] %vm513, %v500
        %607 = vst.msk [vmem:[%s586 + $0x148] sm:$0xff] %vm513, %v501
        %608 = vst.msk [vmem:[%s586 + $0x150] sm:$0xff] %vm513, %v502
        %609 = vst.msk [vmem:[%s586 + $0x168] sm:$0xff] %vm513, %v503
        %610 = vst.msk [vmem:[%s586 + $0x170] sm:$0xff] %vm513, %v504
        %611 = vst.msk [vmem:[%s586 + $0x188] sm:$0xff] %vm513, %v505
        %612 = vst.msk [vmem:[%s586 + $0x190] sm:$0xff] %vm513, %v506
        %613 = vst.msk [vmem:[%s586 + $0x1a8] sm:$0xff] %vm513, %v507
        %614 = vst.msk [vmem:[%s586 + $0x1b0] sm:$0xff] %vm513, %v508
        %615 = vst.msk [vmem:[%s586 + $0x1c8] sm:$0xff] %vm513, %v509
        %616 = vst.msk [vmem:[%s586 + $0x1d0] sm:$0xff] %vm513, %v510
        %617 = vst.msk [vmem:[%s586 + $0x1e8] sm:$0xff] %vm513, %v511
        %618 = vst.msk [vmem:[%s586 + $0x1f0] sm:$0xff] %vm513, %v512
        %v619 = vld [vmem:[#allocation2 + $0x7] sm:$0xff]
        %v620 = vld [vmem:[#allocation2 + $0xf] sm:$0xff]
        %v621 = vld [vmem:[#allocation2 + $0x27] sm:$0xff]
        %v622 = vld [vmem:[#allocation2 + $0x2f] sm:$0xff]
        %v623 = vld [vmem:[#allocation2 + $0x47] sm:$0xff]
        %v624 = vld [vmem:[#allocation2 + $0x4f] sm:$0xff]
        %v625 = vld [vmem:[#allocation2 + $0x67] sm:$0xff]
        %v626 = vld [vmem:[#allocation2 + $0x6f] sm:$0xff]
        %v627 = vld [vmem:[#allocation2 + $0x87] sm:$0xff]
        %v628 = vld [vmem:[#allocation2 + $0x8f] sm:$0xff]
        %v629 = vld [vmem:[#allocation2 + $0xa7] sm:$0xff]
        %v630 = vld [vmem:[#allocation2 + $0xaf] sm:$0xff]
        %v631 = vld [vmem:[#allocation2 + $0xc7] sm:$0xff]
        %v632 = vld [vmem:[#allocation2 + $0xcf] sm:$0xff]
        %v633 = vld [vmem:[#allocation2 + $0xe7] sm:$0xff]
        %v634 = vld [vmem:[#allocation2 + $0xef] sm:$0xff]
        %v635 = vld [vmem:[#allocation2 + $0x107] sm:$0xff]
        %v636 = vld [vmem:[#allocation2 + $0x10f] sm:$0xff]
        %v637 = vld [vmem:[#allocation2 + $0x127] sm:$0xff]
        %v638 = vld [vmem:[#allocation2 + $0x12f] sm:$0xff]
        %v639 = vld [vmem:[#allocation2 + $0x147] sm:$0xff]
        %v640 = vld [vmem:[#allocation2 + $0x14f] sm:$0xff]
        %v641 = vld [vmem:[#allocation2 + $0x167] sm:$0xff]
        %v642 = vld [vmem:[#allocation2 + $0x16f] sm:$0xff]
        %v643 = vld [vmem:[#allocation2 + $0x187] sm:$0xff]
        %v644 = vld [vmem:[#allocation2 + $0x18f] sm:$0xff]
        %v645 = vld [vmem:[#allocation2 + $0x1a7] sm:$0xff]
        %v646 = vld [vmem:[#allocation2 + $0x1af] sm:$0xff]
        %v647 = vld [vmem:[#allocation2 + $0x1c7] sm:$0xff]
        %v648 = vld [vmem:[#allocation2 + $0x1cf] sm:$0xff]
        %v649 = vld [vmem:[#allocation2 + $0x1e7] sm:$0xff]
        %v650 = vld [vmem:[#allocation2 + $0x1ef] sm:$0xff]
        %v651 = vld [vmem:[#allocation6] sm:$0xff]
        %v652 = vld [vmem:[#allocation6 + $0x8] sm:$0xff]
        %v653 = vld [vmem:[#allocation6 + $0x10] sm:$0xff]
        %v654 = vld [vmem:[#allocation6 + $0x18] sm:$0xff]
        %v655 = vld [vmem:[#allocation2 + $0x8] sm:$0xff]
        %v656 = vld [vmem:[#allocation2 + $0x10] sm:$0xff]
        %v657 = vld [vmem:[#allocation2 + $0x28] sm:$0xff]
        %v658 = vld [vmem:[#allocation2 + $0x30] sm:$0xff]
        %v659 = vld [vmem:[#allocation2 + $0x48] sm:$0xff]
        %v660 = vld [vmem:[#allocation2 + $0x50] sm:$0xff]
        %v661 = vld [vmem:[#allocation2 + $0x68] sm:$0xff]
        %v662 = vld [vmem:[#allocation2 + $0x70] sm:$0xff]
        %v663 = vld [vmem:[#allocation2 + $0x88] sm:$0xff]
        %v664 = vld [vmem:[#allocation2 + $0x90] sm:$0xff]
        %v665 = vld [vmem:[#allocation2 + $0xa8] sm:$0xff]
        %v666 = vld [vmem:[#allocation2 + $0xb0] sm:$0xff]
        %v667 = vld [vmem:[#allocation2 + $0xc8] sm:$0xff]
        %v668 = vld [vmem:[#allocation2 + $0xd0] sm:$0xff]
        %v669 = vld [vmem:[#allocation2 + $0xe8] sm:$0xff]
        %v670 = vld [vmem:[#allocation2 + $0xf0] sm:$0xff]
        %v671 = vld [vmem:[#allocation2 + $0x108] sm:$0xff]
        %v672 = vld [vmem:[#allocation2 + $0x110] sm:$0xff]
        %v673 = vld [vmem:[#allocation2 + $0x128] sm:$0xff]
        %v674 = vld [vmem:[#allocation2 + $0x130] sm:$0xff]
        %v675 = vld [vmem:[#allocation2 + $0x148] sm:$0xff]
        %v676 = vld [vmem:[#allocation2 + $0x150] sm:$0xff]
        %v677 = vld [vmem:[#allocation2 + $0x168] sm:$0xff]
        %v678 = vld [vmem:[#allocation2 + $0x170] sm:$0xff]
        %v679 = vld [vmem:[#allocation2 + $0x188] sm:$0xff]
        %v680 = vld [vmem:[#allocation2 + $0x190] sm:$0xff]
        %v681 = vld [vmem:[#allocation2 + $0x1a8] sm:$0xff]
        %v682 = vld [vmem:[#allocation2 + $0x1b0] sm:$0xff]
        %v683 = vld [vmem:[#allocation2 + $0x1c8] sm:$0xff]
        %v684 = vld [vmem:[#allocation2 + $0x1d0] sm:$0xff]
        %v685 = vld [vmem:[#allocation2 + $0x1e8] sm:$0xff]
        %v686 = vld [vmem:[#allocation2 + $0x1f0] sm:$0xff]
        %s687 = scalar_lea.vmem [#allocation6], 32
        %v688 = vld [vmem:[%s687] sm:$0xff]
        %v689 = vld [vmem:[%s687 + $0x8] sm:$0xff]
        %v690 = vld [vmem:[%s687 + $0x10] sm:$0xff]
        %v691 = vld [vmem:[%s687 + $0x18] sm:$0xff]
        %v693 = vsel %vm513, %v655, 0
        %v696 = vsel %vm513, %v656, 0
        %v699 = vsel %vm513, %v657, 0
        %v702 = vsel %vm513, %v658, 0
        %v705 = vsel %vm513, %v659, 0
        %v708 = vsel %vm513, %v660, 0
        %v711 = vsel %vm513, %v661, 0
        %v714 = vsel %vm513, %v662, 0
        %v717 = vsel %vm513, %v663, 0
        %v720 = vsel %vm513, %v664, 0
        %v723 = vsel %vm513, %v665, 0
        %v726 = vsel %vm513, %v666, 0
        %v729 = vsel %vm513, %v667, 0
        %v732 = vsel %vm513, %v668, 0
        %v735 = vsel %vm513, %v669, 0
        %v738 = vsel %vm513, %v670, 0
        %v741 = vsel %vm513, %v671, 0
        %v744 = vsel %vm513, %v672, 0
        %v747 = vsel %vm513, %v673, 0
        %v750 = vsel %vm513, %v674, 0
        %v753 = vsel %vm513, %v675, 0
        %v756 = vsel %vm513, %v676, 0
        %v759 = vsel %vm513, %v677, 0
        %v762 = vsel %vm513, %v678, 0
        %v765 = vsel %vm513, %v679, 0
        %v768 = vsel %vm513, %v680, 0
        %v771 = vsel %vm513, %v681, 0
        %v774 = vsel %vm513, %v682, 0
        %v777 = vsel %vm513, %v683, 0
        %v780 = vsel %vm513, %v684, 0
        %v783 = vsel %vm513, %v685, 0
        %v786 = vsel %vm513, %v686, 0
        %788 = vmatpush.msra.mxu0 0.0
        %789 = vmatpush.msra.mxu0 0.0
        %790 = vmatpush.msra.mxu0 0.0
        %791 = vmatpush.msra.mxu0 0.0
        %792 = vmatpush.msra.mxu0 0.0
        %793 = vmatpush.msra.mxu0 0.0
        %794 = vmatpush.msra.mxu0 0.0
        %795 = vmatpush.msra.mxu0 0.0
        %796 = vmatpush.msra.mxu0 0.0
        %797 = vmatpush.msra.mxu0 0.0
        %798 = vmatpush.msra.mxu0 0.0
        %799 = vmatpush.msra.mxu0 0.0
        %800 = vmatpush.msra.mxu0 %v691
        %801 = vmatpush.msra.mxu0 %v690
        %802 = vmatpush.msra.mxu0 %v689
        %803 = vmatpush.msra.mxu0 %v688
        %804 = vmatmul.f32.gmra.mxu0 %v693
        %v805 = vpop.f32.mrf.mxu0
        %v806 = vadd.f32 0.0, %v805
        %807 = vmatmul.f32.gmra.mxu0 %v696
        %v808 = vpop.f32.mrf.mxu0
        %v809 = vadd.f32 0.0, %v808
        %810 = vmatmul.f32.gmra.mxu0 %v699
        %v811 = vpop.f32.mrf.mxu0
        %v812 = vadd.f32 0.0, %v811
        %813 = vmatmul.f32.gmra.mxu0 %v702
        %v814 = vpop.f32.mrf.mxu0
        %v815 = vadd.f32 0.0, %v814
        %816 = vmatmul.f32.gmra.mxu0 %v705
        %v817 = vpop.f32.mrf.mxu0
        %v818 = vadd.f32 0.0, %v817
        %819 = vmatmul.f32.gmra.mxu0 %v708
        %v820 = vpop.f32.mrf.mxu0
        %v821 = vadd.f32 0.0, %v820
        %822 = vmatmul.f32.gmra.mxu0 %v711
        %v823 = vpop.f32.mrf.mxu0
        %v824 = vadd.f32 0.0, %v823
        %825 = vmatmul.f32.gmra.mxu0 %v714
        %v826 = vpop.f32.mrf.mxu0
        %v827 = vadd.f32 0.0, %v826
        %828 = vmatmul.f32.gmra.mxu0 %v717
        %v829 = vpop.f32.mrf.mxu0
        %v830 = vadd.f32 0.0, %v829
        %831 = vmatmul.f32.gmra.mxu0 %v720
        %v832 = vpop.f32.mrf.mxu0
        %v833 = vadd.f32 0.0, %v832
        %834 = vmatmul.f32.gmra.mxu0 %v723
        %v835 = vpop.f32.mrf.mxu0
        %v836 = vadd.f32 0.0, %v835
        %837 = vmatmul.f32.gmra.mxu0 %v726
        %v838 = vpop.f32.mrf.mxu0
        %v839 = vadd.f32 0.0, %v838
        %840 = vmatmul.f32.gmra.mxu0 %v729
        %v841 = vpop.f32.mrf.mxu0
        %v842 = vadd.f32 0.0, %v841
        %843 = vmatmul.f32.gmra.mxu0 %v732
        %v844 = vpop.f32.mrf.mxu0
        %v845 = vadd.f32 0.0, %v844
        %846 = vmatmul.f32.gmra.mxu0 %v735
        %v847 = vpop.f32.mrf.mxu0
        %v848 = vadd.f32 0.0, %v847
        %849 = vmatmul.f32.gmra.mxu0 %v738
        %v850 = vpop.f32.mrf.mxu0
        %v851 = vadd.f32 0.0, %v850
        %852 = vmatmul.f32.gmra.mxu0 %v741
        %v853 = vpop.f32.mrf.mxu0
        %v854 = vadd.f32 0.0, %v853
        %855 = vmatmul.f32.gmra.mxu0 %v744
        %v856 = vpop.f32.mrf.mxu0
        %v857 = vadd.f32 0.0, %v856
        %858 = vmatmul.f32.gmra.mxu0 %v747
        %v859 = vpop.f32.mrf.mxu0
        %v860 = vadd.f32 0.0, %v859
        %861 = vmatmul.f32.gmra.mxu0 %v750
        %v862 = vpop.f32.mrf.mxu0
        %v863 = vadd.f32 0.0, %v862
        %864 = vmatmul.f32.gmra.mxu0 %v753
        %v865 = vpop.f32.mrf.mxu0
        %v866 = vadd.f32 0.0, %v865
        %867 = vmatmul.f32.gmra.mxu0 %v756
        %v868 = vpop.f32.mrf.mxu0
        %v869 = vadd.f32 0.0, %v868
        %870 = vmatmul.f32.gmra.mxu0 %v759
        %v871 = vpop.f32.mrf.mxu0
        %v872 = vadd.f32 0.0, %v871
        %873 = vmatmul.f32.gmra.mxu0 %v762
        %v874 = vpop.f32.mrf.mxu0
        %v875 = vadd.f32 0.0, %v874
        %876 = vmatmul.f32.gmra.mxu0 %v765
        %v877 = vpop.f32.mrf.mxu0
        %v878 = vadd.f32 0.0, %v877
        %879 = vmatmul.f32.gmra.mxu0 %v768
        %v880 = vpop.f32.mrf.mxu0
        %v881 = vadd.f32 0.0, %v880
        %882 = vmatmul.f32.gmra.mxu0 %v771
        %v883 = vpop.f32.mrf.mxu0
        %v884 = vadd.f32 0.0, %v883
        %885 = vmatmul.f32.gmra.mxu0 %v774
        %v886 = vpop.f32.mrf.mxu0
        %v887 = vadd.f32 0.0, %v886
        %888 = vmatmul.f32.gmra.mxu0 %v777
        %v889 = vpop.f32.mrf.mxu0
        %v890 = vadd.f32 0.0, %v889
        %891 = vmatmul.f32.gmra.mxu0 %v780
        %v892 = vpop.f32.mrf.mxu0
        %v893 = vadd.f32 0.0, %v892
        %894 = vmatmul.f32.gmra.mxu0 %v783
        %v895 = vpop.f32.mrf.mxu0
        %v896 = vadd.f32 0.0, %v895
        %897 = vmatmul.f32.gmra.mxu0 %v786
        %v898 = vpop.f32.mrf.mxu0
        %v899 = vadd.f32 0.0, %v898
        %900 = vdwg.mxu0
        %v902 = vsel %vm513, %v619, 0
        %v905 = vsel %vm513, %v620, 0
        %v908 = vsel %vm513, %v621, 0
        %v911 = vsel %vm513, %v622, 0
        %v914 = vsel %vm513, %v623, 0
        %v917 = vsel %vm513, %v624, 0
        %v920 = vsel %vm513, %v625, 0
        %v923 = vsel %vm513, %v626, 0
        %v926 = vsel %vm513, %v627, 0
        %v929 = vsel %vm513, %v628, 0
        %v932 = vsel %vm513, %v629, 0
        %v935 = vsel %vm513, %v630, 0
        %v938 = vsel %vm513, %v631, 0
        %v941 = vsel %vm513, %v632, 0
        %v944 = vsel %vm513, %v633, 0
        %v947 = vsel %vm513, %v634, 0
        %v950 = vsel %vm513, %v635, 0
        %v953 = vsel %vm513, %v636, 0
        %v956 = vsel %vm513, %v637, 0
        %v959 = vsel %vm513, %v638, 0
        %v962 = vsel %vm513, %v639, 0
        %v965 = vsel %vm513, %v640, 0
        %v968 = vsel %vm513, %v641, 0
        %v971 = vsel %vm513, %v642, 0
        %v974 = vsel %vm513, %v643, 0
        %v977 = vsel %vm513, %v644, 0
        %v980 = vsel %vm513, %v645, 0
        %v983 = vsel %vm513, %v646, 0
        %v986 = vsel %vm513, %v647, 0
        %v989 = vsel %vm513, %v648, 0
        %v992 = vsel %vm513, %v649, 0
        %v995 = vsel %vm513, %v650, 0
        %997 = vmatpush.msra.mxu0 0.0
        %998 = vmatpush.msra.mxu0 0.0
        %999 = vmatpush.msra.mxu0 0.0
        %1000 = vmatpush.msra.mxu0 0.0
        %1001 = vmatpush.msra.mxu0 0.0
        %1002 = vmatpush.msra.mxu0 0.0
        %1003 = vmatpush.msra.mxu0 0.0
        %1004 = vmatpush.msra.mxu0 0.0
        %1005 = vmatpush.msra.mxu0 0.0
        %1006 = vmatpush.msra.mxu0 0.0
        %1007 = vmatpush.msra.mxu0 0.0
        %1008 = vmatpush.msra.mxu0 0.0
        %1009 = vmatpush.msra.mxu0 %v654
        %1010 = vmatpush.msra.mxu0 %v653
        %1011 = vmatpush.msra.mxu0 %v652
        %1012 = vmatpush.msra.mxu0 %v651
        %1013 = vmatmul.f32.gmra.mxu0 %v902
        %v1014 = vpop.f32.mrf.mxu0
        %v1015 = vadd.f32 %v806, %v1014
        %1016 = vmatmul.f32.gmra.mxu0 %v905
        %v1017 = vpop.f32.mrf.mxu0
        %v1018 = vadd.f32 %v809, %v1017
        %1019 = vmatmul.f32.gmra.mxu0 %v908
        %v1020 = vpop.f32.mrf.mxu0
        %v1021 = vadd.f32 %v812, %v1020
        %1022 = vmatmul.f32.gmra.mxu0 %v911
        %v1023 = vpop.f32.mrf.mxu0
        %v1024 = vadd.f32 %v815, %v1023
        %1025 = vmatmul.f32.gmra.mxu0 %v914
        %v1026 = vpop.f32.mrf.mxu0
        %v1027 = vadd.f32 %v818, %v1026
        %1028 = vmatmul.f32.gmra.mxu0 %v917
        %v1029 = vpop.f32.mrf.mxu0
        %v1030 = vadd.f32 %v821, %v1029
        %1031 = vmatmul.f32.gmra.mxu0 %v920
        %v1032 = vpop.f32.mrf.mxu0
        %v1033 = vadd.f32 %v824, %v1032
        %1034 = vmatmul.f32.gmra.mxu0 %v923
        %v1035 = vpop.f32.mrf.mxu0
        %v1036 = vadd.f32 %v827, %v1035
        %1037 = vmatmul.f32.gmra.mxu0 %v926
        %v1038 = vpop.f32.mrf.mxu0
        %v1039 = vadd.f32 %v830, %v1038
        %1040 = vmatmul.f32.gmra.mxu0 %v929
        %v1041 = vpop.f32.mrf.mxu0
        %v1042 = vadd.f32 %v833, %v1041
        %1043 = vmatmul.f32.gmra.mxu0 %v932
        %v1044 = vpop.f32.mrf.mxu0
        %v1045 = vadd.f32 %v836, %v1044
        %1046 = vmatmul.f32.gmra.mxu0 %v935
        %v1047 = vpop.f32.mrf.mxu0
        %v1048 = vadd.f32 %v839, %v1047
        %1049 = vmatmul.f32.gmra.mxu0 %v938
        %v1050 = vpop.f32.mrf.mxu0
        %v1051 = vadd.f32 %v842, %v1050
        %1052 = vmatmul.f32.gmra.mxu0 %v941
        %v1053 = vpop.f32.mrf.mxu0
        %v1054 = vadd.f32 %v845, %v1053
        %1055 = vmatmul.f32.gmra.mxu0 %v944
        %v1056 = vpop.f32.mrf.mxu0
        %v1057 = vadd.f32 %v848, %v1056
        %1058 = vmatmul.f32.gmra.mxu0 %v947
        %v1059 = vpop.f32.mrf.mxu0
        %v1060 = vadd.f32 %v851, %v1059
        %1061 = vmatmul.f32.gmra.mxu0 %v950
        %v1062 = vpop.f32.mrf.mxu0
        %v1063 = vadd.f32 %v854, %v1062
        %1064 = vmatmul.f32.gmra.mxu0 %v953
        %v1065 = vpop.f32.mrf.mxu0
        %v1066 = vadd.f32 %v857, %v1065
        %1067 = vmatmul.f32.gmra.mxu0 %v956
        %v1068 = vpop.f32.mrf.mxu0
        %v1069 = vadd.f32 %v860, %v1068
        %1070 = vmatmul.f32.gmra.mxu0 %v959
        %v1071 = vpop.f32.mrf.mxu0
        %v1072 = vadd.f32 %v863, %v1071
        %1073 = vmatmul.f32.gmra.mxu0 %v962
        %v1074 = vpop.f32.mrf.mxu0
        %v1075 = vadd.f32 %v866, %v1074
        %1076 = vmatmul.f32.gmra.mxu0 %v965
        %v1077 = vpop.f32.mrf.mxu0
        %v1078 = vadd.f32 %v869, %v1077
        %1079 = vmatmul.f32.gmra.mxu0 %v968
        %v1080 = vpop.f32.mrf.mxu0
        %v1081 = vadd.f32 %v872, %v1080
        %1082 = vmatmul.f32.gmra.mxu0 %v971
        %v1083 = vpop.f32.mrf.mxu0
        %v1084 = vadd.f32 %v875, %v1083
        %1085 = vmatmul.f32.gmra.mxu0 %v974
        %v1086 = vpop.f32.mrf.mxu0
        %v1087 = vadd.f32 %v878, %v1086
        %1088 = vmatmul.f32.gmra.mxu0 %v977
        %v1089 = vpop.f32.mrf.mxu0
        %v1090 = vadd.f32 %v881, %v1089
        %1091 = vmatmul.f32.gmra.mxu0 %v980
        %v1092 = vpop.f32.mrf.mxu0
        %v1093 = vadd.f32 %v884, %v1092
        %1094 = vmatmul.f32.gmra.mxu0 %v983
        %v1095 = vpop.f32.mrf.mxu0
        %v1096 = vadd.f32 %v887, %v1095
        %1097 = vmatmul.f32.gmra.mxu0 %v986
        %v1098 = vpop.f32.mrf.mxu0
        %v1099 = vadd.f32 %v890, %v1098
        %1100 = vmatmul.f32.gmra.mxu0 %v989
        %v1101 = vpop.f32.mrf.mxu0
        %v1102 = vadd.f32 %v893, %v1101
        %1103 = vmatmul.f32.gmra.mxu0 %v992
        %v1104 = vpop.f32.mrf.mxu0
        %v1105 = vadd.f32 %v896, %v1104
        %1106 = vmatmul.f32.gmra.mxu0 %v995
        %v1107 = vpop.f32.mrf.mxu0
        %v1108 = vadd.f32 %v899, %v1107
        %1109 = vdwg.mxu0
        %v1110 = vld [vmem:[#allocation2 + $0x9] sm:$0xff]
        %v1111 = vld [vmem:[#allocation2 + $0x11] sm:$0xff]
        %v1112 = vld [vmem:[#allocation2 + $0x29] sm:$0xff]
        %v1113 = vld [vmem:[#allocation2 + $0x31] sm:$0xff]
        %v1114 = vld [vmem:[#allocation2 + $0x49] sm:$0xff]
        %v1115 = vld [vmem:[#allocation2 + $0x51] sm:$0xff]
        %v1116 = vld [vmem:[#allocation2 + $0x69] sm:$0xff]
        %v1117 = vld [vmem:[#allocation2 + $0x71] sm:$0xff]
        %v1118 = vld [vmem:[#allocation2 + $0x89] sm:$0xff]
        %v1119 = vld [vmem:[#allocation2 + $0x91] sm:$0xff]
        %v1120 = vld [vmem:[#allocation2 + $0xa9] sm:$0xff]
        %v1121 = vld [vmem:[#allocation2 + $0xb1] sm:$0xff]
        %v1122 = vld [vmem:[#allocation2 + $0xc9] sm:$0xff]
        %v1123 = vld [vmem:[#allocation2 + $0xd1] sm:$0xff]
        %v1124 = vld [vmem:[#allocation2 + $0xe9] sm:$0xff]
        %v1125 = vld [vmem:[#allocation2 + $0xf1] sm:$0xff]
        %v1126 = vld [vmem:[#allocation2 + $0x109] sm:$0xff]
        %v1127 = vld [vmem:[#allocation2 + $0x111] sm:$0xff]
        %v1128 = vld [vmem:[#allocation2 + $0x129] sm:$0xff]
        %v1129 = vld [vmem:[#allocation2 + $0x131] sm:$0xff]
        %v1130 = vld [vmem:[#allocation2 + $0x149] sm:$0xff]
        %v1131 = vld [vmem:[#allocation2 + $0x151] sm:$0xff]
        %v1132 = vld [vmem:[#allocation2 + $0x169] sm:$0xff]
        %v1133 = vld [vmem:[#allocation2 + $0x171] sm:$0xff]
        %v1134 = vld [vmem:[#allocation2 + $0x189] sm:$0xff]
        %v1135 = vld [vmem:[#allocation2 + $0x191] sm:$0xff]
        %v1136 = vld [vmem:[#allocation2 + $0x1a9] sm:$0xff]
        %v1137 = vld [vmem:[#allocation2 + $0x1b1] sm:$0xff]
        %v1138 = vld [vmem:[#allocation2 + $0x1c9] sm:$0xff]
        %v1139 = vld [vmem:[#allocation2 + $0x1d1] sm:$0xff]
        %v1140 = vld [vmem:[#allocation2 + $0x1e9] sm:$0xff]
        %v1141 = vld [vmem:[#allocation2 + $0x1f1] sm:$0xff]
        %s1142 = scalar_lea.vmem [#allocation6], 64
        %v1143 = vld [vmem:[%s1142] sm:$0xff]
        %v1144 = vld [vmem:[%s1142 + $0x8] sm:$0xff]
        %v1145 = vld [vmem:[%s1142 + $0x10] sm:$0xff]
        %v1146 = vld [vmem:[%s1142 + $0x18] sm:$0xff]
        %v1148 = vsel %vm513, %v1110, 0
        %v1151 = vsel %vm513, %v1111, 0
        %v1154 = vsel %vm513, %v1112, 0
        %v1157 = vsel %vm513, %v1113, 0
        %v1160 = vsel %vm513, %v1114, 0
        %v1163 = vsel %vm513, %v1115, 0
        %v1166 = vsel %vm513, %v1116, 0
        %v1169 = vsel %vm513, %v1117, 0
        %v1172 = vsel %vm513, %v1118, 0
        %v1175 = vsel %vm513, %v1119, 0
        %v1178 = vsel %vm513, %v1120, 0
        %v1181 = vsel %vm513, %v1121, 0
        %v1184 = vsel %vm513, %v1122, 0
        %v1187 = vsel %vm513, %v1123, 0
        %v1190 = vsel %vm513, %v1124, 0
        %v1193 = vsel %vm513, %v1125, 0
        %v1196 = vsel %vm513, %v1126, 0
        %v1199 = vsel %vm513, %v1127, 0
        %v1202 = vsel %vm513, %v1128, 0
        %v1205 = vsel %vm513, %v1129, 0
        %v1208 = vsel %vm513, %v1130, 0
        %v1211 = vsel %vm513, %v1131, 0
        %v1214 = vsel %vm513, %v1132, 0
        %v1217 = vsel %vm513, %v1133, 0
        %v1220 = vsel %vm513, %v1134, 0
        %v1223 = vsel %vm513, %v1135, 0
        %v1226 = vsel %vm513, %v1136, 0
        %v1229 = vsel %vm513, %v1137, 0
        %v1232 = vsel %vm513, %v1138, 0
        %v1235 = vsel %vm513, %v1139, 0
        %v1238 = vsel %vm513, %v1140, 0
        %v1241 = vsel %vm513, %v1141, 0
        %1243 = vmatpush.msra.mxu0 0.0
        %1244 = vmatpush.msra.mxu0 0.0
        %1245 = vmatpush.msra.mxu0 0.0
        %1246 = vmatpush.msra.mxu0 0.0
        %1247 = vmatpush.msra.mxu0 0.0
        %1248 = vmatpush.msra.mxu0 0.0
        %1249 = vmatpush.msra.mxu0 0.0
        %1250 = vmatpush.msra.mxu0 0.0
        %1251 = vmatpush.msra.mxu0 0.0
        %1252 = vmatpush.msra.mxu0 0.0
        %1253 = vmatpush.msra.mxu0 0.0
        %1254 = vmatpush.msra.mxu0 0.0
        %1255 = vmatpush.msra.mxu0 %v1146
        %1256 = vmatpush.msra.mxu0 %v1145
        %1257 = vmatpush.msra.mxu0 %v1144
        %1258 = vmatpush.msra.mxu0 %v1143
        %1259 = vmatmul.f32.gmra.mxu0 %v1148
        %v1260 = vpop.f32.mrf.mxu0
        %v1261 = vadd.f32 0.0, %v1260
        %1262 = vmatmul.f32.gmra.mxu0 %v1151
        %v1263 = vpop.f32.mrf.mxu0
        %v1264 = vadd.f32 0.0, %v1263
        %1265 = vmatmul.f32.gmra.mxu0 %v1154
        %v1266 = vpop.f32.mrf.mxu0
        %v1267 = vadd.f32 0.0, %v1266
        %1268 = vmatmul.f32.gmra.mxu0 %v1157
        %v1269 = vpop.f32.mrf.mxu0
        %v1270 = vadd.f32 0.0, %v1269
        %1271 = vmatmul.f32.gmra.mxu0 %v1160
        %v1272 = vpop.f32.mrf.mxu0
        %v1273 = vadd.f32 0.0, %v1272
        %1274 = vmatmul.f32.gmra.mxu0 %v1163
        %v1275 = vpop.f32.mrf.mxu0
        %v1276 = vadd.f32 0.0, %v1275
        %1277 = vmatmul.f32.gmra.mxu0 %v1166
        %v1278 = vpop.f32.mrf.mxu0
        %v1279 = vadd.f32 0.0, %v1278
        %1280 = vmatmul.f32.gmra.mxu0 %v1169
        %v1281 = vpop.f32.mrf.mxu0
        %v1282 = vadd.f32 0.0, %v1281
        %1283 = vmatmul.f32.gmra.mxu0 %v1172
        %v1284 = vpop.f32.mrf.mxu0
        %v1285 = vadd.f32 0.0, %v1284
        %1286 = vmatmul.f32.gmra.mxu0 %v1175
        %v1287 = vpop.f32.mrf.mxu0
        %v1288 = vadd.f32 0.0, %v1287
        %1289 = vmatmul.f32.gmra.mxu0 %v1178
        %v1290 = vpop.f32.mrf.mxu0
        %v1291 = vadd.f32 0.0, %v1290
        %1292 = vmatmul.f32.gmra.mxu0 %v1181
        %v1293 = vpop.f32.mrf.mxu0
        %v1294 = vadd.f32 0.0, %v1293
        %1295 = vmatmul.f32.gmra.mxu0 %v1184
        %v1296 = vpop.f32.mrf.mxu0
        %v1297 = vadd.f32 0.0, %v1296
        %1298 = vmatmul.f32.gmra.mxu0 %v1187
        %v1299 = vpop.f32.mrf.mxu0
        %v1300 = vadd.f32 0.0, %v1299
        %1301 = vmatmul.f32.gmra.mxu0 %v1190
        %v1302 = vpop.f32.mrf.mxu0
        %v1303 = vadd.f32 0.0, %v1302
        %1304 = vmatmul.f32.gmra.mxu0 %v1193
        %v1305 = vpop.f32.mrf.mxu0
        %v1306 = vadd.f32 0.0, %v1305
        %1307 = vmatmul.f32.gmra.mxu0 %v1196
        %v1308 = vpop.f32.mrf.mxu0
        %v1309 = vadd.f32 0.0, %v1308
        %1310 = vmatmul.f32.gmra.mxu0 %v1199
        %v1311 = vpop.f32.mrf.mxu0
        %v1312 = vadd.f32 0.0, %v1311
        %1313 = vmatmul.f32.gmra.mxu0 %v1202
        %v1314 = vpop.f32.mrf.mxu0
        %v1315 = vadd.f32 0.0, %v1314
        %1316 = vmatmul.f32.gmra.mxu0 %v1205
        %v1317 = vpop.f32.mrf.mxu0
        %v1318 = vadd.f32 0.0, %v1317
        %1319 = vmatmul.f32.gmra.mxu0 %v1208
        %v1320 = vpop.f32.mrf.mxu0
        %v1321 = vadd.f32 0.0, %v1320
        %1322 = vmatmul.f32.gmra.mxu0 %v1211
        %v1323 = vpop.f32.mrf.mxu0
        %v1324 = vadd.f32 0.0, %v1323
        %1325 = vmatmul.f32.gmra.mxu0 %v1214
        %v1326 = vpop.f32.mrf.mxu0
        %v1327 = vadd.f32 0.0, %v1326
        %1328 = vmatmul.f32.gmra.mxu0 %v1217
        %v1329 = vpop.f32.mrf.mxu0
        %v1330 = vadd.f32 0.0, %v1329
        %1331 = vmatmul.f32.gmra.mxu0 %v1220
        %v1332 = vpop.f32.mrf.mxu0
        %v1333 = vadd.f32 0.0, %v1332
        %1334 = vmatmul.f32.gmra.mxu0 %v1223
        %v1335 = vpop.f32.mrf.mxu0
        %v1336 = vadd.f32 0.0, %v1335
        %1337 = vmatmul.f32.gmra.mxu0 %v1226
        %v1338 = vpop.f32.mrf.mxu0
        %v1339 = vadd.f32 0.0, %v1338
        %1340 = vmatmul.f32.gmra.mxu0 %v1229
        %v1341 = vpop.f32.mrf.mxu0
        %v1342 = vadd.f32 0.0, %v1341
        %1343 = vmatmul.f32.gmra.mxu0 %v1232
        %v1344 = vpop.f32.mrf.mxu0
        %v1345 = vadd.f32 0.0, %v1344
        %1346 = vmatmul.f32.gmra.mxu0 %v1235
        %v1347 = vpop.f32.mrf.mxu0
        %v1348 = vadd.f32 0.0, %v1347
        %1349 = vmatmul.f32.gmra.mxu0 %v1238
        %v1350 = vpop.f32.mrf.mxu0
        %v1351 = vadd.f32 0.0, %v1350
        %1352 = vmatmul.f32.gmra.mxu0 %v1241
        %v1353 = vpop.f32.mrf.mxu0
        %v1354 = vadd.f32 0.0, %v1353
        %1355 = vdwg.mxu0
        %v1356 = vadd.f32 %v1015, %v1261
        %v1357 = vadd.f32 %v1018, %v1264
        %v1358 = vadd.f32 %v1021, %v1267
        %v1359 = vadd.f32 %v1024, %v1270
        %v1360 = vadd.f32 %v1027, %v1273
        %v1361 = vadd.f32 %v1030, %v1276
        %v1362 = vadd.f32 %v1033, %v1279
        %v1363 = vadd.f32 %v1036, %v1282
        %v1364 = vadd.f32 %v1039, %v1285
        %v1365 = vadd.f32 %v1042, %v1288
        %v1366 = vadd.f32 %v1045, %v1291
        %v1367 = vadd.f32 %v1048, %v1294
        %v1368 = vadd.f32 %v1051, %v1297
        %v1369 = vadd.f32 %v1054, %v1300
        %v1370 = vadd.f32 %v1057, %v1303
        %v1371 = vadd.f32 %v1060, %v1306
        %v1372 = vadd.f32 %v1063, %v1309
        %v1373 = vadd.f32 %v1066, %v1312
        %v1374 = vadd.f32 %v1069, %v1315
        %v1375 = vadd.f32 %v1072, %v1318
        %v1376 = vadd.f32 %v1075, %v1321
        %v1377 = vadd.f32 %v1078, %v1324
        %v1378 = vadd.f32 %v1081, %v1327
        %v1379 = vadd.f32 %v1084, %v1330
        %v1380 = vadd.f32 %v1087, %v1333
        %v1381 = vadd.f32 %v1090, %v1336
        %v1382 = vadd.f32 %v1093, %v1339
        %v1383 = vadd.f32 %v1096, %v1342
        %v1384 = vadd.f32 %v1099, %v1345
        %v1385 = vadd.f32 %v1102, %v1348
        %v1386 = vadd.f32 %v1105, %v1351
        %v1387 = vadd.f32 %v1108, %v1354
        %v1388 = vld [vmem:[%s586 + $0x7] sm:$0xff]
        %v1389 = vld [vmem:[%s586 + $0xf] sm:$0xff]
        %v1390 = vld [vmem:[%s586 + $0x27] sm:$0xff]
        %v1391 = vld [vmem:[%s586 + $0x2f] sm:$0xff]
        %v1392 = vld [vmem:[%s586 + $0x47] sm:$0xff]
        %v1393 = vld [vmem:[%s586 + $0x4f] sm:$0xff]
        %v1394 = vld [vmem:[%s586 + $0x67] sm:$0xff]
        %v1395 = vld [vmem:[%s586 + $0x6f] sm:$0xff]
        %v1396 = vld [vmem:[%s586 + $0x87] sm:$0xff]
        %v1397 = vld [vmem:[%s586 + $0x8f] sm:$0xff]
        %v1398 = vld [vmem:[%s586 + $0xa7] sm:$0xff]
        %v1399 = vld [vmem:[%s586 + $0xaf] sm:$0xff]
        %v1400 = vld [vmem:[%s586 + $0xc7] sm:$0xff]
        %v1401 = vld [vmem:[%s586 + $0xcf] sm:$0xff]
        %v1402 = vld [vmem:[%s586 + $0xe7] sm:$0xff]
        %v1403 = vld [vmem:[%s586 + $0xef] sm:$0xff]
        %v1404 = vld [vmem:[%s586 + $0x107] sm:$0xff]
        %v1405 = vld [vmem:[%s586 + $0x10f] sm:$0xff]
        %v1406 = vld [vmem:[%s586 + $0x127] sm:$0xff]
        %v1407 = vld [vmem:[%s586 + $0x12f] sm:$0xff]
        %v1408 = vld [vmem:[%s586 + $0x147] sm:$0xff]
        %v1409 = vld [vmem:[%s586 + $0x14f] sm:$0xff]
        %v1410 = vld [vmem:[%s586 + $0x167] sm:$0xff]
        %v1411 = vld [vmem:[%s586 + $0x16f] sm:$0xff]
        %v1412 = vld [vmem:[%s586 + $0x187] sm:$0xff]
        %v1413 = vld [vmem:[%s586 + $0x18f] sm:$0xff]
        %v1414 = vld [vmem:[%s586 + $0x1a7] sm:$0xff]
        %v1415 = vld [vmem:[%s586 + $0x1af] sm:$0xff]
        %v1416 = vld [vmem:[%s586 + $0x1c7] sm:$0xff]
        %v1417 = vld [vmem:[%s586 + $0x1cf] sm:$0xff]
        %v1418 = vld [vmem:[%s586 + $0x1e7] sm:$0xff]
        %v1419 = vld [vmem:[%s586 + $0x1ef] sm:$0xff]
        %s1420 = scalar_lea.vmem [#allocation6], 96
        %v1421 = vld [vmem:[%s1420] sm:$0xff]
        %v1422 = vld [vmem:[%s1420 + $0x8] sm:$0xff]
        %v1423 = vld [vmem:[%s1420 + $0x10] sm:$0xff]
        %v1424 = vld [vmem:[%s1420 + $0x18] sm:$0xff]
        %v1426 = vsel %vm513, %v1388, 0
        %v1429 = vsel %vm513, %v1389, 0
        %v1432 = vsel %vm513, %v1390, 0
        %v1435 = vsel %vm513, %v1391, 0
        %v1438 = vsel %vm513, %v1392, 0
        %v1441 = vsel %vm513, %v1393, 0
        %v1444 = vsel %vm513, %v1394, 0
        %v1447 = vsel %vm513, %v1395, 0
        %v1450 = vsel %vm513, %v1396, 0
        %v1453 = vsel %vm513, %v1397, 0
        %v1456 = vsel %vm513, %v1398, 0
        %v1459 = vsel %vm513, %v1399, 0
        %v1462 = vsel %vm513, %v1400, 0
        %v1465 = vsel %vm513, %v1401, 0
        %v1468 = vsel %vm513, %v1402, 0
        %v1471 = vsel %vm513, %v1403, 0
        %v1474 = vsel %vm513, %v1404, 0
        %v1477 = vsel %vm513, %v1405, 0
        %v1480 = vsel %vm513, %v1406, 0
        %v1483 = vsel %vm513, %v1407, 0
        %v1486 = vsel %vm513, %v1408, 0
        %v1489 = vsel %vm513, %v1409, 0
        %v1492 = vsel %vm513, %v1410, 0
        %v1495 = vsel %vm513, %v1411, 0
        %v1498 = vsel %vm513, %v1412, 0
        %v1501 = vsel %vm513, %v1413, 0
        %v1504 = vsel %vm513, %v1414, 0
        %v1507 = vsel %vm513, %v1415, 0
        %v1510 = vsel %vm513, %v1416, 0
        %v1513 = vsel %vm513, %v1417, 0
        %v1516 = vsel %vm513, %v1418, 0
        %v1519 = vsel %vm513, %v1419, 0
        %1521 = vmatpush.msra.mxu0 0.0
        %1522 = vmatpush.msra.mxu0 0.0
        %1523 = vmatpush.msra.mxu0 0.0
        %1524 = vmatpush.msra.mxu0 0.0
        %1525 = vmatpush.msra.mxu0 0.0
        %1526 = vmatpush.msra.mxu0 0.0
        %1527 = vmatpush.msra.mxu0 0.0
        %1528 = vmatpush.msra.mxu0 0.0
        %1529 = vmatpush.msra.mxu0 0.0
        %1530 = vmatpush.msra.mxu0 0.0
        %1531 = vmatpush.msra.mxu0 0.0
        %1532 = vmatpush.msra.mxu0 0.0
        %1533 = vmatpush.msra.mxu0 %v1424
        %1534 = vmatpush.msra.mxu0 %v1423
        %1535 = vmatpush.msra.mxu0 %v1422
        %1536 = vmatpush.msra.mxu0 %v1421
        %1537 = vmatmul.f32.gmra.mxu0 %v1426
        %v1538 = vpop.f32.mrf.mxu0
        %v1539 = vadd.f32 0.0, %v1538
        %1540 = vmatmul.f32.gmra.mxu0 %v1429
        %v1541 = vpop.f32.mrf.mxu0
        %v1542 = vadd.f32 0.0, %v1541
        %1543 = vmatmul.f32.gmra.mxu0 %v1432
        %v1544 = vpop.f32.mrf.mxu0
        %v1545 = vadd.f32 0.0, %v1544
        %1546 = vmatmul.f32.gmra.mxu0 %v1435
        %v1547 = vpop.f32.mrf.mxu0
        %v1548 = vadd.f32 0.0, %v1547
        %1549 = vmatmul.f32.gmra.mxu0 %v1438
        %v1550 = vpop.f32.mrf.mxu0
        %v1551 = vadd.f32 0.0, %v1550
        %1552 = vmatmul.f32.gmra.mxu0 %v1441
        %v1553 = vpop.f32.mrf.mxu0
        %v1554 = vadd.f32 0.0, %v1553
        %1555 = vmatmul.f32.gmra.mxu0 %v1444
        %v1556 = vpop.f32.mrf.mxu0
        %v1557 = vadd.f32 0.0, %v1556
        %1558 = vmatmul.f32.gmra.mxu0 %v1447
        %v1559 = vpop.f32.mrf.mxu0
        %v1560 = vadd.f32 0.0, %v1559
        %1561 = vmatmul.f32.gmra.mxu0 %v1450
        %v1562 = vpop.f32.mrf.mxu0
        %v1563 = vadd.f32 0.0, %v1562
        %1564 = vmatmul.f32.gmra.mxu0 %v1453
        %v1565 = vpop.f32.mrf.mxu0
        %v1566 = vadd.f32 0.0, %v1565
        %1567 = vmatmul.f32.gmra.mxu0 %v1456
        %v1568 = vpop.f32.mrf.mxu0
        %v1569 = vadd.f32 0.0, %v1568
        %1570 = vmatmul.f32.gmra.mxu0 %v1459
        %v1571 = vpop.f32.mrf.mxu0
        %v1572 = vadd.f32 0.0, %v1571
        %1573 = vmatmul.f32.gmra.mxu0 %v1462
        %v1574 = vpop.f32.mrf.mxu0
        %v1575 = vadd.f32 0.0, %v1574
        %1576 = vmatmul.f32.gmra.mxu0 %v1465
        %v1577 = vpop.f32.mrf.mxu0
        %v1578 = vadd.f32 0.0, %v1577
        %1579 = vmatmul.f32.gmra.mxu0 %v1468
        %v1580 = vpop.f32.mrf.mxu0
        %v1581 = vadd.f32 0.0, %v1580
        %1582 = vmatmul.f32.gmra.mxu0 %v1471
        %v1583 = vpop.f32.mrf.mxu0
        %v1584 = vadd.f32 0.0, %v1583
        %1585 = vmatmul.f32.gmra.mxu0 %v1474
        %v1586 = vpop.f32.mrf.mxu0
        %v1587 = vadd.f32 0.0, %v1586
        %1588 = vmatmul.f32.gmra.mxu0 %v1477
        %v1589 = vpop.f32.mrf.mxu0
        %v1590 = vadd.f32 0.0, %v1589
        %1591 = vmatmul.f32.gmra.mxu0 %v1480
        %v1592 = vpop.f32.mrf.mxu0
        %v1593 = vadd.f32 0.0, %v1592
        %1594 = vmatmul.f32.gmra.mxu0 %v1483
        %v1595 = vpop.f32.mrf.mxu0
        %v1596 = vadd.f32 0.0, %v1595
        %1597 = vmatmul.f32.gmra.mxu0 %v1486
        %v1598 = vpop.f32.mrf.mxu0
        %v1599 = vadd.f32 0.0, %v1598
        %1600 = vmatmul.f32.gmra.mxu0 %v1489
        %v1601 = vpop.f32.mrf.mxu0
        %v1602 = vadd.f32 0.0, %v1601
        %1603 = vmatmul.f32.gmra.mxu0 %v1492
        %v1604 = vpop.f32.mrf.mxu0
        %v1605 = vadd.f32 0.0, %v1604
        %1606 = vmatmul.f32.gmra.mxu0 %v1495
        %v1607 = vpop.f32.mrf.mxu0
        %v1608 = vadd.f32 0.0, %v1607
        %1609 = vmatmul.f32.gmra.mxu0 %v1498
        %v1610 = vpop.f32.mrf.mxu0
        %v1611 = vadd.f32 0.0, %v1610
        %1612 = vmatmul.f32.gmra.mxu0 %v1501
        %v1613 = vpop.f32.mrf.mxu0
        %v1614 = vadd.f32 0.0, %v1613
        %1615 = vmatmul.f32.gmra.mxu0 %v1504
        %v1616 = vpop.f32.mrf.mxu0
        %v1617 = vadd.f32 0.0, %v1616
        %1618 = vmatmul.f32.gmra.mxu0 %v1507
        %v1619 = vpop.f32.mrf.mxu0
        %v1620 = vadd.f32 0.0, %v1619
        %1621 = vmatmul.f32.gmra.mxu0 %v1510
        %v1622 = vpop.f32.mrf.mxu0
        %v1623 = vadd.f32 0.0, %v1622
        %1624 = vmatmul.f32.gmra.mxu0 %v1513
        %v1625 = vpop.f32.mrf.mxu0
        %v1626 = vadd.f32 0.0, %v1625
        %1627 = vmatmul.f32.gmra.mxu0 %v1516
        %v1628 = vpop.f32.mrf.mxu0
        %v1629 = vadd.f32 0.0, %v1628
        %1630 = vmatmul.f32.gmra.mxu0 %v1519
        %v1631 = vpop.f32.mrf.mxu0
        %v1632 = vadd.f32 0.0, %v1631
        %1633 = vdwg.mxu0
        %v1634 = vadd.f32 %v1356, %v1539
        %v1635 = vadd.f32 %v1357, %v1542
        %v1636 = vadd.f32 %v1358, %v1545
        %v1637 = vadd.f32 %v1359, %v1548
        %v1638 = vadd.f32 %v1360, %v1551
        %v1639 = vadd.f32 %v1361, %v1554
        %v1640 = vadd.f32 %v1362, %v1557
        %v1641 = vadd.f32 %v1363, %v1560
        %v1642 = vadd.f32 %v1364, %v1563
        %v1643 = vadd.f32 %v1365, %v1566
        %v1644 = vadd.f32 %v1366, %v1569
        %v1645 = vadd.f32 %v1367, %v1572
        %v1646 = vadd.f32 %v1368, %v1575
        %v1647 = vadd.f32 %v1369, %v1578
        %v1648 = vadd.f32 %v1370, %v1581
        %v1649 = vadd.f32 %v1371, %v1584
        %v1650 = vadd.f32 %v1372, %v1587
        %v1651 = vadd.f32 %v1373, %v1590
        %v1652 = vadd.f32 %v1374, %v1593
        %v1653 = vadd.f32 %v1375, %v1596
        %v1654 = vadd.f32 %v1376, %v1599
        %v1655 = vadd.f32 %v1377, %v1602
        %v1656 = vadd.f32 %v1378, %v1605
        %v1657 = vadd.f32 %v1379, %v1608
        %v1658 = vadd.f32 %v1380, %v1611
        %v1659 = vadd.f32 %v1381, %v1614
        %v1660 = vadd.f32 %v1382, %v1617
        %v1661 = vadd.f32 %v1383, %v1620
        %v1662 = vadd.f32 %v1384, %v1623
        %v1663 = vadd.f32 %v1385, %v1626
        %v1664 = vadd.f32 %v1386, %v1629
        %v1665 = vadd.f32 %v1387, %v1632
        %v1666 = vld [vmem:[%s586 + $0x8] sm:$0xff]
        %v1667 = vld [vmem:[%s586 + $0x10] sm:$0xff]
        %v1668 = vld [vmem:[%s586 + $0x28] sm:$0xff]
        %v1669 = vld [vmem:[%s586 + $0x30] sm:$0xff]
        %v1670 = vld [vmem:[%s586 + $0x48] sm:$0xff]
        %v1671 = vld [vmem:[%s586 + $0x50] sm:$0xff]
        %v1672 = vld [vmem:[%s586 + $0x68] sm:$0xff]
        %v1673 = vld [vmem:[%s586 + $0x70] sm:$0xff]
        %v1674 = vld [vmem:[%s586 + $0x88] sm:$0xff]
        %v1675 = vld [vmem:[%s586 + $0x90] sm:$0xff]
        %v1676 = vld [vmem:[%s586 + $0xa8] sm:$0xff]
        %v1677 = vld [vmem:[%s586 + $0xb0] sm:$0xff]
        %v1678 = vld [vmem:[%s586 + $0xc8] sm:$0xff]
        %v1679 = vld [vmem:[%s586 + $0xd0] sm:$0xff]
        %v1680 = vld [vmem:[%s586 + $0xe8] sm:$0xff]
        %v1681 = vld [vmem:[%s586 + $0xf0] sm:$0xff]
        %v1682 = vld [vmem:[%s586 + $0x108] sm:$0xff]
        %v1683 = vld [vmem:[%s586 + $0x110] sm:$0xff]
        %v1684 = vld [vmem:[%s586 + $0x128] sm:$0xff]
        %v1685 = vld [vmem:[%s586 + $0x130] sm:$0xff]
        %v1686 = vld [vmem:[%s586 + $0x148] sm:$0xff]
        %v1687 = vld [vmem:[%s586 + $0x150] sm:$0xff]
        %v1688 = vld [vmem:[%s586 + $0x168] sm:$0xff]
        %v1689 = vld [vmem:[%s586 + $0x170] sm:$0xff]
        %v1690 = vld [vmem:[%s586 + $0x188] sm:$0xff]
        %v1691 = vld [vmem:[%s586 + $0x190] sm:$0xff]
        %v1692 = vld [vmem:[%s586 + $0x1a8] sm:$0xff]
        %v1693 = vld [vmem:[%s586 + $0x1b0] sm:$0xff]
        %v1694 = vld [vmem:[%s586 + $0x1c8] sm:$0xff]
        %v1695 = vld [vmem:[%s586 + $0x1d0] sm:$0xff]
        %v1696 = vld [vmem:[%s586 + $0x1e8] sm:$0xff]
        %v1697 = vld [vmem:[%s586 + $0x1f0] sm:$0xff]
        %s1698 = scalar_lea.vmem [#allocation6], 128
        %v1699 = vld [vmem:[%s1698] sm:$0xff]
        %v1700 = vld [vmem:[%s1698 + $0x8] sm:$0xff]
        %v1701 = vld [vmem:[%s1698 + $0x10] sm:$0xff]
        %v1702 = vld [vmem:[%s1698 + $0x18] sm:$0xff]
        %v1704 = vsel %vm513, %v1666, 0
        %v1707 = vsel %vm513, %v1667, 0
        %v1710 = vsel %vm513, %v1668, 0
        %v1713 = vsel %vm513, %v1669, 0
        %v1716 = vsel %vm513, %v1670, 0
        %v1719 = vsel %vm513, %v1671, 0
        %v1722 = vsel %vm513, %v1672, 0
        %v1725 = vsel %vm513, %v1673, 0
        %v1728 = vsel %vm513, %v1674, 0
        %v1731 = vsel %vm513, %v1675, 0
        %v1734 = vsel %vm513, %v1676, 0
        %v1737 = vsel %vm513, %v1677, 0
        %v1740 = vsel %vm513, %v1678, 0
        %v1743 = vsel %vm513, %v1679, 0
        %v1746 = vsel %vm513, %v1680, 0
        %v1749 = vsel %vm513, %v1681, 0
        %v1752 = vsel %vm513, %v1682, 0
        %v1755 = vsel %vm513, %v1683, 0
        %v1758 = vsel %vm513, %v1684, 0
        %v1761 = vsel %vm513, %v1685, 0
        %v1764 = vsel %vm513, %v1686, 0
        %v1767 = vsel %vm513, %v1687, 0
        %v1770 = vsel %vm513, %v1688, 0
        %v1773 = vsel %vm513, %v1689, 0
        %v1776 = vsel %vm513, %v1690, 0
        %v1779 = vsel %vm513, %v1691, 0
        %v1782 = vsel %vm513, %v1692, 0
        %v1785 = vsel %vm513, %v1693, 0
        %v1788 = vsel %vm513, %v1694, 0
        %v1791 = vsel %vm513, %v1695, 0
        %v1794 = vsel %vm513, %v1696, 0
        %v1797 = vsel %vm513, %v1697, 0
        %1799 = vmatpush.msra.mxu0 0.0
        %1800 = vmatpush.msra.mxu0 0.0
        %1801 = vmatpush.msra.mxu0 0.0
        %1802 = vmatpush.msra.mxu0 0.0
        %1803 = vmatpush.msra.mxu0 0.0
        %1804 = vmatpush.msra.mxu0 0.0
        %1805 = vmatpush.msra.mxu0 0.0
        %1806 = vmatpush.msra.mxu0 0.0
        %1807 = vmatpush.msra.mxu0 0.0
        %1808 = vmatpush.msra.mxu0 0.0
        %1809 = vmatpush.msra.mxu0 0.0
        %1810 = vmatpush.msra.mxu0 0.0
        %1811 = vmatpush.msra.mxu0 %v1702
        %1812 = vmatpush.msra.mxu0 %v1701
        %1813 = vmatpush.msra.mxu0 %v1700
        %1814 = vmatpush.msra.mxu0 %v1699
        %1815 = vmatmul.f32.gmra.mxu0 %v1704
        %v1816 = vpop.f32.mrf.mxu0
        %v1817 = vadd.f32 0.0, %v1816
        %1818 = vmatmul.f32.gmra.mxu0 %v1707
        %v1819 = vpop.f32.mrf.mxu0
        %v1820 = vadd.f32 0.0, %v1819
        %1821 = vmatmul.f32.gmra.mxu0 %v1710
        %v1822 = vpop.f32.mrf.mxu0
        %v1823 = vadd.f32 0.0, %v1822
        %1824 = vmatmul.f32.gmra.mxu0 %v1713
        %v1825 = vpop.f32.mrf.mxu0
        %v1826 = vadd.f32 0.0, %v1825
        %1827 = vmatmul.f32.gmra.mxu0 %v1716
        %v1828 = vpop.f32.mrf.mxu0
        %v1829 = vadd.f32 0.0, %v1828
        %1830 = vmatmul.f32.gmra.mxu0 %v1719
        %v1831 = vpop.f32.mrf.mxu0
        %v1832 = vadd.f32 0.0, %v1831
        %1833 = vmatmul.f32.gmra.mxu0 %v1722
        %v1834 = vpop.f32.mrf.mxu0
        %v1835 = vadd.f32 0.0, %v1834
        %1836 = vmatmul.f32.gmra.mxu0 %v1725
        %v1837 = vpop.f32.mrf.mxu0
        %v1838 = vadd.f32 0.0, %v1837
        %1839 = vmatmul.f32.gmra.mxu0 %v1728
        %v1840 = vpop.f32.mrf.mxu0
        %v1841 = vadd.f32 0.0, %v1840
        %1842 = vmatmul.f32.gmra.mxu0 %v1731
        %v1843 = vpop.f32.mrf.mxu0
        %v1844 = vadd.f32 0.0, %v1843
        %1845 = vmatmul.f32.gmra.mxu0 %v1734
        %v1846 = vpop.f32.mrf.mxu0
        %v1847 = vadd.f32 0.0, %v1846
        %1848 = vmatmul.f32.gmra.mxu0 %v1737
        %v1849 = vpop.f32.mrf.mxu0
        %v1850 = vadd.f32 0.0, %v1849
        %1851 = vmatmul.f32.gmra.mxu0 %v1740
        %v1852 = vpop.f32.mrf.mxu0
        %v1853 = vadd.f32 0.0, %v1852
        %1854 = vmatmul.f32.gmra.mxu0 %v1743
        %v1855 = vpop.f32.mrf.mxu0
        %v1856 = vadd.f32 0.0, %v1855
        %1857 = vmatmul.f32.gmra.mxu0 %v1746
        %v1858 = vpop.f32.mrf.mxu0
        %v1859 = vadd.f32 0.0, %v1858
        %1860 = vmatmul.f32.gmra.mxu0 %v1749
        %v1861 = vpop.f32.mrf.mxu0
        %v1862 = vadd.f32 0.0, %v1861
        %1863 = vmatmul.f32.gmra.mxu0 %v1752
        %v1864 = vpop.f32.mrf.mxu0
        %v1865 = vadd.f32 0.0, %v1864
        %1866 = vmatmul.f32.gmra.mxu0 %v1755
        %v1867 = vpop.f32.mrf.mxu0
        %v1868 = vadd.f32 0.0, %v1867
        %1869 = vmatmul.f32.gmra.mxu0 %v1758
        %v1870 = vpop.f32.mrf.mxu0
        %v1871 = vadd.f32 0.0, %v1870
        %1872 = vmatmul.f32.gmra.mxu0 %v1761
        %v1873 = vpop.f32.mrf.mxu0
        %v1874 = vadd.f32 0.0, %v1873
        %1875 = vmatmul.f32.gmra.mxu0 %v1764
        %v1876 = vpop.f32.mrf.mxu0
        %v1877 = vadd.f32 0.0, %v1876
        %1878 = vmatmul.f32.gmra.mxu0 %v1767
        %v1879 = vpop.f32.mrf.mxu0
        %v1880 = vadd.f32 0.0, %v1879
        %1881 = vmatmul.f32.gmra.mxu0 %v1770
        %v1882 = vpop.f32.mrf.mxu0
        %v1883 = vadd.f32 0.0, %v1882
        %1884 = vmatmul.f32.gmra.mxu0 %v1773
        %v1885 = vpop.f32.mrf.mxu0
        %v1886 = vadd.f32 0.0, %v1885
        %1887 = vmatmul.f32.gmra.mxu0 %v1776
        %v1888 = vpop.f32.mrf.mxu0
        %v1889 = vadd.f32 0.0, %v1888
        %1890 = vmatmul.f32.gmra.mxu0 %v1779
        %v1891 = vpop.f32.mrf.mxu0
        %v1892 = vadd.f32 0.0, %v1891
        %1893 = vmatmul.f32.gmra.mxu0 %v1782
        %v1894 = vpop.f32.mrf.mxu0
        %v1895 = vadd.f32 0.0, %v1894
        %1896 = vmatmul.f32.gmra.mxu0 %v1785
        %v1897 = vpop.f32.mrf.mxu0
        %v1898 = vadd.f32 0.0, %v1897
        %1899 = vmatmul.f32.gmra.mxu0 %v1788
        %v1900 = vpop.f32.mrf.mxu0
        %v1901 = vadd.f32 0.0, %v1900
        %1902 = vmatmul.f32.gmra.mxu0 %v1791
        %v1903 = vpop.f32.mrf.mxu0
        %v1904 = vadd.f32 0.0, %v1903
        %1905 = vmatmul.f32.gmra.mxu0 %v1794
        %v1906 = vpop.f32.mrf.mxu0
        %v1907 = vadd.f32 0.0, %v1906
        %1908 = vmatmul.f32.gmra.mxu0 %v1797
        %v1909 = vpop.f32.mrf.mxu0
        %v1910 = vadd.f32 0.0, %v1909
        %1911 = vdwg.mxu0
        %v1912 = vadd.f32 %v1634, %v1817
        %v1913 = vadd.f32 %v1635, %v1820
        %v1914 = vadd.f32 %v1636, %v1823
        %v1915 = vadd.f32 %v1637, %v1826
        %v1916 = vadd.f32 %v1638, %v1829
        %v1917 = vadd.f32 %v1639, %v1832
        %v1918 = vadd.f32 %v1640, %v1835
        %v1919 = vadd.f32 %v1641, %v1838
        %v1920 = vadd.f32 %v1642, %v1841
        %v1921 = vadd.f32 %v1643, %v1844
        %v1922 = vadd.f32 %v1644, %v1847
        %v1923 = vadd.f32 %v1645, %v1850
        %v1924 = vadd.f32 %v1646, %v1853
        %v1925 = vadd.f32 %v1647, %v1856
        %v1926 = vadd.f32 %v1648, %v1859
        %v1927 = vadd.f32 %v1649, %v1862
        %v1928 = vadd.f32 %v1650, %v1865
        %v1929 = vadd.f32 %v1651, %v1868
        %v1930 = vadd.f32 %v1652, %v1871
        %v1931 = vadd.f32 %v1653, %v1874
        %v1932 = vadd.f32 %v1654, %v1877
        %v1933 = vadd.f32 %v1655, %v1880
        %v1934 = vadd.f32 %v1656, %v1883
        %v1935 = vadd.f32 %v1657, %v1886
        %v1936 = vadd.f32 %v1658, %v1889
        %v1937 = vadd.f32 %v1659, %v1892
        %v1938 = vadd.f32 %v1660, %v1895
        %v1939 = vadd.f32 %v1661, %v1898
        %v1940 = vadd.f32 %v1662, %v1901
        %v1941 = vadd.f32 %v1663, %v1904
        %v1942 = vadd.f32 %v1664, %v1907
        %v1943 = vadd.f32 %v1665, %v1910
        %v1944 = vld [vmem:[%s586 + $0x9] sm:$0xff]
        %v1945 = vld [vmem:[%s586 + $0x11] sm:$0xff]
        %v1946 = vld [vmem:[%s586 + $0x29] sm:$0xff]
        %v1947 = vld [vmem:[%s586 + $0x31] sm:$0xff]
        %v1948 = vld [vmem:[%s586 + $0x49] sm:$0xff]
        %v1949 = vld [vmem:[%s586 + $0x51] sm:$0xff]
        %v1950 = vld [vmem:[%s586 + $0x69] sm:$0xff]
        %v1951 = vld [vmem:[%s586 + $0x71] sm:$0xff]
        %v1952 = vld [vmem:[%s586 + $0x89] sm:$0xff]
        %v1953 = vld [vmem:[%s586 + $0x91] sm:$0xff]
        %v1954 = vld [vmem:[%s586 + $0xa9] sm:$0xff]
        %v1955 = vld [vmem:[%s586 + $0xb1] sm:$0xff]
        %v1956 = vld [vmem:[%s586 + $0xc9] sm:$0xff]
        %v1957 = vld [vmem:[%s586 + $0xd1] sm:$0xff]
        %v1958 = vld [vmem:[%s586 + $0xe9] sm:$0xff]
        %v1959 = vld [vmem:[%s586 + $0xf1] sm:$0xff]
        %v1960 = vld [vmem:[%s586 + $0x109] sm:$0xff]
        %v1961 = vld [vmem:[%s586 + $0x111] sm:$0xff]
        %v1962 = vld [vmem:[%s586 + $0x129] sm:$0xff]
        %v1963 = vld [vmem:[%s586 + $0x131] sm:$0xff]
        %v1964 = vld [vmem:[%s586 + $0x149] sm:$0xff]
        %v1965 = vld [vmem:[%s586 + $0x151] sm:$0xff]
        %v1966 = vld [vmem:[%s586 + $0x169] sm:$0xff]
        %v1967 = vld [vmem:[%s586 + $0x171] sm:$0xff]
        %v1968 = vld [vmem:[%s586 + $0x189] sm:$0xff]
        %v1969 = vld [vmem:[%s586 + $0x191] sm:$0xff]
        %v1970 = vld [vmem:[%s586 + $0x1a9] sm:$0xff]
        %v1971 = vld [vmem:[%s586 + $0x1b1] sm:$0xff]
        %v1972 = vld [vmem:[%s586 + $0x1c9] sm:$0xff]
        %v1973 = vld [vmem:[%s586 + $0x1d1] sm:$0xff]
        %v1974 = vld [vmem:[%s586 + $0x1e9] sm:$0xff]
        %v1975 = vld [vmem:[%s586 + $0x1f1] sm:$0xff]
        %s1976 = scalar_lea.vmem [#allocation6], 160
        %v1977 = vld [vmem:[%s1976] sm:$0xff]
        %v1978 = vld [vmem:[%s1976 + $0x8] sm:$0xff]
        %v1979 = vld [vmem:[%s1976 + $0x10] sm:$0xff]
        %v1980 = vld [vmem:[%s1976 + $0x18] sm:$0xff]
        %v1982 = vsel %vm513, %v1944, 0
        %v1985 = vsel %vm513, %v1945, 0
        %v1988 = vsel %vm513, %v1946, 0
        %v1991 = vsel %vm513, %v1947, 0
        %v1994 = vsel %vm513, %v1948, 0
        %v1997 = vsel %vm513, %v1949, 0
        %v2000 = vsel %vm513, %v1950, 0
        %v2003 = vsel %vm513, %v1951, 0
        %v2006 = vsel %vm513, %v1952, 0
        %v2009 = vsel %vm513, %v1953, 0
        %v2012 = vsel %vm513, %v1954, 0
        %v2015 = vsel %vm513, %v1955, 0
        %v2018 = vsel %vm513, %v1956, 0
        %v2021 = vsel %vm513, %v1957, 0
        %v2024 = vsel %vm513, %v1958, 0
        %v2027 = vsel %vm513, %v1959, 0
        %v2030 = vsel %vm513, %v1960, 0
        %v2033 = vsel %vm513, %v1961, 0
        %v2036 = vsel %vm513, %v1962, 0
        %v2039 = vsel %vm513, %v1963, 0
        %v2042 = vsel %vm513, %v1964, 0
        %v2045 = vsel %vm513, %v1965, 0
        %v2048 = vsel %vm513, %v1966, 0
        %v2051 = vsel %vm513, %v1967, 0
        %v2054 = vsel %vm513, %v1968, 0
        %v2057 = vsel %vm513, %v1969, 0
        %v2060 = vsel %vm513, %v1970, 0
        %v2063 = vsel %vm513, %v1971, 0
        %v2066 = vsel %vm513, %v1972, 0
        %v2069 = vsel %vm513, %v1973, 0
        %v2072 = vsel %vm513, %v1974, 0
        %v2075 = vsel %vm513, %v1975, 0
        %2077 = vmatpush.msra.mxu0 0.0
        %2078 = vmatpush.msra.mxu0 0.0
        %2079 = vmatpush.msra.mxu0 0.0
        %2080 = vmatpush.msra.mxu0 0.0
        %2081 = vmatpush.msra.mxu0 0.0
        %2082 = vmatpush.msra.mxu0 0.0
        %2083 = vmatpush.msra.mxu0 0.0
        %2084 = vmatpush.msra.mxu0 0.0
        %2085 = vmatpush.msra.mxu0 0.0
        %2086 = vmatpush.msra.mxu0 0.0
        %2087 = vmatpush.msra.mxu0 0.0
        %2088 = vmatpush.msra.mxu0 0.0
        %2089 = vmatpush.msra.mxu0 %v1980
        %2090 = vmatpush.msra.mxu0 %v1979
        %2091 = vmatpush.msra.mxu0 %v1978
        %2092 = vmatpush.msra.mxu0 %v1977
        %2093 = vmatmul.f32.gmra.mxu0 %v1982
        %v2094 = vpop.f32.mrf.mxu0
        %v2095 = vadd.f32 0.0, %v2094
        %2096 = vmatmul.f32.gmra.mxu0 %v1985
        %v2097 = vpop.f32.mrf.mxu0
        %v2098 = vadd.f32 0.0, %v2097
        %2099 = vmatmul.f32.gmra.mxu0 %v1988
        %v2100 = vpop.f32.mrf.mxu0
        %v2101 = vadd.f32 0.0, %v2100
        %2102 = vmatmul.f32.gmra.mxu0 %v1991
        %v2103 = vpop.f32.mrf.mxu0
        %v2104 = vadd.f32 0.0, %v2103
        %2105 = vmatmul.f32.gmra.mxu0 %v1994
        %v2106 = vpop.f32.mrf.mxu0
        %v2107 = vadd.f32 0.0, %v2106
        %2108 = vmatmul.f32.gmra.mxu0 %v1997
        %v2109 = vpop.f32.mrf.mxu0
        %v2110 = vadd.f32 0.0, %v2109
        %2111 = vmatmul.f32.gmra.mxu0 %v2000
        %v2112 = vpop.f32.mrf.mxu0
        %v2113 = vadd.f32 0.0, %v2112
        %2114 = vmatmul.f32.gmra.mxu0 %v2003
        %v2115 = vpop.f32.mrf.mxu0
        %v2116 = vadd.f32 0.0, %v2115
        %2117 = vmatmul.f32.gmra.mxu0 %v2006
        %v2118 = vpop.f32.mrf.mxu0
        %v2119 = vadd.f32 0.0, %v2118
        %2120 = vmatmul.f32.gmra.mxu0 %v2009
        %v2121 = vpop.f32.mrf.mxu0
        %v2122 = vadd.f32 0.0, %v2121
        %2123 = vmatmul.f32.gmra.mxu0 %v2012
        %v2124 = vpop.f32.mrf.mxu0
        %v2125 = vadd.f32 0.0, %v2124
        %2126 = vmatmul.f32.gmra.mxu0 %v2015
        %v2127 = vpop.f32.mrf.mxu0
        %v2128 = vadd.f32 0.0, %v2127
        %2129 = vmatmul.f32.gmra.mxu0 %v2018
        %v2130 = vpop.f32.mrf.mxu0
        %v2131 = vadd.f32 0.0, %v2130
        %2132 = vmatmul.f32.gmra.mxu0 %v2021
        %v2133 = vpop.f32.mrf.mxu0
        %v2134 = vadd.f32 0.0, %v2133
        %2135 = vmatmul.f32.gmra.mxu0 %v2024
        %v2136 = vpop.f32.mrf.mxu0
        %v2137 = vadd.f32 0.0, %v2136
        %2138 = vmatmul.f32.gmra.mxu0 %v2027
        %v2139 = vpop.f32.mrf.mxu0
        %v2140 = vadd.f32 0.0, %v2139
        %2141 = vmatmul.f32.gmra.mxu0 %v2030
        %v2142 = vpop.f32.mrf.mxu0
        %v2143 = vadd.f32 0.0, %v2142
        %2144 = vmatmul.f32.gmra.mxu0 %v2033
        %v2145 = vpop.f32.mrf.mxu0
        %v2146 = vadd.f32 0.0, %v2145
        %2147 = vmatmul.f32.gmra.mxu0 %v2036
        %v2148 = vpop.f32.mrf.mxu0
        %v2149 = vadd.f32 0.0, %v2148
        %2150 = vmatmul.f32.gmra.mxu0 %v2039
        %v2151 = vpop.f32.mrf.mxu0
        %v2152 = vadd.f32 0.0, %v2151
        %2153 = vmatmul.f32.gmra.mxu0 %v2042
        %v2154 = vpop.f32.mrf.mxu0
        %v2155 = vadd.f32 0.0, %v2154
        %2156 = vmatmul.f32.gmra.mxu0 %v2045
        %v2157 = vpop.f32.mrf.mxu0
        %v2158 = vadd.f32 0.0, %v2157
        %2159 = vmatmul.f32.gmra.mxu0 %v2048
        %v2160 = vpop.f32.mrf.mxu0
        %v2161 = vadd.f32 0.0, %v2160
        %2162 = vmatmul.f32.gmra.mxu0 %v2051
        %v2163 = vpop.f32.mrf.mxu0
        %v2164 = vadd.f32 0.0, %v2163
        %2165 = vmatmul.f32.gmra.mxu0 %v2054
        %v2166 = vpop.f32.mrf.mxu0
        %v2167 = vadd.f32 0.0, %v2166
        %2168 = vmatmul.f32.gmra.mxu0 %v2057
        %v2169 = vpop.f32.mrf.mxu0
        %v2170 = vadd.f32 0.0, %v2169
        %2171 = vmatmul.f32.gmra.mxu0 %v2060
        %v2172 = vpop.f32.mrf.mxu0
        %v2173 = vadd.f32 0.0, %v2172
        %2174 = vmatmul.f32.gmra.mxu0 %v2063
        %v2175 = vpop.f32.mrf.mxu0
        %v2176 = vadd.f32 0.0, %v2175
        %2177 = vmatmul.f32.gmra.mxu0 %v2066
        %v2178 = vpop.f32.mrf.mxu0
        %v2179 = vadd.f32 0.0, %v2178
        %2180 = vmatmul.f32.gmra.mxu0 %v2069
        %v2181 = vpop.f32.mrf.mxu0
        %v2182 = vadd.f32 0.0, %v2181
        %2183 = vmatmul.f32.gmra.mxu0 %v2072
        %v2184 = vpop.f32.mrf.mxu0
        %v2185 = vadd.f32 0.0, %v2184
        %2186 = vmatmul.f32.gmra.mxu0 %v2075
        %v2187 = vpop.f32.mrf.mxu0
        %v2188 = vadd.f32 0.0, %v2187
        %2189 = vdwg.mxu0
        %v2190 = vadd.f32 %v1912, %v2095
        %v2191 = vadd.f32 %v1913, %v2098
        %v2192 = vadd.f32 %v1914, %v2101
        %v2193 = vadd.f32 %v1915, %v2104
        %v2194 = vadd.f32 %v1916, %v2107
        %v2195 = vadd.f32 %v1917, %v2110
        %v2196 = vadd.f32 %v1918, %v2113
        %v2197 = vadd.f32 %v1919, %v2116
        %v2198 = vadd.f32 %v1920, %v2119
        %v2199 = vadd.f32 %v1921, %v2122
        %v2200 = vadd.f32 %v1922, %v2125
        %v2201 = vadd.f32 %v1923, %v2128
        %v2202 = vadd.f32 %v1924, %v2131
        %v2203 = vadd.f32 %v1925, %v2134
        %v2204 = vadd.f32 %v1926, %v2137
        %v2205 = vadd.f32 %v1927, %v2140
        %v2206 = vadd.f32 %v1928, %v2143
        %v2207 = vadd.f32 %v1929, %v2146
        %v2208 = vadd.f32 %v1930, %v2149
        %v2209 = vadd.f32 %v1931, %v2152
        %v2210 = vadd.f32 %v1932, %v2155
        %v2211 = vadd.f32 %v1933, %v2158
        %v2212 = vadd.f32 %v1934, %v2161
        %v2213 = vadd.f32 %v1935, %v2164
        %v2214 = vadd.f32 %v1936, %v2167
        %v2215 = vadd.f32 %v1937, %v2170
        %v2216 = vadd.f32 %v1938, %v2173
        %v2217 = vadd.f32 %v1939, %v2176
        %v2218 = vadd.f32 %v1940, %v2179
        %v2219 = vadd.f32 %v1941, %v2182
        %v2220 = vadd.f32 %v1942, %v2185
        %v2221 = vadd.f32 %v1943, %v2188
        %s2222 = scalar_lea.vmem [#allocation2], 64
        %v2223 = vld [vmem:[%s2222 + $0x7] sm:$0xff]
        %v2224 = vld [vmem:[%s2222 + $0xf] sm:$0xff]
        %v2225 = vld [vmem:[%s2222 + $0x27] sm:$0xff]
        %v2226 = vld [vmem:[%s2222 + $0x2f] sm:$0xff]
        %v2227 = vld [vmem:[%s2222 + $0x47] sm:$0xff]
        %v2228 = vld [vmem:[%s2222 + $0x4f] sm:$0xff]
        %v2229 = vld [vmem:[%s2222 + $0x67] sm:$0xff]
        %v2230 = vld [vmem:[%s2222 + $0x6f] sm:$0xff]
        %v2231 = vld [vmem:[%s2222 + $0x87] sm:$0xff]
        %v2232 = vld [vmem:[%s2222 + $0x8f] sm:$0xff]
        %v2233 = vld [vmem:[%s2222 + $0xa7] sm:$0xff]
        %v2234 = vld [vmem:[%s2222 + $0xaf] sm:$0xff]
        %v2235 = vld [vmem:[%s2222 + $0xc7] sm:$0xff]
        %v2236 = vld [vmem:[%s2222 + $0xcf] sm:$0xff]
        %v2237 = vld [vmem:[%s2222 + $0xe7] sm:$0xff]
        %v2238 = vld [vmem:[%s2222 + $0xef] sm:$0xff]
        %v2239 = vld [vmem:[%s2222 + $0x107] sm:$0xff]
        %v2240 = vld [vmem:[%s2222 + $0x10f] sm:$0xff]
        %v2241 = vld [vmem:[%s2222 + $0x127] sm:$0xff]
        %v2242 = vld [vmem:[%s2222 + $0x12f] sm:$0xff]
        %v2243 = vld [vmem:[%s2222 + $0x147] sm:$0xff]
        %v2244 = vld [vmem:[%s2222 + $0x14f] sm:$0xff]
        %v2245 = vld [vmem:[%s2222 + $0x167] sm:$0xff]
        %v2246 = vld [vmem:[%s2222 + $0x16f] sm:$0xff]
        %v2247 = vld [vmem:[%s2222 + $0x187] sm:$0xff]
        %v2248 = vld [vmem:[%s2222 + $0x18f] sm:$0xff]
        %v2249 = vld [vmem:[%s2222 + $0x1a7] sm:$0xff]
        %v2250 = vld [vmem:[%s2222 + $0x1af] sm:$0xff]
        %v2251 = vld [vmem:[%s2222 + $0x1c7] sm:$0xff]
        %v2252 = vld [vmem:[%s2222 + $0x1cf] sm:$0xff]
        %v2253 = vld [vmem:[%s2222 + $0x1e7] sm:$0xff]
        %v2254 = vld [vmem:[%s2222 + $0x1ef] sm:$0xff]
        %s2255 = scalar_lea.vmem [#allocation6], 192
        %v2256 = vld [vmem:[%s2255] sm:$0xff]
        %v2257 = vld [vmem:[%s2255 + $0x8] sm:$0xff]
        %v2258 = vld [vmem:[%s2255 + $0x10] sm:$0xff]
        %v2259 = vld [vmem:[%s2255 + $0x18] sm:$0xff]
        %v2261 = vsel %vm513, %v2223, 0
        %v2264 = vsel %vm513, %v2224, 0
        %v2267 = vsel %vm513, %v2225, 0
        %v2270 = vsel %vm513, %v2226, 0
        %v2273 = vsel %vm513, %v2227, 0
        %v2276 = vsel %vm513, %v2228, 0
        %v2279 = vsel %vm513, %v2229, 0
        %v2282 = vsel %vm513, %v2230, 0
        %v2285 = vsel %vm513, %v2231, 0
        %v2288 = vsel %vm513, %v2232, 0
        %v2291 = vsel %vm513, %v2233, 0
        %v2294 = vsel %vm513, %v2234, 0
        %v2297 = vsel %vm513, %v2235, 0
        %v2300 = vsel %vm513, %v2236, 0
        %v2303 = vsel %vm513, %v2237, 0
        %v2306 = vsel %vm513, %v2238, 0
        %v2309 = vsel %vm513, %v2239, 0
        %v2312 = vsel %vm513, %v2240, 0
        %v2315 = vsel %vm513, %v2241, 0
        %v2318 = vsel %vm513, %v2242, 0
        %v2321 = vsel %vm513, %v2243, 0
        %v2324 = vsel %vm513, %v2244, 0
        %v2327 = vsel %vm513, %v2245, 0
        %v2330 = vsel %vm513, %v2246, 0
        %v2333 = vsel %vm513, %v2247, 0
        %v2336 = vsel %vm513, %v2248, 0
        %v2339 = vsel %vm513, %v2249, 0
        %v2342 = vsel %vm513, %v2250, 0
        %v2345 = vsel %vm513, %v2251, 0
        %v2348 = vsel %vm513, %v2252, 0
        %v2351 = vsel %vm513, %v2253, 0
        %v2354 = vsel %vm513, %v2254, 0
        %2356 = vmatpush.msra.mxu0 0.0
        %2357 = vmatpush.msra.mxu0 0.0
        %2358 = vmatpush.msra.mxu0 0.0
        %2359 = vmatpush.msra.mxu0 0.0
        %2360 = vmatpush.msra.mxu0 0.0
        %2361 = vmatpush.msra.mxu0 0.0
        %2362 = vmatpush.msra.mxu0 0.0
        %2363 = vmatpush.msra.mxu0 0.0
        %2364 = vmatpush.msra.mxu0 0.0
        %2365 = vmatpush.msra.mxu0 0.0
        %2366 = vmatpush.msra.mxu0 0.0
        %2367 = vmatpush.msra.mxu0 0.0
        %2368 = vmatpush.msra.mxu0 %v2259
        %2369 = vmatpush.msra.mxu0 %v2258
        %2370 = vmatpush.msra.mxu0 %v2257
        %2371 = vmatpush.msra.mxu0 %v2256
        %2372 = vmatmul.f32.gmra.mxu0 %v2261
        %v2373 = vpop.f32.mrf.mxu0
        %v2374 = vadd.f32 0.0, %v2373
        %2375 = vmatmul.f32.gmra.mxu0 %v2264
        %v2376 = vpop.f32.mrf.mxu0
        %v2377 = vadd.f32 0.0, %v2376
        %2378 = vmatmul.f32.gmra.mxu0 %v2267
        %v2379 = vpop.f32.mrf.mxu0
        %v2380 = vadd.f32 0.0, %v2379
        %2381 = vmatmul.f32.gmra.mxu0 %v2270
        %v2382 = vpop.f32.mrf.mxu0
        %v2383 = vadd.f32 0.0, %v2382
        %2384 = vmatmul.f32.gmra.mxu0 %v2273
        %v2385 = vpop.f32.mrf.mxu0
        %v2386 = vadd.f32 0.0, %v2385
        %2387 = vmatmul.f32.gmra.mxu0 %v2276
        %v2388 = vpop.f32.mrf.mxu0
        %v2389 = vadd.f32 0.0, %v2388
        %2390 = vmatmul.f32.gmra.mxu0 %v2279
        %v2391 = vpop.f32.mrf.mxu0
        %v2392 = vadd.f32 0.0, %v2391
        %2393 = vmatmul.f32.gmra.mxu0 %v2282
        %v2394 = vpop.f32.mrf.mxu0
        %v2395 = vadd.f32 0.0, %v2394
        %2396 = vmatmul.f32.gmra.mxu0 %v2285
        %v2397 = vpop.f32.mrf.mxu0
        %v2398 = vadd.f32 0.0, %v2397
        %2399 = vmatmul.f32.gmra.mxu0 %v2288
        %v2400 = vpop.f32.mrf.mxu0
        %v2401 = vadd.f32 0.0, %v2400
        %2402 = vmatmul.f32.gmra.mxu0 %v2291
        %v2403 = vpop.f32.mrf.mxu0
        %v2404 = vadd.f32 0.0, %v2403
        %2405 = vmatmul.f32.gmra.mxu0 %v2294
        %v2406 = vpop.f32.mrf.mxu0
        %v2407 = vadd.f32 0.0, %v2406
        %2408 = vmatmul.f32.gmra.mxu0 %v2297
        %v2409 = vpop.f32.mrf.mxu0
        %v2410 = vadd.f32 0.0, %v2409
        %2411 = vmatmul.f32.gmra.mxu0 %v2300
        %v2412 = vpop.f32.mrf.mxu0
        %v2413 = vadd.f32 0.0, %v2412
        %2414 = vmatmul.f32.gmra.mxu0 %v2303
        %v2415 = vpop.f32.mrf.mxu0
        %v2416 = vadd.f32 0.0, %v2415
        %2417 = vmatmul.f32.gmra.mxu0 %v2306
        %v2418 = vpop.f32.mrf.mxu0
        %v2419 = vadd.f32 0.0, %v2418
        %2420 = vmatmul.f32.gmra.mxu0 %v2309
        %v2421 = vpop.f32.mrf.mxu0
        %v2422 = vadd.f32 0.0, %v2421
        %2423 = vmatmul.f32.gmra.mxu0 %v2312
        %v2424 = vpop.f32.mrf.mxu0
        %v2425 = vadd.f32 0.0, %v2424
        %2426 = vmatmul.f32.gmra.mxu0 %v2315
        %v2427 = vpop.f32.mrf.mxu0
        %v2428 = vadd.f32 0.0, %v2427
        %2429 = vmatmul.f32.gmra.mxu0 %v2318
        %v2430 = vpop.f32.mrf.mxu0
        %v2431 = vadd.f32 0.0, %v2430
        %2432 = vmatmul.f32.gmra.mxu0 %v2321
        %v2433 = vpop.f32.mrf.mxu0
        %v2434 = vadd.f32 0.0, %v2433
        %2435 = vmatmul.f32.gmra.mxu0 %v2324
        %v2436 = vpop.f32.mrf.mxu0
        %v2437 = vadd.f32 0.0, %v2436
        %2438 = vmatmul.f32.gmra.mxu0 %v2327
        %v2439 = vpop.f32.mrf.mxu0
        %v2440 = vadd.f32 0.0, %v2439
        %2441 = vmatmul.f32.gmra.mxu0 %v2330
        %v2442 = vpop.f32.mrf.mxu0
        %v2443 = vadd.f32 0.0, %v2442
        %2444 = vmatmul.f32.gmra.mxu0 %v2333
        %v2445 = vpop.f32.mrf.mxu0
        %v2446 = vadd.f32 0.0, %v2445
        %2447 = vmatmul.f32.gmra.mxu0 %v2336
        %v2448 = vpop.f32.mrf.mxu0
        %v2449 = vadd.f32 0.0, %v2448
        %2450 = vmatmul.f32.gmra.mxu0 %v2339
        %v2451 = vpop.f32.mrf.mxu0
        %v2452 = vadd.f32 0.0, %v2451
        %2453 = vmatmul.f32.gmra.mxu0 %v2342
        %v2454 = vpop.f32.mrf.mxu0
        %v2455 = vadd.f32 0.0, %v2454
        %2456 = vmatmul.f32.gmra.mxu0 %v2345
        %v2457 = vpop.f32.mrf.mxu0
        %v2458 = vadd.f32 0.0, %v2457
        %2459 = vmatmul.f32.gmra.mxu0 %v2348
        %v2460 = vpop.f32.mrf.mxu0
        %v2461 = vadd.f32 0.0, %v2460
        %2462 = vmatmul.f32.gmra.mxu0 %v2351
        %v2463 = vpop.f32.mrf.mxu0
        %v2464 = vadd.f32 0.0, %v2463
        %2465 = vmatmul.f32.gmra.mxu0 %v2354
        %v2466 = vpop.f32.mrf.mxu0
        %v2467 = vadd.f32 0.0, %v2466
        %2468 = vdwg.mxu0
        %v2469 = vadd.f32 %v2190, %v2374
        %v2470 = vadd.f32 %v2191, %v2377
        %v2471 = vadd.f32 %v2192, %v2380
        %v2472 = vadd.f32 %v2193, %v2383
        %v2473 = vadd.f32 %v2194, %v2386
        %v2474 = vadd.f32 %v2195, %v2389
        %v2475 = vadd.f32 %v2196, %v2392
        %v2476 = vadd.f32 %v2197, %v2395
        %v2477 = vadd.f32 %v2198, %v2398
        %v2478 = vadd.f32 %v2199, %v2401
        %v2479 = vadd.f32 %v2200, %v2404
        %v2480 = vadd.f32 %v2201, %v2407
        %v2481 = vadd.f32 %v2202, %v2410
        %v2482 = vadd.f32 %v2203, %v2413
        %v2483 = vadd.f32 %v2204, %v2416
        %v2484 = vadd.f32 %v2205, %v2419
        %v2485 = vadd.f32 %v2206, %v2422
        %v2486 = vadd.f32 %v2207, %v2425
        %v2487 = vadd.f32 %v2208, %v2428
        %v2488 = vadd.f32 %v2209, %v2431
        %v2489 = vadd.f32 %v2210, %v2434
        %v2490 = vadd.f32 %v2211, %v2437
        %v2491 = vadd.f32 %v2212, %v2440
        %v2492 = vadd.f32 %v2213, %v2443
        %v2493 = vadd.f32 %v2214, %v2446
        %v2494 = vadd.f32 %v2215, %v2449
        %v2495 = vadd.f32 %v2216, %v2452
        %v2496 = vadd.f32 %v2217, %v2455
        %v2497 = vadd.f32 %v2218, %v2458
        %v2498 = vadd.f32 %v2219, %v2461
        %v2499 = vadd.f32 %v2220, %v2464
        %v2500 = vadd.f32 %v2221, %v2467
        %v2501 = vld [vmem:[%s2222 + $0x8] sm:$0xff]
        %v2502 = vld [vmem:[%s2222 + $0x10] sm:$0xff]
        %v2503 = vld [vmem:[%s2222 + $0x28] sm:$0xff]
        %v2504 = vld [vmem:[%s2222 + $0x30] sm:$0xff]
        %v2505 = vld [vmem:[%s2222 + $0x48] sm:$0xff]
        %v2506 = vld [vmem:[%s2222 + $0x50] sm:$0xff]
        %v2507 = vld [vmem:[%s2222 + $0x68] sm:$0xff]
        %v2508 = vld [vmem:[%s2222 + $0x70] sm:$0xff]
        %v2509 = vld [vmem:[%s2222 + $0x88] sm:$0xff]
        %v2510 = vld [vmem:[%s2222 + $0x90] sm:$0xff]
        %v2511 = vld [vmem:[%s2222 + $0xa8] sm:$0xff]
        %v2512 = vld [vmem:[%s2222 + $0xb0] sm:$0xff]
        %v2513 = vld [vmem:[%s2222 + $0xc8] sm:$0xff]
        %v2514 = vld [vmem:[%s2222 + $0xd0] sm:$0xff]
        %v2515 = vld [vmem:[%s2222 + $0xe8] sm:$0xff]
        %v2516 = vld [vmem:[%s2222 + $0xf0] sm:$0xff]
        %v2517 = vld [vmem:[%s2222 + $0x108] sm:$0xff]
        %v2518 = vld [vmem:[%s2222 + $0x110] sm:$0xff]
        %v2519 = vld [vmem:[%s2222 + $0x128] sm:$0xff]
        %v2520 = vld [vmem:[%s2222 + $0x130] sm:$0xff]
        %v2521 = vld [vmem:[%s2222 + $0x148] sm:$0xff]
        %v2522 = vld [vmem:[%s2222 + $0x150] sm:$0xff]
        %v2523 = vld [vmem:[%s2222 + $0x168] sm:$0xff]
        %v2524 = vld [vmem:[%s2222 + $0x170] sm:$0xff]
        %v2525 = vld [vmem:[%s2222 + $0x188] sm:$0xff]
        %v2526 = vld [vmem:[%s2222 + $0x190] sm:$0xff]
        %v2527 = vld [vmem:[%s2222 + $0x1a8] sm:$0xff]
        %v2528 = vld [vmem:[%s2222 + $0x1b0] sm:$0xff]
        %v2529 = vld [vmem:[%s2222 + $0x1c8] sm:$0xff]
        %v2530 = vld [vmem:[%s2222 + $0x1d0] sm:$0xff]
        %v2531 = vld [vmem:[%s2222 + $0x1e8] sm:$0xff]
        %v2532 = vld [vmem:[%s2222 + $0x1f0] sm:$0xff]
        %s2533 = scalar_lea.vmem [#allocation6], 224
        %v2534 = vld [vmem:[%s2533] sm:$0xff]
        %v2535 = vld [vmem:[%s2533 + $0x8] sm:$0xff]
        %v2536 = vld [vmem:[%s2533 + $0x10] sm:$0xff]
        %v2537 = vld [vmem:[%s2533 + $0x18] sm:$0xff]
        %v2539 = vsel %vm513, %v2501, 0
        %v2542 = vsel %vm513, %v2502, 0
        %v2545 = vsel %vm513, %v2503, 0
        %v2548 = vsel %vm513, %v2504, 0
        %v2551 = vsel %vm513, %v2505, 0
        %v2554 = vsel %vm513, %v2506, 0
        %v2557 = vsel %vm513, %v2507, 0
        %v2560 = vsel %vm513, %v2508, 0
        %v2563 = vsel %vm513, %v2509, 0
        %v2566 = vsel %vm513, %v2510, 0
        %v2569 = vsel %vm513, %v2511, 0
        %v2572 = vsel %vm513, %v2512, 0
        %v2575 = vsel %vm513, %v2513, 0
        %v2578 = vsel %vm513, %v2514, 0
        %v2581 = vsel %vm513, %v2515, 0
        %v2584 = vsel %vm513, %v2516, 0
        %v2587 = vsel %vm513, %v2517, 0
        %v2590 = vsel %vm513, %v2518, 0
        %v2593 = vsel %vm513, %v2519, 0
        %v2596 = vsel %vm513, %v2520, 0
        %v2599 = vsel %vm513, %v2521, 0
        %v2602 = vsel %vm513, %v2522, 0
        %v2605 = vsel %vm513, %v2523, 0
        %v2608 = vsel %vm513, %v2524, 0
        %v2611 = vsel %vm513, %v2525, 0
        %v2614 = vsel %vm513, %v2526, 0
        %v2617 = vsel %vm513, %v2527, 0
        %v2620 = vsel %vm513, %v2528, 0
        %v2623 = vsel %vm513, %v2529, 0
        %v2626 = vsel %vm513, %v2530, 0
        %v2629 = vsel %vm513, %v2531, 0
        %v2632 = vsel %vm513, %v2532, 0
        %2634 = vmatpush.msra.mxu0 0.0
        %2635 = vmatpush.msra.mxu0 0.0
        %2636 = vmatpush.msra.mxu0 0.0
        %2637 = vmatpush.msra.mxu0 0.0
        %2638 = vmatpush.msra.mxu0 0.0
        %2639 = vmatpush.msra.mxu0 0.0
        %2640 = vmatpush.msra.mxu0 0.0
        %2641 = vmatpush.msra.mxu0 0.0
        %2642 = vmatpush.msra.mxu0 0.0
        %2643 = vmatpush.msra.mxu0 0.0
        %2644 = vmatpush.msra.mxu0 0.0
        %2645 = vmatpush.msra.mxu0 0.0
        %2646 = vmatpush.msra.mxu0 %v2537
        %2647 = vmatpush.msra.mxu0 %v2536
        %2648 = vmatpush.msra.mxu0 %v2535
        %2649 = vmatpush.msra.mxu0 %v2534
        %2650 = vmatmul.f32.gmra.mxu0 %v2539
        %v2651 = vpop.f32.mrf.mxu0
        %v2652 = vadd.f32 0.0, %v2651
        %2653 = vmatmul.f32.gmra.mxu0 %v2542
        %v2654 = vpop.f32.mrf.mxu0
        %v2655 = vadd.f32 0.0, %v2654
        %2656 = vmatmul.f32.gmra.mxu0 %v2545
        %v2657 = vpop.f32.mrf.mxu0
        %v2658 = vadd.f32 0.0, %v2657
        %2659 = vmatmul.f32.gmra.mxu0 %v2548
        %v2660 = vpop.f32.mrf.mxu0
        %v2661 = vadd.f32 0.0, %v2660
        %2662 = vmatmul.f32.gmra.mxu0 %v2551
        %v2663 = vpop.f32.mrf.mxu0
        %v2664 = vadd.f32 0.0, %v2663
        %2665 = vmatmul.f32.gmra.mxu0 %v2554
        %v2666 = vpop.f32.mrf.mxu0
        %v2667 = vadd.f32 0.0, %v2666
        %2668 = vmatmul.f32.gmra.mxu0 %v2557
        %v2669 = vpop.f32.mrf.mxu0
        %v2670 = vadd.f32 0.0, %v2669
        %2671 = vmatmul.f32.gmra.mxu0 %v2560
        %v2672 = vpop.f32.mrf.mxu0
        %v2673 = vadd.f32 0.0, %v2672
        %2674 = vmatmul.f32.gmra.mxu0 %v2563
        %v2675 = vpop.f32.mrf.mxu0
        %v2676 = vadd.f32 0.0, %v2675
        %2677 = vmatmul.f32.gmra.mxu0 %v2566
        %v2678 = vpop.f32.mrf.mxu0
        %v2679 = vadd.f32 0.0, %v2678
        %2680 = vmatmul.f32.gmra.mxu0 %v2569
        %v2681 = vpop.f32.mrf.mxu0
        %v2682 = vadd.f32 0.0, %v2681
        %2683 = vmatmul.f32.gmra.mxu0 %v2572
        %v2684 = vpop.f32.mrf.mxu0
        %v2685 = vadd.f32 0.0, %v2684
        %2686 = vmatmul.f32.gmra.mxu0 %v2575
        %v2687 = vpop.f32.mrf.mxu0
        %v2688 = vadd.f32 0.0, %v2687
        %2689 = vmatmul.f32.gmra.mxu0 %v2578
        %v2690 = vpop.f32.mrf.mxu0
        %v2691 = vadd.f32 0.0, %v2690
        %2692 = vmatmul.f32.gmra.mxu0 %v2581
        %v2693 = vpop.f32.mrf.mxu0
        %v2694 = vadd.f32 0.0, %v2693
        %2695 = vmatmul.f32.gmra.mxu0 %v2584
        %v2696 = vpop.f32.mrf.mxu0
        %v2697 = vadd.f32 0.0, %v2696
        %2698 = vmatmul.f32.gmra.mxu0 %v2587
        %v2699 = vpop.f32.mrf.mxu0
        %v2700 = vadd.f32 0.0, %v2699
        %2701 = vmatmul.f32.gmra.mxu0 %v2590
        %v2702 = vpop.f32.mrf.mxu0
        %v2703 = vadd.f32 0.0, %v2702
        %2704 = vmatmul.f32.gmra.mxu0 %v2593
        %v2705 = vpop.f32.mrf.mxu0
        %v2706 = vadd.f32 0.0, %v2705
        %2707 = vmatmul.f32.gmra.mxu0 %v2596
        %v2708 = vpop.f32.mrf.mxu0
        %v2709 = vadd.f32 0.0, %v2708
        %2710 = vmatmul.f32.gmra.mxu0 %v2599
        %v2711 = vpop.f32.mrf.mxu0
        %v2712 = vadd.f32 0.0, %v2711
        %2713 = vmatmul.f32.gmra.mxu0 %v2602
        %v2714 = vpop.f32.mrf.mxu0
        %v2715 = vadd.f32 0.0, %v2714
        %2716 = vmatmul.f32.gmra.mxu0 %v2605
        %v2717 = vpop.f32.mrf.mxu0
        %v2718 = vadd.f32 0.0, %v2717
        %2719 = vmatmul.f32.gmra.mxu0 %v2608
        %v2720 = vpop.f32.mrf.mxu0
        %v2721 = vadd.f32 0.0, %v2720
        %2722 = vmatmul.f32.gmra.mxu0 %v2611
        %v2723 = vpop.f32.mrf.mxu0
        %v2724 = vadd.f32 0.0, %v2723
        %2725 = vmatmul.f32.gmra.mxu0 %v2614
        %v2726 = vpop.f32.mrf.mxu0
        %v2727 = vadd.f32 0.0, %v2726
        %2728 = vmatmul.f32.gmra.mxu0 %v2617
        %v2729 = vpop.f32.mrf.mxu0
        %v2730 = vadd.f32 0.0, %v2729
        %2731 = vmatmul.f32.gmra.mxu0 %v2620
        %v2732 = vpop.f32.mrf.mxu0
        %v2733 = vadd.f32 0.0, %v2732
        %2734 = vmatmul.f32.gmra.mxu0 %v2623
        %v2735 = vpop.f32.mrf.mxu0
        %v2736 = vadd.f32 0.0, %v2735
        %2737 = vmatmul.f32.gmra.mxu0 %v2626
        %v2738 = vpop.f32.mrf.mxu0
        %v2739 = vadd.f32 0.0, %v2738
        %2740 = vmatmul.f32.gmra.mxu0 %v2629
        %v2741 = vpop.f32.mrf.mxu0
        %v2742 = vadd.f32 0.0, %v2741
        %2743 = vmatmul.f32.gmra.mxu0 %v2632
        %v2744 = vpop.f32.mrf.mxu0
        %v2745 = vadd.f32 0.0, %v2744
        %2746 = vdwg.mxu0
        %v2747 = vadd.f32 %v2469, %v2652
        %v2748 = vadd.f32 %v2470, %v2655
        %v2749 = vadd.f32 %v2471, %v2658
        %v2750 = vadd.f32 %v2472, %v2661
        %v2751 = vadd.f32 %v2473, %v2664
        %v2752 = vadd.f32 %v2474, %v2667
        %v2753 = vadd.f32 %v2475, %v2670
        %v2754 = vadd.f32 %v2476, %v2673
        %v2755 = vadd.f32 %v2477, %v2676
        %v2756 = vadd.f32 %v2478, %v2679
        %v2757 = vadd.f32 %v2479, %v2682
        %v2758 = vadd.f32 %v2480, %v2685
        %v2759 = vadd.f32 %v2481, %v2688
        %v2760 = vadd.f32 %v2482, %v2691
        %v2761 = vadd.f32 %v2483, %v2694
        %v2762 = vadd.f32 %v2484, %v2697
        %v2763 = vadd.f32 %v2485, %v2700
        %v2764 = vadd.f32 %v2486, %v2703
        %v2765 = vadd.f32 %v2487, %v2706
        %v2766 = vadd.f32 %v2488, %v2709
        %v2767 = vadd.f32 %v2489, %v2712
        %v2768 = vadd.f32 %v2490, %v2715
        %v2769 = vadd.f32 %v2491, %v2718
        %v2770 = vadd.f32 %v2492, %v2721
        %v2771 = vadd.f32 %v2493, %v2724
        %v2772 = vadd.f32 %v2494, %v2727
        %v2773 = vadd.f32 %v2495, %v2730
        %v2774 = vadd.f32 %v2496, %v2733
        %v2775 = vadd.f32 %v2497, %v2736
        %v2776 = vadd.f32 %v2498, %v2739
        %v2777 = vadd.f32 %v2499, %v2742
        %v2778 = vadd.f32 %v2500, %v2745
        %v2779 = vld [vmem:[%s2222 + $0x9] sm:$0xff]
        %v2780 = vld [vmem:[%s2222 + $0x11] sm:$0xff]
        %v2781 = vld [vmem:[%s2222 + $0x29] sm:$0xff]
        %v2782 = vld [vmem:[%s2222 + $0x31] sm:$0xff]
        %v2783 = vld [vmem:[%s2222 + $0x49] sm:$0xff]
        %v2784 = vld [vmem:[%s2222 + $0x51] sm:$0xff]
        %v2785 = vld [vmem:[%s2222 + $0x69] sm:$0xff]
        %v2786 = vld [vmem:[%s2222 + $0x71] sm:$0xff]
        %v2787 = vld [vmem:[%s2222 + $0x89] sm:$0xff]
        %v2788 = vld [vmem:[%s2222 + $0x91] sm:$0xff]
        %v2789 = vld [vmem:[%s2222 + $0xa9] sm:$0xff]
        %v2790 = vld [vmem:[%s2222 + $0xb1] sm:$0xff]
        %v2791 = vld [vmem:[%s2222 + $0xc9] sm:$0xff]
        %v2792 = vld [vmem:[%s2222 + $0xd1] sm:$0xff]
        %v2793 = vld [vmem:[%s2222 + $0xe9] sm:$0xff]
        %v2794 = vld [vmem:[%s2222 + $0xf1] sm:$0xff]
        %v2795 = vld [vmem:[%s2222 + $0x109] sm:$0xff]
        %v2796 = vld [vmem:[%s2222 + $0x111] sm:$0xff]
        %v2797 = vld [vmem:[%s2222 + $0x129] sm:$0xff]
        %v2798 = vld [vmem:[%s2222 + $0x131] sm:$0xff]
        %v2799 = vld [vmem:[%s2222 + $0x149] sm:$0xff]
        %v2800 = vld [vmem:[%s2222 + $0x151] sm:$0xff]
        %v2801 = vld [vmem:[%s2222 + $0x169] sm:$0xff]
        %v2802 = vld [vmem:[%s2222 + $0x171] sm:$0xff]
        %v2803 = vld [vmem:[%s2222 + $0x189] sm:$0xff]
        %v2804 = vld [vmem:[%s2222 + $0x191] sm:$0xff]
        %v2805 = vld [vmem:[%s2222 + $0x1a9] sm:$0xff]
        %v2806 = vld [vmem:[%s2222 + $0x1b1] sm:$0xff]
        %v2807 = vld [vmem:[%s2222 + $0x1c9] sm:$0xff]
        %v2808 = vld [vmem:[%s2222 + $0x1d1] sm:$0xff]
        %v2809 = vld [vmem:[%s2222 + $0x1e9] sm:$0xff]
        %v2810 = vld [vmem:[%s2222 + $0x1f1] sm:$0xff]
        %s2811 = scalar_lea.vmem [#allocation6], 256
        %v2812 = vld [vmem:[%s2811] sm:$0xff]
        %v2813 = vld [vmem:[%s2811 + $0x8] sm:$0xff]
        %v2814 = vld [vmem:[%s2811 + $0x10] sm:$0xff]
        %v2815 = vld [vmem:[%s2811 + $0x18] sm:$0xff]
        %v2817 = vsel %vm513, %v2779, 0
        %v2820 = vsel %vm513, %v2780, 0
        %v2823 = vsel %vm513, %v2781, 0
        %v2826 = vsel %vm513, %v2782, 0
        %v2829 = vsel %vm513, %v2783, 0
        %v2832 = vsel %vm513, %v2784, 0
        %v2835 = vsel %vm513, %v2785, 0
        %v2838 = vsel %vm513, %v2786, 0
        %v2841 = vsel %vm513, %v2787, 0
        %v2844 = vsel %vm513, %v2788, 0
        %v2847 = vsel %vm513, %v2789, 0
        %v2850 = vsel %vm513, %v2790, 0
        %v2853 = vsel %vm513, %v2791, 0
        %v2856 = vsel %vm513, %v2792, 0
        %v2859 = vsel %vm513, %v2793, 0
        %v2862 = vsel %vm513, %v2794, 0
        %v2865 = vsel %vm513, %v2795, 0
        %v2868 = vsel %vm513, %v2796, 0
        %v2871 = vsel %vm513, %v2797, 0
        %v2874 = vsel %vm513, %v2798, 0
        %v2877 = vsel %vm513, %v2799, 0
        %v2880 = vsel %vm513, %v2800, 0
        %v2883 = vsel %vm513, %v2801, 0
        %v2886 = vsel %vm513, %v2802, 0
        %v2889 = vsel %vm513, %v2803, 0
        %v2892 = vsel %vm513, %v2804, 0
        %v2895 = vsel %vm513, %v2805, 0
        %v2898 = vsel %vm513, %v2806, 0
        %v2901 = vsel %vm513, %v2807, 0
        %v2904 = vsel %vm513, %v2808, 0
        %v2907 = vsel %vm513, %v2809, 0
        %v2910 = vsel %vm513, %v2810, 0
        %2912 = vmatpush.msra.mxu0 0.0
        %2913 = vmatpush.msra.mxu0 0.0
        %2914 = vmatpush.msra.mxu0 0.0
        %2915 = vmatpush.msra.mxu0 0.0
        %2916 = vmatpush.msra.mxu0 0.0
        %2917 = vmatpush.msra.mxu0 0.0
        %2918 = vmatpush.msra.mxu0 0.0
        %2919 = vmatpush.msra.mxu0 0.0
        %2920 = vmatpush.msra.mxu0 0.0
        %2921 = vmatpush.msra.mxu0 0.0
        %2922 = vmatpush.msra.mxu0 0.0
        %2923 = vmatpush.msra.mxu0 0.0
        %2924 = vmatpush.msra.mxu0 %v2815
        %2925 = vmatpush.msra.mxu0 %v2814
        %2926 = vmatpush.msra.mxu0 %v2813
        %2927 = vmatpush.msra.mxu0 %v2812
        %2928 = vmatmul.f32.gmra.mxu0 %v2817
        %v2929 = vpop.f32.mrf.mxu0
        %v2930 = vadd.f32 0.0, %v2929
        %2931 = vmatmul.f32.gmra.mxu0 %v2820
        %v2932 = vpop.f32.mrf.mxu0
        %v2933 = vadd.f32 0.0, %v2932
        %2934 = vmatmul.f32.gmra.mxu0 %v2823
        %v2935 = vpop.f32.mrf.mxu0
        %v2936 = vadd.f32 0.0, %v2935
        %2937 = vmatmul.f32.gmra.mxu0 %v2826
        %v2938 = vpop.f32.mrf.mxu0
        %v2939 = vadd.f32 0.0, %v2938
        %2940 = vmatmul.f32.gmra.mxu0 %v2829
        %v2941 = vpop.f32.mrf.mxu0
        %v2942 = vadd.f32 0.0, %v2941
        %2943 = vmatmul.f32.gmra.mxu0 %v2832
        %v2944 = vpop.f32.mrf.mxu0
        %v2945 = vadd.f32 0.0, %v2944
        %2946 = vmatmul.f32.gmra.mxu0 %v2835
        %v2947 = vpop.f32.mrf.mxu0
        %v2948 = vadd.f32 0.0, %v2947
        %2949 = vmatmul.f32.gmra.mxu0 %v2838
        %v2950 = vpop.f32.mrf.mxu0
        %v2951 = vadd.f32 0.0, %v2950
        %2952 = vmatmul.f32.gmra.mxu0 %v2841
        %v2953 = vpop.f32.mrf.mxu0
        %v2954 = vadd.f32 0.0, %v2953
        %2955 = vmatmul.f32.gmra.mxu0 %v2844
        %v2956 = vpop.f32.mrf.mxu0
        %v2957 = vadd.f32 0.0, %v2956
        %2958 = vmatmul.f32.gmra.mxu0 %v2847
        %v2959 = vpop.f32.mrf.mxu0
        %v2960 = vadd.f32 0.0, %v2959
        %2961 = vmatmul.f32.gmra.mxu0 %v2850
        %v2962 = vpop.f32.mrf.mxu0
        %v2963 = vadd.f32 0.0, %v2962
        %2964 = vmatmul.f32.gmra.mxu0 %v2853
        %v2965 = vpop.f32.mrf.mxu0
        %v2966 = vadd.f32 0.0, %v2965
        %2967 = vmatmul.f32.gmra.mxu0 %v2856
        %v2968 = vpop.f32.mrf.mxu0
        %v2969 = vadd.f32 0.0, %v2968
        %2970 = vmatmul.f32.gmra.mxu0 %v2859
        %v2971 = vpop.f32.mrf.mxu0
        %v2972 = vadd.f32 0.0, %v2971
        %2973 = vmatmul.f32.gmra.mxu0 %v2862
        %v2974 = vpop.f32.mrf.mxu0
        %v2975 = vadd.f32 0.0, %v2974
        %2976 = vmatmul.f32.gmra.mxu0 %v2865
        %v2977 = vpop.f32.mrf.mxu0
        %v2978 = vadd.f32 0.0, %v2977
        %2979 = vmatmul.f32.gmra.mxu0 %v2868
        %v2980 = vpop.f32.mrf.mxu0
        %v2981 = vadd.f32 0.0, %v2980
        %2982 = vmatmul.f32.gmra.mxu0 %v2871
        %v2983 = vpop.f32.mrf.mxu0
        %v2984 = vadd.f32 0.0, %v2983
        %2985 = vmatmul.f32.gmra.mxu0 %v2874
        %v2986 = vpop.f32.mrf.mxu0
        %v2987 = vadd.f32 0.0, %v2986
        %2988 = vmatmul.f32.gmra.mxu0 %v2877
        %v2989 = vpop.f32.mrf.mxu0
        %v2990 = vadd.f32 0.0, %v2989
        %2991 = vmatmul.f32.gmra.mxu0 %v2880
        %v2992 = vpop.f32.mrf.mxu0
        %v2993 = vadd.f32 0.0, %v2992
        %2994 = vmatmul.f32.gmra.mxu0 %v2883
        %v2995 = vpop.f32.mrf.mxu0
        %v2996 = vadd.f32 0.0, %v2995
        %2997 = vmatmul.f32.gmra.mxu0 %v2886
        %v2998 = vpop.f32.mrf.mxu0
        %v2999 = vadd.f32 0.0, %v2998
        %3000 = vmatmul.f32.gmra.mxu0 %v2889
        %v3001 = vpop.f32.mrf.mxu0
        %v3002 = vadd.f32 0.0, %v3001
        %3003 = vmatmul.f32.gmra.mxu0 %v2892
        %v3004 = vpop.f32.mrf.mxu0
        %v3005 = vadd.f32 0.0, %v3004
        %3006 = vmatmul.f32.gmra.mxu0 %v2895
        %v3007 = vpop.f32.mrf.mxu0
        %v3008 = vadd.f32 0.0, %v3007
        %3009 = vmatmul.f32.gmra.mxu0 %v2898
        %v3010 = vpop.f32.mrf.mxu0
        %v3011 = vadd.f32 0.0, %v3010
        %3012 = vmatmul.f32.gmra.mxu0 %v2901
        %v3013 = vpop.f32.mrf.mxu0
        %v3014 = vadd.f32 0.0, %v3013
        %3015 = vmatmul.f32.gmra.mxu0 %v2904
        %v3016 = vpop.f32.mrf.mxu0
        %v3017 = vadd.f32 0.0, %v3016
        %3018 = vmatmul.f32.gmra.mxu0 %v2907
        %v3019 = vpop.f32.mrf.mxu0
        %v3020 = vadd.f32 0.0, %v3019
        %3021 = vmatmul.f32.gmra.mxu0 %v2910
        %v3022 = vpop.f32.mrf.mxu0
        %v3023 = vadd.f32 0.0, %v3022
        %3024 = vdwg.mxu0
        %v3025 = vadd.f32 %v2747, %v2930
        %v3026 = vadd.f32 %v2748, %v2933
        %v3027 = vadd.f32 %v2749, %v2936
        %v3028 = vadd.f32 %v2750, %v2939
        %v3029 = vadd.f32 %v2751, %v2942
        %v3030 = vadd.f32 %v2752, %v2945
        %v3031 = vadd.f32 %v2753, %v2948
        %v3032 = vadd.f32 %v2754, %v2951
        %v3033 = vadd.f32 %v2755, %v2954
        %v3034 = vadd.f32 %v2756, %v2957
        %v3035 = vadd.f32 %v2757, %v2960
        %v3036 = vadd.f32 %v2758, %v2963
        %v3037 = vadd.f32 %v2759, %v2966
        %v3038 = vadd.f32 %v2760, %v2969
        %v3039 = vadd.f32 %v2761, %v2972
        %v3040 = vadd.f32 %v2762, %v2975
        %v3041 = vadd.f32 %v2763, %v2978
        %v3042 = vadd.f32 %v2764, %v2981
        %v3043 = vadd.f32 %v2765, %v2984
        %v3044 = vadd.f32 %v2766, %v2987
        %v3045 = vadd.f32 %v2767, %v2990
        %v3046 = vadd.f32 %v2768, %v2993
        %v3047 = vadd.f32 %v2769, %v2996
        %v3048 = vadd.f32 %v2770, %v2999
        %v3049 = vadd.f32 %v2771, %v3002
        %v3050 = vadd.f32 %v2772, %v3005
        %v3051 = vadd.f32 %v2773, %v3008
        %v3052 = vadd.f32 %v2774, %v3011
        %v3053 = vadd.f32 %v2775, %v3014
        %v3054 = vadd.f32 %v2776, %v3017
        %v3055 = vadd.f32 %v2777, %v3020
        %v3056 = vadd.f32 %v2778, %v3023
        %v3057 = vld [vmem:[%s4] sm:$0x1]
        %v3059 = vperm.slane %v3057, 0
        %v3061 = vadd.f32 %v3025, %v3059
        %v3062 = vadd.f32 %v3026, %v3059
        %v3063 = vadd.f32 %v3027, %v3059
        %v3064 = vadd.f32 %v3028, %v3059
        %v3065 = vadd.f32 %v3029, %v3059
        %v3066 = vadd.f32 %v3030, %v3059
        %v3067 = vadd.f32 %v3031, %v3059
        %v3068 = vadd.f32 %v3032, %v3059
        %v3069 = vadd.f32 %v3033, %v3059
        %v3070 = vadd.f32 %v3034, %v3059
        %v3071 = vadd.f32 %v3035, %v3059
        %v3072 = vadd.f32 %v3036, %v3059
        %v3073 = vadd.f32 %v3037, %v3059
        %v3074 = vadd.f32 %v3038, %v3059
        %v3075 = vadd.f32 %v3039, %v3059
        %v3076 = vadd.f32 %v3040, %v3059
        %v3077 = vadd.f32 %v3041, %v3059
        %v3078 = vadd.f32 %v3042, %v3059
        %v3079 = vadd.f32 %v3043, %v3059
        %v3080 = vadd.f32 %v3044, %v3059
        %v3081 = vadd.f32 %v3045, %v3059
        %v3082 = vadd.f32 %v3046, %v3059
        %v3083 = vadd.f32 %v3047, %v3059
        %v3084 = vadd.f32 %v3048, %v3059
        %v3085 = vadd.f32 %v3049, %v3059
        %v3086 = vadd.f32 %v3050, %v3059
        %v3087 = vadd.f32 %v3051, %v3059
        %v3088 = vadd.f32 %v3052, %v3059
        %v3089 = vadd.f32 %v3053, %v3059
        %v3090 = vadd.f32 %v3054, %v3059
        %v3091 = vadd.f32 %v3055, %v3059
        %v3092 = vadd.f32 %v3056, %v3059
        %v3093 = vmax.f32 %v3061, 0.0
        %v3094 = vmax.f32 %v3062, 0.0
        %v3095 = vmax.f32 %v3063, 0.0
        %v3096 = vmax.f32 %v3064, 0.0
        %v3097 = vmax.f32 %v3065, 0.0
        %v3098 = vmax.f32 %v3066, 0.0
        %v3099 = vmax.f32 %v3067, 0.0
        %v3100 = vmax.f32 %v3068, 0.0
        %v3101 = vmax.f32 %v3069, 0.0
        %v3102 = vmax.f32 %v3070, 0.0
        %v3103 = vmax.f32 %v3071, 0.0
        %v3104 = vmax.f32 %v3072, 0.0
        %v3105 = vmax.f32 %v3073, 0.0
        %v3106 = vmax.f32 %v3074, 0.0
        %v3107 = vmax.f32 %v3075, 0.0
        %v3108 = vmax.f32 %v3076, 0.0
        %v3109 = vmax.f32 %v3077, 0.0
        %v3110 = vmax.f32 %v3078, 0.0
        %v3111 = vmax.f32 %v3079, 0.0
        %v3112 = vmax.f32 %v3080, 0.0
        %v3113 = vmax.f32 %v3081, 0.0
        %v3114 = vmax.f32 %v3082, 0.0
        %v3115 = vmax.f32 %v3083, 0.0
        %v3116 = vmax.f32 %v3084, 0.0
        %v3117 = vmax.f32 %v3085, 0.0
        %v3118 = vmax.f32 %v3086, 0.0
        %v3119 = vmax.f32 %v3087, 0.0
        %v3120 = vmax.f32 %v3088, 0.0
        %v3121 = vmax.f32 %v3089, 0.0
        %v3122 = vmax.f32 %v3090, 0.0
        %v3123 = vmax.f32 %v3091, 0.0
        %v3124 = vmax.f32 %v3092, 0.0
        %v3125 = vld [vmem:[%s5] sm:$0xff]
        %v3126 = vld [vmem:[%s5 + $0x8] sm:$0xff]
        %v3127 = vld [vmem:[%s5 + $0x10] sm:$0xff]
        %v3128 = vld [vmem:[%s5 + $0x18] sm:$0xff]
        %v3129 = vld [vmem:[%s6] sm:$0x1]
        %v3131 = vperm.slane %v3129, 0
        %v3134 = vsel %vm513, %v3093, 0
        %v3137 = vsel %vm513, %v3094, 0
        %v3140 = vsel %vm513, %v3095, 0
        %v3143 = vsel %vm513, %v3096, 0
        %v3146 = vsel %vm513, %v3097, 0
        %v3149 = vsel %vm513, %v3098, 0
        %v3152 = vsel %vm513, %v3099, 0
        %v3155 = vsel %vm513, %v3100, 0
        %v3158 = vsel %vm513, %v3101, 0
        %v3161 = vsel %vm513, %v3102, 0
        %v3164 = vsel %vm513, %v3103, 0
        %v3167 = vsel %vm513, %v3104, 0
        %v3170 = vsel %vm513, %v3105, 0
        %v3173 = vsel %vm513, %v3106, 0
        %v3176 = vsel %vm513, %v3107, 0
        %v3179 = vsel %vm513, %v3108, 0
        %v3182 = vsel %vm513, %v3109, 0
        %v3185 = vsel %vm513, %v3110, 0
        %v3188 = vsel %vm513, %v3111, 0
        %v3191 = vsel %vm513, %v3112, 0
        %v3194 = vsel %vm513, %v3113, 0
        %v3197 = vsel %vm513, %v3114, 0
        %v3200 = vsel %vm513, %v3115, 0
        %v3203 = vsel %vm513, %v3116, 0
        %v3206 = vsel %vm513, %v3117, 0
        %v3209 = vsel %vm513, %v3118, 0
        %v3212 = vsel %vm513, %v3119, 0
        %v3215 = vsel %vm513, %v3120, 0
        %v3218 = vsel %vm513, %v3121, 0
        %v3221 = vsel %vm513, %v3122, 0
        %v3224 = vsel %vm513, %v3123, 0
        %v3227 = vsel %vm513, %v3124, 0
        %3229 = vmatpush.msra.mxu0 0.0
        %3230 = vmatpush.msra.mxu0 0.0
        %3231 = vmatpush.msra.mxu0 0.0
        %3232 = vmatpush.msra.mxu0 0.0
        %3233 = vmatpush.msra.mxu0 0.0
        %3234 = vmatpush.msra.mxu0 0.0
        %3235 = vmatpush.msra.mxu0 0.0
        %3236 = vmatpush.msra.mxu0 0.0
        %3237 = vmatpush.msra.mxu0 0.0
        %3238 = vmatpush.msra.mxu0 0.0
        %3239 = vmatpush.msra.mxu0 0.0
        %3240 = vmatpush.msra.mxu0 0.0
        %3241 = vmatpush.msra.mxu0 %v3128
        %3242 = vmatpush.msra.mxu0 %v3127
        %3243 = vmatpush.msra.mxu0 %v3126
        %3244 = vmatpush.msra.mxu0 %v3125
        %3245 = vmatmul.f32.gmra.mxu0 %v3134
        %v3246 = vpop.f32.mrf.mxu0
        %v3247 = vadd.f32 %v3131, %v3246
        %3248 = vmatmul.f32.gmra.mxu0 %v3137
        %v3249 = vpop.f32.mrf.mxu0
        %v3250 = vadd.f32 %v3131, %v3249
        %3251 = vmatmul.f32.gmra.mxu0 %v3140
        %v3252 = vpop.f32.mrf.mxu0
        %v3253 = vadd.f32 %v3131, %v3252
        %3254 = vmatmul.f32.gmra.mxu0 %v3143
        %v3255 = vpop.f32.mrf.mxu0
        %v3256 = vadd.f32 %v3131, %v3255
        %3257 = vmatmul.f32.gmra.mxu0 %v3146
        %v3258 = vpop.f32.mrf.mxu0
        %v3259 = vadd.f32 %v3131, %v3258
        %3260 = vmatmul.f32.gmra.mxu0 %v3149
        %v3261 = vpop.f32.mrf.mxu0
        %v3262 = vadd.f32 %v3131, %v3261
        %3263 = vmatmul.f32.gmra.mxu0 %v3152
        %v3264 = vpop.f32.mrf.mxu0
        %v3265 = vadd.f32 %v3131, %v3264
        %3266 = vmatmul.f32.gmra.mxu0 %v3155
        %v3267 = vpop.f32.mrf.mxu0
        %v3268 = vadd.f32 %v3131, %v3267
        %3269 = vmatmul.f32.gmra.mxu0 %v3158
        %v3270 = vpop.f32.mrf.mxu0
        %v3271 = vadd.f32 %v3131, %v3270
        %3272 = vmatmul.f32.gmra.mxu0 %v3161
        %v3273 = vpop.f32.mrf.mxu0
        %v3274 = vadd.f32 %v3131, %v3273
        %3275 = vmatmul.f32.gmra.mxu0 %v3164
        %v3276 = vpop.f32.mrf.mxu0
        %v3277 = vadd.f32 %v3131, %v3276
        %3278 = vmatmul.f32.gmra.mxu0 %v3167
        %v3279 = vpop.f32.mrf.mxu0
        %v3280 = vadd.f32 %v3131, %v3279
        %3281 = vmatmul.f32.gmra.mxu0 %v3170
        %v3282 = vpop.f32.mrf.mxu0
        %v3283 = vadd.f32 %v3131, %v3282
        %3284 = vmatmul.f32.gmra.mxu0 %v3173
        %v3285 = vpop.f32.mrf.mxu0
        %v3286 = vadd.f32 %v3131, %v3285
        %3287 = vmatmul.f32.gmra.mxu0 %v3176
        %v3288 = vpop.f32.mrf.mxu0
        %v3289 = vadd.f32 %v3131, %v3288
        %3290 = vmatmul.f32.gmra.mxu0 %v3179
        %v3291 = vpop.f32.mrf.mxu0
        %v3292 = vadd.f32 %v3131, %v3291
        %3293 = vmatmul.f32.gmra.mxu0 %v3182
        %v3294 = vpop.f32.mrf.mxu0
        %v3295 = vadd.f32 %v3131, %v3294
        %3296 = vmatmul.f32.gmra.mxu0 %v3185
        %v3297 = vpop.f32.mrf.mxu0
        %v3298 = vadd.f32 %v3131, %v3297
        %3299 = vmatmul.f32.gmra.mxu0 %v3188
        %v3300 = vpop.f32.mrf.mxu0
        %v3301 = vadd.f32 %v3131, %v3300
        %3302 = vmatmul.f32.gmra.mxu0 %v3191
        %v3303 = vpop.f32.mrf.mxu0
        %v3304 = vadd.f32 %v3131, %v3303
        %3305 = vmatmul.f32.gmra.mxu0 %v3194
        %v3306 = vpop.f32.mrf.mxu0
        %v3307 = vadd.f32 %v3131, %v3306
        %3308 = vmatmul.f32.gmra.mxu0 %v3197
        %v3309 = vpop.f32.mrf.mxu0
        %v3310 = vadd.f32 %v3131, %v3309
        %3311 = vmatmul.f32.gmra.mxu0 %v3200
        %v3312 = vpop.f32.mrf.mxu0
        %v3313 = vadd.f32 %v3131, %v3312
        %3314 = vmatmul.f32.gmra.mxu0 %v3203
        %v3315 = vpop.f32.mrf.mxu0
        %v3316 = vadd.f32 %v3131, %v3315
        %3317 = vmatmul.f32.gmra.mxu0 %v3206
        %v3318 = vpop.f32.mrf.mxu0
        %v3319 = vadd.f32 %v3131, %v3318
        %3320 = vmatmul.f32.gmra.mxu0 %v3209
        %v3321 = vpop.f32.mrf.mxu0
        %v3322 = vadd.f32 %v3131, %v3321
        %3323 = vmatmul.f32.gmra.mxu0 %v3212
        %v3324 = vpop.f32.mrf.mxu0
        %v3325 = vadd.f32 %v3131, %v3324
        %3326 = vmatmul.f32.gmra.mxu0 %v3215
        %v3327 = vpop.f32.mrf.mxu0
        %v3328 = vadd.f32 %v3131, %v3327
        %3329 = vmatmul.f32.gmra.mxu0 %v3218
        %v3330 = vpop.f32.mrf.mxu0
        %v3331 = vadd.f32 %v3131, %v3330
        %3332 = vmatmul.f32.gmra.mxu0 %v3221
        %v3333 = vpop.f32.mrf.mxu0
        %v3334 = vadd.f32 %v3131, %v3333
        %3335 = vmatmul.f32.gmra.mxu0 %v3224
        %v3336 = vpop.f32.mrf.mxu0
        %v3337 = vadd.f32 %v3131, %v3336
        %3338 = vmatmul.f32.gmra.mxu0 %v3227
        %v3339 = vpop.f32.mrf.mxu0
        %v3340 = vadd.f32 %v3131, %v3339
        %3341 = vdwg.mxu0
        %v3342 = vadd.f32 %v3247, %v316
        %v3343 = vadd.f32 %v3250, %v317
        %v3344 = vadd.f32 %v3253, %v318
        %v3345 = vadd.f32 %v3256, %v319
        %v3346 = vadd.f32 %v3259, %v320
        %v3347 = vadd.f32 %v3262, %v321
        %v3348 = vadd.f32 %v3265, %v322
        %v3349 = vadd.f32 %v3268, %v323
        %v3350 = vadd.f32 %v3271, %v324
        %v3351 = vadd.f32 %v3274, %v325
        %v3352 = vadd.f32 %v3277, %v326
        %v3353 = vadd.f32 %v3280, %v327
        %v3354 = vadd.f32 %v3283, %v328
        %v3355 = vadd.f32 %v3286, %v329
        %v3356 = vadd.f32 %v3289, %v330
        %v3357 = vadd.f32 %v3292, %v331
        %v3358 = vadd.f32 %v3295, %v332
        %v3359 = vadd.f32 %v3298, %v333
        %v3360 = vadd.f32 %v3301, %v334
        %v3361 = vadd.f32 %v3304, %v335
        %v3362 = vadd.f32 %v3307, %v336
        %v3363 = vadd.f32 %v3310, %v337
        %v3364 = vadd.f32 %v3313, %v338
        %v3365 = vadd.f32 %v3316, %v339
        %v3366 = vadd.f32 %v3319, %v340
        %v3367 = vadd.f32 %v3322, %v341
        %v3368 = vadd.f32 %v3325, %v342
        %v3369 = vadd.f32 %v3328, %v343
        %v3370 = vadd.f32 %v3331, %v344
        %v3371 = vadd.f32 %v3334, %v345
        %v3372 = vadd.f32 %v3337, %v346
        %v3373 = vadd.f32 %v3340, %v347
        %v3374 = vmax.f32 %v3342, 0.0
        %v3375 = vmax.f32 %v3343, 0.0
        %v3376 = vmax.f32 %v3344, 0.0
        %v3377 = vmax.f32 %v3345, 0.0
        %v3378 = vmax.f32 %v3346, 0.0
        %v3379 = vmax.f32 %v3347, 0.0
        %v3380 = vmax.f32 %v3348, 0.0
        %v3381 = vmax.f32 %v3349, 0.0
        %v3382 = vmax.f32 %v3350, 0.0
        %v3383 = vmax.f32 %v3351, 0.0
        %v3384 = vmax.f32 %v3352, 0.0
        %v3385 = vmax.f32 %v3353, 0.0
        %v3386 = vmax.f32 %v3354, 0.0
        %v3387 = vmax.f32 %v3355, 0.0
        %v3388 = vmax.f32 %v3356, 0.0
        %v3389 = vmax.f32 %v3357, 0.0
        %v3390 = vmax.f32 %v3358, 0.0
        %v3391 = vmax.f32 %v3359, 0.0
        %v3392 = vmax.f32 %v3360, 0.0
        %v3393 = vmax.f32 %v3361, 0.0
        %v3394 = vmax.f32 %v3362, 0.0
        %v3395 = vmax.f32 %v3363, 0.0
        %v3396 = vmax.f32 %v3364, 0.0
        %v3397 = vmax.f32 %v3365, 0.0
        %v3398 = vmax.f32 %v3366, 0.0
        %v3399 = vmax.f32 %v3367, 0.0
        %v3400 = vmax.f32 %v3368, 0.0
        %v3401 = vmax.f32 %v3369, 0.0
        %v3402 = vmax.f32 %v3370, 0.0
        %v3403 = vmax.f32 %v3371, 0.0
        %v3404 = vmax.f32 %v3372, 0.0
        %v3405 = vmax.f32 %v3373, 0.0
        %3406 = vst [vmem:[%s315] sm:$0xff] %v3374
        %3407 = vst [vmem:[%s315 + $0x8] sm:$0xff] %v3375
        %3408 = vst [vmem:[%s315 + $0x10] sm:$0xff] %v3376
        %3409 = vst [vmem:[%s315 + $0x18] sm:$0xff] %v3377
        %3410 = vst [vmem:[%s315 + $0x20] sm:$0xff] %v3378
        %3411 = vst [vmem:[%s315 + $0x28] sm:$0xff] %v3379
        %3412 = vst [vmem:[%s315 + $0x30] sm:$0xff] %v3380
        %3413 = vst [vmem:[%s315 + $0x38] sm:$0xff] %v3381
        %3414 = vst [vmem:[%s315 + $0x40] sm:$0xff] %v3382
        %3415 = vst [vmem:[%s315 + $0x48] sm:$0xff] %v3383
        %3416 = vst [vmem:[%s315 + $0x50] sm:$0xff] %v3384
        %3417 = vst [vmem:[%s315 + $0x58] sm:$0xff] %v3385
        %3418 = vst [vmem:[%s315 + $0x60] sm:$0xff] %v3386
        %3419 = vst [vmem:[%s315 + $0x68] sm:$0xff] %v3387
        %3420 = vst [vmem:[%s315 + $0x70] sm:$0xff] %v3388
        %3421 = vst [vmem:[%s315 + $0x78] sm:$0xff] %v3389
        %3422 = vst [vmem:[%s315 + $0x80] sm:$0xff] %v3390
        %3423 = vst [vmem:[%s315 + $0x88] sm:$0xff] %v3391
        %3424 = vst [vmem:[%s315 + $0x90] sm:$0xff] %v3392
        %3425 = vst [vmem:[%s315 + $0x98] sm:$0xff] %v3393
        %3426 = vst [vmem:[%s315 + $0xa0] sm:$0xff] %v3394
        %3427 = vst [vmem:[%s315 + $0xa8] sm:$0xff] %v3395
        %3428 = vst [vmem:[%s315 + $0xb0] sm:$0xff] %v3396
        %3429 = vst [vmem:[%s315 + $0xb8] sm:$0xff] %v3397
        %3430 = vst [vmem:[%s315 + $0xc0] sm:$0xff] %v3398
        %3431 = vst [vmem:[%s315 + $0xc8] sm:$0xff] %v3399
        %3432 = vst [vmem:[%s315 + $0xd0] sm:$0xff] %v3400
        %3433 = vst [vmem:[%s315 + $0xd8] sm:$0xff] %v3401
        %3434 = vst [vmem:[%s315 + $0xe0] sm:$0xff] %v3402
        %3435 = vst [vmem:[%s315 + $0xe8] sm:$0xff] %v3403
        %3436 = vst [vmem:[%s315 + $0xf0] sm:$0xff] %v3404
        %3437 = vst [vmem:[%s315 + $0xf8] sm:$0xff] %v3405
        %s3438 = sand.u32 %s185, 1
        %s3439 = scalar_lea.sflag [#allocation5], %s3438
        %s3440 = sand.u32 %s185, 1
        %s3441 = smul.addr %s3440, 256
        %s3442 = scalar_lea.vmem [#allocation8], %s3441
        // Predicated region
        $region57: #{tpu_custom_call.1} parent=47 // pred_check
          %p3443 = pneg %p195
        $region58: #{tpu_custom_call.1} parent=47 // pred_check_branch
          %3445 = sbr.rel (%p3443) target = $region60
        $region59: #{tpu_custom_call.1} parent=47 // pred_region
          %3447 = vsyncadd %s3439, 0
          %s3448 = smul.addr %s25, 32
          %s3449 = smul.addr %s3448, 8
          %s3450 = scalar_lea.hbm %s7, %s3449
          %s3451 = sshll.u32 %s3442, 4
          %s3452 = int_to_ptr.vmem [resolvable:$true] %s3451
          %s3453 = sshll.u32 %s3450, 4
          %s3454 = int_to_ptr.hbm [resolvable:$true] %s3453
          %3459 = dma.vmem_to_hbm [thread:$0]  %s3452, 4096, %s3454, %s3439, 128, 128, 8
        $region60: #{tpu_custom_call.1} parent=47 // pred_fallthru
          _
      $region48: #{tpu_custom_call.1} parent=5 // pred_fallthru
        _
      %p3460 = scmp.le.s32.totalorder 2, %s20
      // Predicated region
      $region61: #{tpu_custom_call.1} parent=5 // pred_check
        %p3461 = pneg %p3460
      $region62: #{tpu_custom_call.1} parent=5 // pred_check_branch
        %3463 = sbr.rel (%p3461) target = $region64
      $region63: #{tpu_custom_call.1} parent=5 // pred_region
        %s3464 = ssub.s32 %s20, 2
        // Predicated region
        $region65: #{tpu_custom_call.1} parent=63 // pred_check
          %p3465 = pneg %p201
        $region66: #{tpu_custom_call.1} parent=63 // pred_check_branch
          %3467 = sbr.rel (%p3465) target = $region68
        $region67: #{tpu_custom_call.1} parent=63 // pred_region
          %s3468 = sand.u32 %s186, 1
          %s3469 = scalar_lea.sflag [#allocation5], %s3468
          %s3470 = sand.u32 %s186, 1
          %s3471 = smul.addr %s3470, 256
          %s3472 = scalar_lea.vmem [#allocation8], %s3471
          %3474 = dma.done %s3469, 4096
        $region68: #{tpu_custom_call.1} parent=63 // pred_fallthru
          _
      $region64: #{tpu_custom_call.1} parent=5 // pred_fallthru
        _
    $region6: #{tpu_custom_call.1} parent=1 // loop_footer
      %s24 = sadd.s32 1, %s20
    $region7: #{tpu_custom_call.1} parent=1 // loop_footer_branch
      %19 = sbr.rel target = $region3
    $region8: #{tpu_custom_call.1} parent=1 // loop_exit
      _
    %3475 = vsyncpa [#allocation4], 1
    %s3476 = scalar_lea.sflag [#allocation4], 1
    %3477 = vsyncpa %s3476, 1
    %3478 = vsyncpa [#allocation7], 1
    %3479 = vsyncpa [#allocation5], 1
    %s3480 = scalar_lea.sflag [#allocation5], 1
    %3481 = vsyncpa %s3480, 1

</llo_original>
